<compile_context>
chip_gen: v7x
topology: tpu7x:2x2x1
jax: 0.10.0
libtpu: 0.0.40
codegen_flags: <defaults>
</compile_context>

<pallas_src>
import functools
import math

import jax
import jax.numpy as jnp
from jax.experimental import pallas as pl
from jax.experimental.pallas import tpu as pltpu

# bf16 QuickGELU uses the bf16 VPU/EUP on v6e/v7x; set False on v5e (no bf16 VPU/EUP).
QUICKGELU_IN_BF16 = True


# ------------------------------ helpers ------------------------------------ #

def _layer_norm_f32(v, w, b, eps=1e-5):
    # v: (Nb, L, E) f32, w/b: (E,) f32
    mu = jnp.mean(v, axis=-1, keepdims=True)
    var = jnp.mean((v - mu) ** 2, axis=-1, keepdims=True)
    return (v - mu) * jax.lax.rsqrt(var + eps) * w + b


def _pick_head_group(num_heads, head_dim, target_cols=256):
    """Largest divisor of num_heads with group width (Hg*hd) <= target_cols."""
    g = max(1, min(num_heads, target_cols // max(head_dim, 1)))
    while num_heads % g:
        g -= 1
    return g


def _pick_batch_block(batch, max_block=8):
    """Largest divisor of batch <= max_block, preferring batch//Nb >= 2 (megacore)."""
    nb = min(batch, max_block)
    while nb > 1 and (batch % nb != 0 or batch // nb < 2):
        nb -= 1
    return max(nb, 1)


def _pick_ff_chunk(ff_dim, cap=2048):
    if ff_dim <= cap:
        return ff_dim
    step = 128 if ff_dim % 128 == 0 else 1
    c = cap - (cap % step)
    while c > step and ff_dim % c:
        c -= step
    return max(c, step)


def _clamp_vmem(estimate_bytes):
    # generous headroom, but stay under v7x's 64 MiB physical VMEM
    return int(min(max(2 * estimate_bytes + (8 << 20), 32 << 20), 64 << 20))


# --------------------------- attention kernel ------------------------------- #
# grid = (N//Nb, H//Hg); output block (Nb, L, E) is revisited across g and holds
#   out = x + bo + sum_h softmax(qh kh^T) vh @ Wo[h]

def attn_block_kernel(
    x_ref,                      # (Nb, L, E)      f32
    c_ref,                      # (3, E)          f32  [ln1_w, ln1_b, out_proj bias]
    wqkv_ref,                   # (E, 3*Gd)       bf16 (q-scale folded)
    bqkv_ref,                   # (1, 3*Gd)       f32  (q-scale folded)
    wo_ref,                     # (Gd, E)         bf16
    o_ref,                      # (Nb, L, E)      f32
    y_scratch,                  # (Nb, L, E)      bf16 VMEM (LN1 output, reused)
    *, heads_per_group, head_dim,
):
    g = pl.program_id(1)
    cst = c_ref[...]                                     # (3, E)

    @pl.when(g == 0)
    def _init():
        xf = x_ref[...]
        y = _layer_norm_f32(xf, cst[0], cst[1])
        y_scratch[...] = y.astype(y_scratch.dtype)
        # residual + out_proj bias; per-group contributions accumulate below.
        o_ref[...] = xf + cst[2]

    yb = y_scratch[...]                                  # (Nb, L, E) bf16
    Nb, L, E = yb.shape
    Gd = heads_per_group * head_dim

    # Fused QKV projection for the whole head group: one wide MXU contraction.
    qkv = jnp.dot(yb.reshape(Nb * L, E), wqkv_ref[...],
                  preferred_element_type=jnp.float32) + bqkv_ref[0]   # (Nb*L, 3*Gd)

    oh_parts = []
    for hh in range(heads_per_group):                    # static, small (1-4)
        lo = hh * head_dim
        hi = lo + head_dim
        qh = qkv[:, lo:hi].astype(jnp.bfloat16).reshape(Nb, L, head_dim)
        kh = qkv[:, Gd + lo:Gd + hi].astype(jnp.bfloat16).reshape(Nb, L, head_dim)
        vh = qkv[:, 2 * Gd + lo:2 * Gd + hi].astype(jnp.bfloat16).reshape(Nb, L, head_dim)

        s = jnp.einsum('bld,bmd->blm', qh, kh,
                       preferred_element_type=jnp.float32)            # (Nb, L, L)
        s = s - jnp.max(s, axis=-1, keepdims=True)
        p = jnp.exp(s)
        p = p * pl.reciprocal(jnp.sum(p, axis=-1, keepdims=True), approx=True)
        oh = jnp.einsum('blm,bmd->bld', p.astype(jnp.bfloat16), vh,
                        preferred_element_type=jnp.float32)           # (Nb, L, hd)
        oh_parts.append(oh.astype(jnp.bfloat16))

    oh_g = oh_parts[0] if len(oh_parts) == 1 else jnp.concatenate(oh_parts, axis=-1)
    # concat(group heads) @ Wo[group] -> Gd-wide contraction, accumulate (no concat
    # across groups needed).
    o_ref[...] += jnp.dot(oh_g.reshape(Nb * L, Gd), wo_ref[...],
                          preferred_element_type=jnp.float32).reshape(Nb, L, E)


# ------------------------------ MLP kernel ---------------------------------- #
# grid = (N//Nb, C); output block accumulates
#   out = x + bpj + sum_c QuickGELU(ln2(x) @ Wfc[:, c] + bfc[c]) @ Wpj[c, :]

def mlp_block_kernel(
    x_ref,                      # (Nb, L, E)   f32
    c_ref,                      # (3, E)       f32  [ln2_w, ln2_b, c_proj bias]
    wfc_ref,                    # (E, FFc)     bf16
    bfc_ref,                    # (1, FFc)     f32
    wpj_ref,                    # (FFc, E)     bf16
    o_ref,                      # (Nb, L, E)   f32
    y_scratch,                  # (Nb, L, E)   bf16 VMEM (LN2 output)
):
    c = pl.program_id(1)
    cst = c_ref[...]

    @pl.when(c == 0)
    def _init():
        xf = x_ref[...]
        y = _layer_norm_f32(xf, cst[0], cst[1])
        y_scratch[...] = y.astype(y_scratch.dtype)
        o_ref[...] = xf + cst[2]

    yb = y_scratch[...]
    Nb, L, E = yb.shape
    h1 = jnp.dot(yb.reshape(Nb * L, E), wfc_ref[...],
                 preferred_element_type=jnp.float32) + bfc_ref[0]     # (Nb*L, FFc)
    if QUICKGELU_IN_BF16:
        hb = h1.astype(jnp.bfloat16)
        hb = hb * jax.nn.sigmoid(1.702 * hb)             # QuickGELU in bf16 (v6e/v7x)
    else:
        h1 = h1 * jax.nn.sigmoid(1.702 * h1)             # f32 path (v5e)
        hb = h1.astype(jnp.bfloat16)
    o_ref[...] += jnp.dot(hb, wpj_ref[...],
                          preferred_element_type=jnp.float32).reshape(Nb, L, E)


# ------------------------------ call builders ------------------------------- #

def make_attn_call(N, L, E, H, head_group, batch_block):
    hd = E // H
    HG = H // head_group
    Gd = head_group * hd
    Nb = batch_block
    NB = N // Nb

    x_spec = pl.BlockSpec((Nb, L, E), lambda n, g: (n, 0, 0))
    in_specs = [
        x_spec,
        pl.BlockSpec((3, E), lambda n, g: (0, 0)),                 # packed consts
        pl.BlockSpec((None, E, 3 * Gd), lambda n, g: (g, 0, 0)),   # packed Wqkv[g]
        pl.BlockSpec((None, 1, 3 * Gd), lambda n, g: (g, 0, 0)),   # packed bqkv[g]
        pl.BlockSpec((None, Gd, E), lambda n, g: (g, 0, 0)),       # Wo[g]
    ]
    flops = int(N * (2 * L * E * 3 * E + 4 * H * L * L * hd + 2 * L * E * E))
    trans = int(N * H * L * (L + 1))
    bytes_acc = int(2 * N * L * E * 4                               # x in + out (f32)
                    + NB * (E * 3 * E * 2 + E * E * 2 + 3 * E * 4)  # weights per n-block
                    + 3 * E * 4)
    vmem_est = (2 * 2 * Nb * L * E * 4 + Nb * L * E * 2
                + 2 * (E * 3 * Gd * 2 + 3 * Gd * 4 + Gd * E * 2 + 3 * E * 4))

    kernel = functools.partial(attn_block_kernel,
                               heads_per_group=head_group, head_dim=hd)
    return pl.pallas_call(
        kernel,
        out_shape=jax.ShapeDtypeStruct((N, L, E), jnp.float32),
        grid=(NB, HG),
        in_specs=in_specs,
        out_specs=x_spec,
        scratch_shapes=[pltpu.VMEM((Nb, L, E), jnp.bfloat16)],
        input_output_aliases={0: 0},
        cost_estimate=pl.CostEstimate(flops=flops, transcendentals=trans,
                                      bytes_accessed=bytes_acc),
        compiler_params=pltpu.CompilerParams(
            dimension_semantics=("parallel", "arbitrary"),
            vmem_limit_bytes=_clamp_vmem(vmem_est)),
    )


def make_mlp_call(N, L, E, ff_chunk, batch_block):
    F = 4 * E
    assert F % ff_chunk == 0
    C = F // ff_chunk
    Nb = batch_block
    NB = N // Nb

    x_spec = pl.BlockSpec((Nb, L, E), lambda n, c: (n, 0, 0))
    in_specs = [
        x_spec,
        pl.BlockSpec((3, E), lambda n, c: (0, 0)),                 # packed consts
        pl.BlockSpec((E, ff_chunk), lambda n, c: (0, c)),          # Wfc column chunk
        pl.BlockSpec((1, ff_chunk), lambda n, c: (0, c)),          # bfc chunk
        pl.BlockSpec((ff_chunk, E), lambda n, c: (c, 0)),          # Wpj row chunk
    ]
    flops = int(N * 4 * L * E * F)
    trans = int(N * L * F)
    bytes_acc = int(2 * N * L * E * 4 + NB * (2 * E * F * 2 + F * 4 + 3 * E * 4))
    vmem_est = (2 * 2 * Nb * L * E * 4 + Nb * L * E * 2
                + 2 * (E * ff_chunk * 2 + ff_chunk * 4 + ff_chunk * E * 2 + 3 * E * 4))

    return pl.pallas_call(
        mlp_block_kernel,
        out_shape=jax.ShapeDtypeStruct((N, L, E), jnp.float32),
        grid=(NB, C),
        in_specs=in_specs,
        out_specs=x_spec,
        scratch_shapes=[pltpu.VMEM((Nb, L, E), jnp.bfloat16)],
        input_output_aliases={0: 0},
        cost_estimate=pl.CostEstimate(flops=flops, transcendentals=trans,
                                      bytes_accessed=bytes_acc),
        compiler_params=pltpu.CompilerParams(
            dimension_semantics=("parallel", "arbitrary"),
            vmem_limit_bytes=_clamp_vmem(vmem_est)),
    )


def build_transformer(N, L, E, H, *, head_group=None, batch_block=None, ff_chunk=None):
    assert E % H == 0
    hd = E // H
    if head_group is None:
        head_group = _pick_head_group(H, hd)
    if batch_block is None:
        batch_block = _pick_batch_block(N)
    if ff_chunk is None:
        ff_chunk = _pick_ff_chunk(4 * E)

    attn_call = make_attn_call(N, L, E, H, head_group, batch_block)
    mlp_call = make_mlp_call(N, L, E, ff_chunk, batch_block)

    def forward(x_lne, prepped_layers):
        xb = jnp.transpose(x_lne, (1, 0, 2))             # (N, L, E)
        for attn_p, mlp_p in prepped_layers:
            xb = attn_call(xb, *attn_p)
            xb = mlp_call(xb, *mlp_p)
        return jnp.transpose(xb, (1, 0, 2))              # back to (L, N, E)

    return forward


# --------------------------- parameter init / prep -------------------------- #

def init_layer_params(key, E):
    # f32 master weights stored (in, out): kernel/ref compute x @ W + b
    # (equivalent to PyTorch x @ W_pt.T + b).
    ks = jax.random.split(key, 12)
    s = 0.02
    ln1w = jnp.ones((1, E), jnp.float32)
    ln1b = jnp.zeros((1, E), jnp.float32)
    wq = jax.random.normal(ks[0], (E, E), jnp.float32) * s
    bq = jax.random.normal(ks[1], (1, E), jnp.float32) * 0.01
    wk = jax.random.normal(ks[2], (E, E), jnp.float32) * s
    bk = jax.random.normal(ks[3], (1, E), jnp.float32) * 0.01
    wv = jax.random.normal(ks[4], (E, E), jnp.float32) * s
    bv = jax.random.normal(ks[5], (1, E), jnp.float32) * 0.01
    wo = jax.random.normal(ks[6], (E, E), jnp.float32) * s
    bo = jax.random.normal(ks[7], (1, E), jnp.float32) * 0.01
    ln2w = jnp.ones((1, E), jnp.float32)
    ln2b = jnp.zeros((1, E), jnp.float32)
    wfc = jax.random.normal(ks[8], (E, 4 * E), jnp.float32) * s
    bfc = jax.random.normal(ks[9], (1, 4 * E), jnp.float32) * 0.01
    wpj = jax.random.normal(ks[10], (4 * E, E), jnp.float32) * s
    bpj = jax.random.normal(ks[11], (1, E), jnp.float32) * 0.01
    return (ln1w, ln1b, wq, bq, wk, bk, wv, bv, wo, bo,
            ln2w, ln2b, wfc, bfc, wpj, bpj)


def prep_layer_params(p, heads, head_group):
    """Host-side prep: head-group packing, QKV fusion, scale folding, bf16 cast."""
    (ln1w, ln1b, wq, bq, wk, bk, wv, bv, wo, bo,
     ln2w, ln2b, wfc, bfc, wpj, bpj) = p
    E = wq.shape[0]
    hd = E // heads
    HG = heads // head_group
    Gd = head_group * hd
    scale = 1.0 / math.sqrt(hd)

    def group_cols(w, s=1.0):   # (E, E) -> (HG, E, Gd): output columns per group
        return (w * s).reshape(E, HG, Gd).transpose(1, 0, 2)

    def group_bias(b, s=1.0):   # (1, E) -> (HG, 1, Gd)
        return (b * s).reshape(1, HG, Gd).transpose(1, 0, 2)

    # packed [q | k | v] per head group; 1/sqrt(hd) folded into the q slice.
    wqkv = jnp.concatenate([group_cols(wq, scale), group_cols(wk), group_cols(wv)],
                           axis=-1).astype(jnp.bfloat16)             # (HG, E, 3*Gd)
    bqkv = jnp.concatenate([group_bias(bq, scale), group_bias(bk), group_bias(bv)],
                           axis=-1)                                   # (HG, 1, 3*Gd) f32
    wo_g = wo.reshape(HG, Gd, E).astype(jnp.bfloat16)                 # per-group Wo rows

    attn_const = jnp.concatenate([ln1w, ln1b, bo], axis=0)            # (3, E) f32
    mlp_const = jnp.concatenate([ln2w, ln2b, bpj], axis=0)            # (3, E) f32

    attn_params = (attn_const, wqkv, bqkv, wo_g)
    mlp_params = (mlp_const, wfc.astype(jnp.bfloat16), bfc,
                  wpj.astype(jnp.bfloat16))
    return attn_params, mlp_params


# --------------------------- pure-JAX f32 reference -------------------------- #

def ref_block(xb, p, heads):
    (ln1w, ln1b, wq, bq, wk, bk, wv, bv, wo, bo,
     ln2w, ln2b, wfc, bfc, wpj, bpj) = p

    def ln(v, w, b):
        mu = v.mean(-1, keepdims=True)
        var = ((v - mu) ** 2).mean(-1, keepdims=True)
        return (v - mu) / jnp.sqrt(var + 1e-5) * w[0] + b[0]

    N, L, E = xb.shape
    HD = E // heads
    y = ln(xb, ln1w, ln1b)
    q = y @ wq + bq[0]
    k = y @ wk + bk[0]
    v = y @ wv + bv[0]
    qh = q.reshape(N, L, heads, HD).transpose(0, 2, 1, 3) * (HD ** -0.5)
    kh = k.reshape(N, L, heads, HD).transpose(0, 2, 1, 3)
    vh = v.reshape(N, L, heads, HD).transpose(0, 2, 1, 3)
    s = qh @ kh.transpose(0, 1, 3, 2)
    pw = jax.nn.softmax(s, axis=-1)
    o = (pw @ vh).transpose(0, 2, 1, 3).reshape(N, L, E)
    x = xb + (o @ wo + bo[0])
    y2 = ln(x, ln2w, ln2b)
    h1 = y2 @ wfc + bfc[0]
    h1 = h1 * jax.nn.sigmoid(1.702 * h1)
    return x + (h1 @ wpj + bpj[0])


def ref_transformer(x_lne, layer_params, heads):
    xb = jnp.transpose(x_lne, (1, 0, 2))
    for p in layer_params:
        xb = ref_block(xb, p, heads)
    return jnp.transpose(xb, (1, 0, 2))


# ------------------------------------ main ----------------------------------- #

if __name__ == "__main__":
    WIDTH = 32      # d_model
    HEADS = 4
    LAYERS = 2
    SEQ = 8
    BATCH = 2

    key = jax.random.PRNGKey(0)
    kx, kp = jax.random.split(key)
    x = jax.random.normal(kx, (SEQ, BATCH, WIDTH), jnp.float32)  # (L, N, E)

    head_dim = WIDTH // HEADS
    head_group = _pick_head_group(HEADS, head_dim)

    layer_keys = jax.random.split(kp, LAYERS)
    master_params = [init_layer_params(k, WIDTH) for k in layer_keys]
    prepped = [prep_layer_params(p, HEADS, head_group) for p in master_params]

    # f32 reference of the PyTorch module (kernel weights are bf16).
    ref = ref_transformer(x, master_params, HEADS)

    forward = jax.jit(
        build_transformer(BATCH, SEQ, WIDTH, HEADS, head_group=head_group))
    out = forward(x, prepped)
    out = jax.block_until_ready(out)

    assert out.shape == (SEQ, BATCH, WIDTH)
    # bf16 matmul inputs (f32 accumulate) + approx reciprocal -> loosened tolerance.
    assert jnp.allclose(out, ref, atol=2e-2, rtol=2e-2), "mismatch vs JAX reference"

    print("KERNEL_OK")
</pallas_src>

<mosaic_0001>
module attributes {stable_mosaic.version = 11 : i64} {
  func.func @mlp_block_kernel(%arg0: i32, %arg1: i32, %arg2: memref<1x8x32xf32, #tpu.memory_space<vmem>>, %arg3: memref<3x32xf32, #tpu.memory_space<vmem>>, %arg4: memref<32x128xbf16, #tpu.memory_space<vmem>>, %arg5: memref<1x128xf32, #tpu.memory_space<vmem>>, %arg6: memref<128x32xbf16, #tpu.memory_space<vmem>>, %arg7: memref<1x8x32xf32, #tpu.memory_space<vmem>>, %arg8: memref<1x8x32xbf16, #tpu.memory_space<vmem>>) attributes {dimension_semantics = [#tpu.dimension_semantics<parallel>, #tpu.dimension_semantics<arbitrary>], iteration_bounds = array<i64: 2, 1>, scalar_prefetch = 0 : i64, scratch_operands = 1 : i64, tpu.core_type = #tpu.core_type<tc>, window_params = [{transform_indices = @transform_0, window_bounds = array<i64: 1, 8, 32>}, {pipeline_mode = #tpu.pipeline_mode<synchronous>, transform_indices = @transform_1, window_bounds = array<i64: 3, 32>}, {transform_indices = @transform_2, window_bounds = array<i64: 32, 128>}, {transform_indices = @transform_3, window_bounds = array<i64: 1, 128>}, {transform_indices = @transform_4, window_bounds = array<i64: 128, 32>}, {transform_indices = @transform_5, window_bounds = array<i64: 1, 8, 32>}]} {
    %c0 = arith.constant 0 : index
    %c0_0 = arith.constant 0 : index
    %0 = vector.load %arg3[%c0, %c0_0] : memref<3x32xf32, #tpu.memory_space<vmem>>, vector<3x32xf32>
    %c0_i32 = arith.constant 0 : i32
    %1 = arith.cmpi eq, %arg1, %c0_i32 : i32
    %2 = arith.extui %1 : i1 to i32
    %c0_i32_1 = arith.constant 0 : i32
    %3 = arith.cmpi ne, %2, %c0_i32_1 : i32
    scf.if %3 {
      %c0_20 = arith.constant 0 : index
      %c0_21 = arith.constant 0 : index
      %c0_22 = arith.constant 0 : index
      %28 = vector.load %arg2[%c0_20, %c0_21, %c0_22] : memref<1x8x32xf32, #tpu.memory_space<vmem>>, vector<1x8x32xf32>
      %29 = vector.extract_strided_slice %0 {offsets = [0, 0], sizes = [1, 32], strides = [1, 1]} : vector<3x32xf32> to vector<1x32xf32>
      %30 = vector.shape_cast %29 : vector<1x32xf32> to vector<32xf32>
      %31 = vector.extract_strided_slice %0 {offsets = [1, 0], sizes = [1, 32], strides = [1, 1]} : vector<3x32xf32> to vector<1x32xf32>
      %32 = vector.shape_cast %31 : vector<1x32xf32> to vector<32xf32>
      %cst_23 = arith.constant dense<0.000000e+00> : vector<1x8xf32>
      %33 = vector.multi_reduction <add>, %28, %cst_23 [2] : vector<1x8x32xf32> to vector<1x8xf32>
      %34 = vector.shape_cast %33 : vector<1x8xf32> to vector<1x8x1xf32>
      %cst_24 = arith.constant 3.200000e+01 : f32
      %35 = vector.broadcast %cst_24 : f32 to vector<1x8x1xf32>
      %36 = arith.divf %34, %35 : vector<1x8x1xf32>
      %37 = vector.broadcast %36 : vector<1x8x1xf32> to vector<1x8x32xf32>
      %38 = arith.subf %28, %37 : vector<1x8x32xf32>
      %39 = arith.mulf %38, %38 : vector<1x8x32xf32>
      %cst_25 = arith.constant dense<0.000000e+00> : vector<1x8xf32>
      %40 = vector.multi_reduction <add>, %39, %cst_25 [2] : vector<1x8x32xf32> to vector<1x8xf32>
      %41 = vector.shape_cast %40 : vector<1x8xf32> to vector<1x8x1xf32>
      %cst_26 = arith.constant 3.200000e+01 : f32
      %42 = vector.broadcast %cst_26 : f32 to vector<1x8x1xf32>
      %43 = arith.divf %41, %42 : vector<1x8x1xf32>
      %44 = vector.broadcast %36 : vector<1x8x1xf32> to vector<1x8x32xf32>
      %45 = arith.subf %28, %44 : vector<1x8x32xf32>
      %cst_27 = arith.constant 9.99999974E-6 : f32
      %46 = vector.broadcast %cst_27 : f32 to vector<1x8x1xf32>
      %47 = arith.addf %43, %46 : vector<1x8x1xf32>
      %48 = math.rsqrt %47 : vector<1x8x1xf32>
      %49 = vector.broadcast %48 : vector<1x8x1xf32> to vector<1x8x32xf32>
      %50 = arith.mulf %45, %49 : vector<1x8x32xf32>
      %51 = vector.shape_cast %30 : vector<32xf32> to vector<1x1x32xf32>
      %52 = vector.broadcast %51 : vector<1x1x32xf32> to vector<1x8x32xf32>
      %53 = arith.mulf %50, %52 : vector<1x8x32xf32>
      %54 = vector.shape_cast %32 : vector<32xf32> to vector<1x1x32xf32>
      %55 = vector.broadcast %54 : vector<1x1x32xf32> to vector<1x8x32xf32>
      %56 = arith.addf %53, %55 : vector<1x8x32xf32>
      %57 = arith.truncf %56 : vector<1x8x32xf32> to vector<1x8x32xbf16>
      %c0_28 = arith.constant 0 : index
      %c0_29 = arith.constant 0 : index
      %c0_30 = arith.constant 0 : index
      %58 = vector.load %arg8[%c0_28, %c0_29, %c0_30] : memref<1x8x32xbf16, #tpu.memory_space<vmem>>, vector<1x8x32xbf16>
      tpu.vector_store %arg8[%c0_28, %c0_29, %c0_30], %57 {strides = array<i32>} : memref<1x8x32xbf16, #tpu.memory_space<vmem>>, vector<1x8x32xbf16>,
      %59 = vector.extract_strided_slice %0 {offsets = [2, 0], sizes = [1, 32], strides = [1, 1]} : vector<3x32xf32> to vector<1x32xf32>
      %60 = vector.shape_cast %59 : vector<1x32xf32> to vector<32xf32>
      %61 = vector.shape_cast %60 : vector<32xf32> to vector<1x1x32xf32>
      %62 = vector.broadcast %61 : vector<1x1x32xf32> to vector<1x8x32xf32>
      %63 = arith.addf %28, %62 : vector<1x8x32xf32>
      %c0_31 = arith.constant 0 : index
      %c0_32 = arith.constant 0 : index
      %c0_33 = arith.constant 0 : index
      %64 = vector.load %arg7[%c0_31, %c0_32, %c0_33] : memref<1x8x32xf32, #tpu.memory_space<vmem>>, vector<1x8x32xf32>
      tpu.vector_store %arg7[%c0_31, %c0_32, %c0_33], %63 {strides = array<i32>} : memref<1x8x32xf32, #tpu.memory_space<vmem>>, vector<1x8x32xf32>,
    } else {
    }
    %c0_2 = arith.constant 0 : index
    %c0_3 = arith.constant 0 : index
    %c0_4 = arith.constant 0 : index
    %4 = vector.load %arg8[%c0_2, %c0_3, %c0_4] : memref<1x8x32xbf16, #tpu.memory_space<vmem>>, vector<1x8x32xbf16>
    %5 = vector.shape_cast %4 : vector<1x8x32xbf16> to vector<8x32xbf16>
    %c0_5 = arith.constant 0 : index
    %c0_6 = arith.constant 0 : index
    %6 = vector.load %arg4[%c0_5, %c0_6] : memref<32x128xbf16, #tpu.memory_space<vmem>>, vector<32x128xbf16>
    %cst = arith.constant dense<0.000000e+00> : vector<8x128xf32>
    %7 = tpu.matmul %5, %6, %cst {dimension_numbers = #tpu.dot_dimension_numbers<[1], [0], [0], [1], [0, 0, 1, 1], [], []>} : vector<8x32xbf16>, vector<32x128xbf16>, vector<8x128xf32> -> vector<8x128xf32>
    %c0_7 = arith.constant 0 : index
    %c0_8 = arith.constant 0 : index
    %8 = vector.load %arg5[%c0_7, %c0_8] : memref<1x128xf32, #tpu.memory_space<vmem>>, vector<1x128xf32>
    %9 = vector.shape_cast %8 : vector<1x128xf32> to vector<128xf32>
    %10 = vector.shape_cast %9 : vector<128xf32> to vector<1x128xf32>
    %11 = vector.broadcast %10 : vector<1x128xf32> to vector<8x128xf32>
    %12 = arith.addf %7, %11 : vector<8x128xf32>
    %13 = arith.truncf %12 : vector<8x128xf32> to vector<8x128xbf16>
    %cst_9 = arith.constant 1.703130e+00 : bf16
    %14 = vector.broadcast %cst_9 : bf16 to vector<8x128xbf16>
    %15 = arith.mulf %14, %13 : vector<8x128xbf16>
    %16 = arith.negf %15 : vector<8x128xbf16>
    %17 = math.exp %16 : vector<8x128xbf16>
    %cst_10 = arith.constant 1.000000e+00 : bf16
    %18 = vector.broadcast %cst_10 : bf16 to vector<8x128xbf16>
    %19 = arith.addf %18, %17 : vector<8x128xbf16>
    %20 = arith.divf %18, %19 : vector<8x128xbf16>
    %21 = arith.mulf %13, %20 : vector<8x128xbf16>
    %c0_11 = arith.constant 0 : index
    %c0_12 = arith.constant 0 : index
    %c0_13 = arith.constant 0 : index
    %22 = vector.load %arg7[%c0_11, %c0_12, %c0_13] : memref<1x8x32xf32, #tpu.memory_space<vmem>>, vector<1x8x32xf32>
    %c0_14 = arith.constant 0 : index
    %c0_15 = arith.constant 0 : index
    %23 = vector.load %arg6[%c0_14, %c0_15] : memref<128x32xbf16, #tpu.memory_space<vmem>>, vector<128x32xbf16>
    %cst_16 = arith.constant dense<0.000000e+00> : vector<8x32xf32>
    %24 = tpu.matmul %21, %23, %cst_16 {dimension_numbers = #tpu.dot_dimension_numbers<[1], [0], [0], [1], [0, 0, 1, 1], [], []>} : vector<8x128xbf16>, vector<128x32xbf16>, vector<8x32xf32> -> vector<8x32xf32>
    %25 = vector.shape_cast %24 : vector<8x32xf32> to vector<1x8x32xf32>
    %26 = arith.addf %22, %25 : vector<1x8x32xf32>
    %c0_17 = arith.constant 0 : index
    %c0_18 = arith.constant 0 : index
    %c0_19 = arith.constant 0 : index
    %27 = vector.load %arg7[%c0_17, %c0_18, %c0_19] : memref<1x8x32xf32, #tpu.memory_space<vmem>>, vector<1x8x32xf32>
    tpu.vector_store %arg7[%c0_17, %c0_18, %c0_19], %26 {strides = array<i32>} : memref<1x8x32xf32, #tpu.memory_space<vmem>>, vector<1x8x32xf32>,
    return
  }
  func.func @transform_0(%arg0: i32, %arg1: i32) -> (i32, i32, i32) {
    %c0_i32 = arith.constant 0 : i32
    %c0_i32_0 = arith.constant 0 : i32
    %c0_i32_1 = arith.constant 0 : i32
    return %arg0, %c0_i32, %c0_i32_0 : i32, i32, i32
  }
  func.func @transform_1(%arg0: i32, %arg1: i32) -> (i32, i32) {
    %c0_i32 = arith.constant 0 : i32
    %c0_i32_0 = arith.constant 0 : i32
    %c0_i32_1 = arith.constant 0 : i32
    return %c0_i32, %c0_i32_0 : i32, i32
  }
  func.func @transform_2(%arg0: i32, %arg1: i32) -> (i32, i32) {
    %c0_i32 = arith.constant 0 : i32
    %c0_i32_0 = arith.constant 0 : i32
    return %c0_i32, %arg1 : i32, i32
  }
  func.func @transform_3(%arg0: i32, %arg1: i32) -> (i32, i32) {
    %c0_i32 = arith.constant 0 : i32
    %c0_i32_0 = arith.constant 0 : i32
    return %c0_i32, %arg1 : i32, i32
  }
  func.func @transform_4(%arg0: i32, %arg1: i32) -> (i32, i32) {
    %c0_i32 = arith.constant 0 : i32
    %c0_i32_0 = arith.constant 0 : i32
    return %arg1, %c0_i32 : i32, i32
  }
  func.func @transform_5(%arg0: i32, %arg1: i32) -> (i32, i32, i32) {
    %c0_i32 = arith.constant 0 : i32
    %c0_i32_0 = arith.constant 0 : i32
    %c0_i32_1 = arith.constant 0 : i32
    return %arg0, %c0_i32, %c0_i32_0 : i32, i32, i32
  }
}

module attributes {stable_mosaic.version = 11 : i64} {
  func.func @attn_block_kernel(%arg0: i32, %arg1: i32, %arg2: memref<1x8x32xf32, #tpu.memory_space<vmem>>, %arg3: memref<3x32xf32, #tpu.memory_space<vmem>>, %arg4: memref<1x32x96xbf16, #tpu.memory_space<vmem>>, %arg5: memref<1x1x96xf32, #tpu.memory_space<vmem>>, %arg6: memref<1x32x32xbf16, #tpu.memory_space<vmem>>, %arg7: memref<1x8x32xf32, #tpu.memory_space<vmem>>, %arg8: memref<1x8x32xbf16, #tpu.memory_space<vmem>>) attributes {dimension_semantics = [#tpu.dimension_semantics<parallel>, #tpu.dimension_semantics<arbitrary>], iteration_bounds = array<i64: 2, 1>, scalar_prefetch = 0 : i64, scratch_operands = 1 : i64, tpu.core_type = #tpu.core_type<tc>, window_params = [{transform_indices = @transform_0, window_bounds = array<i64: 1, 8, 32>}, {pipeline_mode = #tpu.pipeline_mode<synchronous>, transform_indices = @transform_1, window_bounds = array<i64: 3, 32>}, {transform_indices = @transform_2, window_bounds = array<i64: 1, 32, 96>}, {transform_indices = @transform_3, window_bounds = array<i64: 1, 1, 96>}, {transform_indices = @transform_4, window_bounds = array<i64: 1, 32, 32>}, {transform_indices = @transform_5, window_bounds = array<i64: 1, 8, 32>}]} {
    %c0 = arith.constant 0 : index
    %c0_0 = arith.constant 0 : index
    %0 = vector.load %arg3[%c0, %c0_0] : memref<3x32xf32, #tpu.memory_space<vmem>>, vector<3x32xf32>
    %c0_i32 = arith.constant 0 : i32
    %1 = arith.cmpi eq, %arg1, %c0_i32 : i32
    %2 = arith.extui %1 : i1 to i32
    %c0_i32_1 = arith.constant 0 : i32
    %3 = arith.cmpi ne, %2, %c0_i32_1 : i32
    scf.if %3 {
      %c0_37 = arith.constant 0 : index
      %c0_38 = arith.constant 0 : index
      %c0_39 = arith.constant 0 : index
      %115 = vector.load %arg2[%c0_37, %c0_38, %c0_39] : memref<1x8x32xf32, #tpu.memory_space<vmem>>, vector<1x8x32xf32>
      %116 = vector.extract_strided_slice %0 {offsets = [0, 0], sizes = [1, 32], strides = [1, 1]} : vector<3x32xf32> to vector<1x32xf32>
      %117 = vector.shape_cast %116 : vector<1x32xf32> to vector<32xf32>
      %118 = vector.extract_strided_slice %0 {offsets = [1, 0], sizes = [1, 32], strides = [1, 1]} : vector<3x32xf32> to vector<1x32xf32>
      %119 = vector.shape_cast %118 : vector<1x32xf32> to vector<32xf32>
      %cst_40 = arith.constant dense<0.000000e+00> : vector<1x8xf32>
      %120 = vector.multi_reduction <add>, %115, %cst_40 [2] : vector<1x8x32xf32> to vector<1x8xf32>
      %121 = vector.shape_cast %120 : vector<1x8xf32> to vector<1x8x1xf32>
      %cst_41 = arith.constant 3.200000e+01 : f32
      %122 = vector.broadcast %cst_41 : f32 to vector<1x8x1xf32>
      %123 = arith.divf %121, %122 : vector<1x8x1xf32>
      %124 = vector.broadcast %123 : vector<1x8x1xf32> to vector<1x8x32xf32>
      %125 = arith.subf %115, %124 : vector<1x8x32xf32>
      %126 = arith.mulf %125, %125 : vector<1x8x32xf32>
      %cst_42 = arith.constant dense<0.000000e+00> : vector<1x8xf32>
      %127 = vector.multi_reduction <add>, %126, %cst_42 [2] : vector<1x8x32xf32> to vector<1x8xf32>
      %128 = vector.shape_cast %127 : vector<1x8xf32> to vector<1x8x1xf32>
      %cst_43 = arith.constant 3.200000e+01 : f32
      %129 = vector.broadcast %cst_43 : f32 to vector<1x8x1xf32>
      %130 = arith.divf %128, %129 : vector<1x8x1xf32>
      %131 = vector.broadcast %123 : vector<1x8x1xf32> to vector<1x8x32xf32>
      %132 = arith.subf %115, %131 : vector<1x8x32xf32>
      %cst_44 = arith.constant 9.99999974E-6 : f32
      %133 = vector.broadcast %cst_44 : f32 to vector<1x8x1xf32>
      %134 = arith.addf %130, %133 : vector<1x8x1xf32>
      %135 = math.rsqrt %134 : vector<1x8x1xf32>
      %136 = vector.broadcast %135 : vector<1x8x1xf32> to vector<1x8x32xf32>
      %137 = arith.mulf %132, %136 : vector<1x8x32xf32>
      %138 = vector.shape_cast %117 : vector<32xf32> to vector<1x1x32xf32>
      %139 = vector.broadcast %138 : vector<1x1x32xf32> to vector<1x8x32xf32>
      %140 = arith.mulf %137, %139 : vector<1x8x32xf32>
      %141 = vector.shape_cast %119 : vector<32xf32> to vector<1x1x32xf32>
      %142 = vector.broadcast %141 : vector<1x1x32xf32> to vector<1x8x32xf32>
      %143 = arith.addf %140, %142 : vector<1x8x32xf32>
      %144 = arith.truncf %143 : vector<1x8x32xf32> to vector<1x8x32xbf16>
      %c0_45 = arith.constant 0 : index
      %c0_46 = arith.constant 0 : index
      %c0_47 = arith.constant 0 : index
      %145 = vector.load %arg8[%c0_45, %c0_46, %c0_47] : memref<1x8x32xbf16, #tpu.memory_space<vmem>>, vector<1x8x32xbf16>
      tpu.vector_store %arg8[%c0_45, %c0_46, %c0_47], %144 {strides = array<i32>} : memref<1x8x32xbf16, #tpu.memory_space<vmem>>, vector<1x8x32xbf16>,
      %146 = vector.extract_strided_slice %0 {offsets = [2, 0], sizes = [1, 32], strides = [1, 1]} : vector<3x32xf32> to vector<1x32xf32>
      %147 = vector.shape_cast %146 : vector<1x32xf32> to vector<32xf32>
      %148 = vector.shape_cast %147 : vector<32xf32> to vector<1x1x32xf32>
      %149 = vector.broadcast %148 : vector<1x1x32xf32> to vector<1x8x32xf32>
      %150 = arith.addf %115, %149 : vector<1x8x32xf32>
      %c0_48 = arith.constant 0 : index
      %c0_49 = arith.constant 0 : index
      %c0_50 = arith.constant 0 : index
      %151 = vector.load %arg7[%c0_48, %c0_49, %c0_50] : memref<1x8x32xf32, #tpu.memory_space<vmem>>, vector<1x8x32xf32>
      tpu.vector_store %arg7[%c0_48, %c0_49, %c0_50], %150 {strides = array<i32>} : memref<1x8x32xf32, #tpu.memory_space<vmem>>, vector<1x8x32xf32>,
    } else {
    }
    %c0_2 = arith.constant 0 : index
    %c0_3 = arith.constant 0 : index
    %c0_4 = arith.constant 0 : index
    %4 = vector.load %arg8[%c0_2, %c0_3, %c0_4] : memref<1x8x32xbf16, #tpu.memory_space<vmem>>, vector<1x8x32xbf16>
    %5 = vector.shape_cast %4 : vector<1x8x32xbf16> to vector<8x32xbf16>
    %c0_5 = arith.constant 0 : index
    %c0_6 = arith.constant 0 : index
    %c0_7 = arith.constant 0 : index
    %6 = vector.load %arg4[%c0_5, %c0_6, %c0_7] : memref<1x32x96xbf16, #tpu.memory_space<vmem>>, vector<1x32x96xbf16>
    %7 = vector.shape_cast %6 : vector<1x32x96xbf16> to vector<32x96xbf16>
    %cst = arith.constant dense<0.000000e+00> : vector<8x96xf32>
    %8 = tpu.matmul %5, %7, %cst {dimension_numbers = #tpu.dot_dimension_numbers<[1], [0], [0], [1], [0, 0, 1, 1], [], []>} : vector<8x32xbf16>, vector<32x96xbf16>, vector<8x96xf32> -> vector<8x96xf32>
    %c0_8 = arith.constant 0 : index
    %c0_9 = arith.constant 0 : index
    %c0_10 = arith.constant 0 : index
    %9 = vector.load %arg5[%c0_8, %c0_9, %c0_10] : memref<1x1x96xf32, #tpu.memory_space<vmem>>, vector<1x1x96xf32>
    %10 = vector.shape_cast %9 : vector<1x1x96xf32> to vector<96xf32>
    %11 = vector.shape_cast %10 : vector<96xf32> to vector<1x96xf32>
    %12 = vector.broadcast %11 : vector<1x96xf32> to vector<8x96xf32>
    %13 = arith.addf %8, %12 : vector<8x96xf32>
    %14 = vector.extract_strided_slice %13 {offsets = [0, 0], sizes = [8, 8], strides = [1, 1]} : vector<8x96xf32> to vector<8x8xf32>
    %15 = arith.truncf %14 : vector<8x8xf32> to vector<8x8xbf16>
    %16 = vector.shape_cast %15 : vector<8x8xbf16> to vector<1x8x8xbf16>
    %17 = vector.extract_strided_slice %13 {offsets = [0, 32], sizes = [8, 8], strides = [1, 1]} : vector<8x96xf32> to vector<8x8xf32>
    %18 = arith.truncf %17 : vector<8x8xf32> to vector<8x8xbf16>
    %19 = vector.shape_cast %18 : vector<8x8xbf16> to vector<1x8x8xbf16>
    %20 = vector.extract_strided_slice %13 {offsets = [0, 64], sizes = [8, 8], strides = [1, 1]} : vector<8x96xf32> to vector<8x8xf32>
    %21 = arith.truncf %20 : vector<8x8xf32> to vector<8x8xbf16>
    %22 = vector.shape_cast %21 : vector<8x8xbf16> to vector<1x8x8xbf16>
    "tpu.trace_start"() <{level = 10 : i32, message = "bld,bmd->blm"}> : () -> ()
    %cst_11 = arith.constant dense<0.000000e+00> : vector<1x8x8xf32>
    %23 = tpu.matmul %16, %19, %cst_11 {dimension_numbers = #tpu.dot_dimension_numbers<[2], [2], [1], [1], [0, 0, 0, 1, 1, 1], [0], [0]>} : vector<1x8x8xbf16>, vector<1x8x8xbf16>, vector<1x8x8xf32> -> vector<1x8x8xf32>
    "tpu.trace_stop"() : () -> ()
    %cst_12 = arith.constant dense<0xFF800000> : vector<1x8xf32>
    %24 = vector.multi_reduction <maximumf>, %23, %cst_12 [2] : vector<1x8x8xf32> to vector<1x8xf32>
    %25 = vector.shape_cast %24 : vector<1x8xf32> to vector<1x8x1xf32>
    %26 = vector.broadcast %25 : vector<1x8x1xf32> to vector<1x8x8xf32>
    %27 = arith.subf %23, %26 : vector<1x8x8xf32>
    %28 = math.exp %27 : vector<1x8x8xf32>
    %cst_13 = arith.constant dense<0.000000e+00> : vector<1x8xf32>
    %29 = vector.multi_reduction <add>, %28, %cst_13 [2] : vector<1x8x8xf32> to vector<1x8xf32>
    %30 = vector.shape_cast %29 : vector<1x8xf32> to vector<1x8x1xf32>
    %31 = tpu.reciprocal %30 {approx = true} : vector<1x8x1xf32> -> vector<1x8x1xf32>
    %32 = vector.broadcast %31 : vector<1x8x1xf32> to vector<1x8x8xf32>
    %33 = arith.mulf %28, %32 : vector<1x8x8xf32>
    %34 = arith.truncf %33 : vector<1x8x8xf32> to vector<1x8x8xbf16>
    "tpu.trace_start"() <{level = 10 : i32, message = "blm,bmd->bld"}> : () -> ()
    %cst_14 = arith.constant dense<0.000000e+00> : vector<1x8x8xf32>
    %35 = tpu.matmul %34, %22, %cst_14 {dimension_numbers = #tpu.dot_dimension_numbers<[2], [1], [1], [2], [0, 0, 0, 1, 1, 2], [0], [0]>} : vector<1x8x8xbf16>, vector<1x8x8xbf16>, vector<1x8x8xf32> -> vector<1x8x8xf32>
    "tpu.trace_stop"() : () -> ()
    %36 = arith.truncf %35 : vector<1x8x8xf32> to vector<1x8x8xbf16>
    %37 = vector.extract_strided_slice %13 {offsets = [0, 8], sizes = [8, 8], strides = [1, 1]} : vector<8x96xf32> to vector<8x8xf32>
    %38 = arith.truncf %37 : vector<8x8xf32> to vector<8x8xbf16>
    %39 = vector.shape_cast %38 : vector<8x8xbf16> to vector<1x8x8xbf16>
    %40 = vector.extract_strided_slice %13 {offsets = [0, 40], sizes = [8, 8], strides = [1, 1]} : vector<8x96xf32> to vector<8x8xf32>
    %41 = arith.truncf %40 : vector<8x8xf32> to vector<8x8xbf16>
    %42 = vector.shape_cast %41 : vector<8x8xbf16> to vector<1x8x8xbf16>
    %43 = vector.extract_strided_slice %13 {offsets = [0, 72], sizes = [8, 8], strides = [1, 1]} : vector<8x96xf32> to vector<8x8xf32>
    %44 = arith.truncf %43 : vector<8x8xf32> to vector<8x8xbf16>
    %45 = vector.shape_cast %44 : vector<8x8xbf16> to vector<1x8x8xbf16>
    "tpu.trace_start"() <{level = 10 : i32, message = "bld,bmd->blm"}> : () -> ()
    %cst_15 = arith.constant dense<0.000000e+00> : vector<1x8x8xf32>
    %46 = tpu.matmul %39, %42, %cst_15 {dimension_numbers = #tpu.dot_dimension_numbers<[2], [2], [1], [1], [0, 0, 0, 1, 1, 1], [0], [0]>} : vector<1x8x8xbf16>, vector<1x8x8xbf16>, vector<1x8x8xf32> -> vector<1x8x8xf32>
    "tpu.trace_stop"() : () -> ()
    %cst_16 = arith.constant dense<0xFF800000> : vector<1x8xf32>
    %47 = vector.multi_reduction <maximumf>, %46, %cst_16 [2] : vector<1x8x8xf32> to vector<1x8xf32>
    %48 = vector.shape_cast %47 : vector<1x8xf32> to vector<1x8x1xf32>
    %49 = vector.broadcast %48 : vector<1x8x1xf32> to vector<1x8x8xf32>
    %50 = arith.subf %46, %49 : vector<1x8x8xf32>
    %51 = math.exp %50 : vector<1x8x8xf32>
    %cst_17 = arith.constant dense<0.000000e+00> : vector<1x8xf32>
    %52 = vector.multi_reduction <add>, %51, %cst_17 [2] : vector<1x8x8xf32> to vector<1x8xf32>
    %53 = vector.shape_cast %52 : vector<1x8xf32> to vector<1x8x1xf32>
    %54 = tpu.reciprocal %53 {approx = true} : vector<1x8x1xf32> -> vector<1x8x1xf32>
    %55 = vector.broadcast %54 : vector<1x8x1xf32> to vector<1x8x8xf32>
    %56 = arith.mulf %51, %55 : vector<1x8x8xf32>
    %57 = arith.truncf %56 : vector<1x8x8xf32> to vector<1x8x8xbf16>
    "tpu.trace_start"() <{level = 10 : i32, message = "blm,bmd->bld"}> : () -> ()
    %cst_18 = arith.constant dense<0.000000e+00> : vector<1x8x8xf32>
    %58 = tpu.matmul %57, %45, %cst_18 {dimension_numbers = #tpu.dot_dimension_numbers<[2], [1], [1], [2], [0, 0, 0, 1, 1, 2], [0], [0]>} : vector<1x8x8xbf16>, vector<1x8x8xbf16>, vector<1x8x8xf32> -> vector<1x8x8xf32>
    "tpu.trace_stop"() : () -> ()
    %59 = arith.truncf %58 : vector<1x8x8xf32> to vector<1x8x8xbf16>
    %60 = vector.extract_strided_slice %13 {offsets = [0, 16], sizes = [8, 8], strides = [1, 1]} : vector<8x96xf32> to vector<8x8xf32>
    %61 = arith.truncf %60 : vector<8x8xf32> to vector<8x8xbf16>
    %62 = vector.shape_cast %61 : vector<8x8xbf16> to vector<1x8x8xbf16>
    %63 = vector.extract_strided_slice %13 {offsets = [0, 48], sizes = [8, 8], strides = [1, 1]} : vector<8x96xf32> to vector<8x8xf32>
    %64 = arith.truncf %63 : vector<8x8xf32> to vector<8x8xbf16>
    %65 = vector.shape_cast %64 : vector<8x8xbf16> to vector<1x8x8xbf16>
    %66 = vector.extract_strided_slice %13 {offsets = [0, 80], sizes = [8, 8], strides = [1, 1]} : vector<8x96xf32> to vector<8x8xf32>
    %67 = arith.truncf %66 : vector<8x8xf32> to vector<8x8xbf16>
    %68 = vector.shape_cast %67 : vector<8x8xbf16> to vector<1x8x8xbf16>
    "tpu.trace_start"() <{level = 10 : i32, message = "bld,bmd->blm"}> : () -> ()
    %cst_19 = arith.constant dense<0.000000e+00> : vector<1x8x8xf32>
    %69 = tpu.matmul %62, %65, %cst_19 {dimension_numbers = #tpu.dot_dimension_numbers<[2], [2], [1], [1], [0, 0, 0, 1, 1, 1], [0], [0]>} : vector<1x8x8xbf16>, vector<1x8x8xbf16>, vector<1x8x8xf32> -> vector<1x8x8xf32>
    "tpu.trace_stop"() : () -> ()
    %cst_20 = arith.constant dense<0xFF800000> : vector<1x8xf32>
    %70 = vector.multi_reduction <maximumf>, %69, %cst_20 [2] : vector<1x8x8xf32> to vector<1x8xf32>
    %71 = vector.shape_cast %70 : vector<1x8xf32> to vector<1x8x1xf32>
    %72 = vector.broadcast %71 : vector<1x8x1xf32> to vector<1x8x8xf32>
    %73 = arith.subf %69, %72 : vector<1x8x8xf32>
    %74 = math.exp %73 : vector<1x8x8xf32>
    %cst_21 = arith.constant dense<0.000000e+00> : vector<1x8xf32>
    %75 = vector.multi_reduction <add>, %74, %cst_21 [2] : vector<1x8x8xf32> to vector<1x8xf32>
    %76 = vector.shape_cast %75 : vector<1x8xf32> to vector<1x8x1xf32>
    %77 = tpu.reciprocal %76 {approx = true} : vector<1x8x1xf32> -> vector<1x8x1xf32>
    %78 = vector.broadcast %77 : vector<1x8x1xf32> to vector<1x8x8xf32>
    %79 = arith.mulf %74, %78 : vector<1x8x8xf32>
    %80 = arith.truncf %79 : vector<1x8x8xf32> to vector<1x8x8xbf16>
    "tpu.trace_start"() <{level = 10 : i32, message = "blm,bmd->bld"}> : () -> ()
    %cst_22 = arith.constant dense<0.000000e+00> : vector<1x8x8xf32>
    %81 = tpu.matmul %80, %68, %cst_22 {dimension_numbers = #tpu.dot_dimension_numbers<[2], [1], [1], [2], [0, 0, 0, 1, 1, 2], [0], [0]>} : vector<1x8x8xbf16>, vector<1x8x8xbf16>, vector<1x8x8xf32> -> vector<1x8x8xf32>
    "tpu.trace_stop"() : () -> ()
    %82 = arith.truncf %81 : vector<1x8x8xf32> to vector<1x8x8xbf16>
    %83 = vector.extract_strided_slice %13 {offsets = [0, 24], sizes = [8, 8], strides = [1, 1]} : vector<8x96xf32> to vector<8x8xf32>
    %84 = arith.truncf %83 : vector<8x8xf32> to vector<8x8xbf16>
    %85 = vector.shape_cast %84 : vector<8x8xbf16> to vector<1x8x8xbf16>
    %86 = vector.extract_strided_slice %13 {offsets = [0, 56], sizes = [8, 8], strides = [1, 1]} : vector<8x96xf32> to vector<8x8xf32>
    %87 = arith.truncf %86 : vector<8x8xf32> to vector<8x8xbf16>
    %88 = vector.shape_cast %87 : vector<8x8xbf16> to vector<1x8x8xbf16>
    %89 = vector.extract_strided_slice %13 {offsets = [0, 88], sizes = [8, 8], strides = [1, 1]} : vector<8x96xf32> to vector<8x8xf32>
    %90 = arith.truncf %89 : vector<8x8xf32> to vector<8x8xbf16>
    %91 = vector.shape_cast %90 : vector<8x8xbf16> to vector<1x8x8xbf16>
    "tpu.trace_start"() <{level = 10 : i32, message = "bld,bmd->blm"}> : () -> ()
    %cst_23 = arith.constant dense<0.000000e+00> : vector<1x8x8xf32>
    %92 = tpu.matmul %85, %88, %cst_23 {dimension_numbers = #tpu.dot_dimension_numbers<[2], [2], [1], [1], [0, 0, 0, 1, 1, 1], [0], [0]>} : vector<1x8x8xbf16>, vector<1x8x8xbf16>, vector<1x8x8xf32> -> vector<1x8x8xf32>
    "tpu.trace_stop"() : () -> ()
    %cst_24 = arith.constant dense<0xFF800000> : vector<1x8xf32>
    %93 = vector.multi_reduction <maximumf>, %92, %cst_24 [2] : vector<1x8x8xf32> to vector<1x8xf32>
    %94 = vector.shape_cast %93 : vector<1x8xf32> to vector<1x8x1xf32>
    %95 = vector.broadcast %94 : vector<1x8x1xf32> to vector<1x8x8xf32>
    %96 = arith.subf %92, %95 : vector<1x8x8xf32>
    %97 = math.exp %96 : vector<1x8x8xf32>
    %cst_25 = arith.constant dense<0.000000e+00> : vector<1x8xf32>
    %98 = vector.multi_reduction <add>, %97, %cst_25 [2] : vector<1x8x8xf32> to vector<1x8xf32>
    %99 = vector.shape_cast %98 : vector<1x8xf32> to vector<1x8x1xf32>
    %100 = tpu.reciprocal %99 {approx = true} : vector<1x8x1xf32> -> vector<1x8x1xf32>
    %101 = vector.broadcast %100 : vector<1x8x1xf32> to vector<1x8x8xf32>
    %102 = arith.mulf %97, %101 : vector<1x8x8xf32>
    %103 = arith.truncf %102 : vector<1x8x8xf32> to vector<1x8x8xbf16>
    "tpu.trace_start"() <{level = 10 : i32, message = "blm,bmd->bld"}> : () -> ()
    %cst_26 = arith.constant dense<0.000000e+00> : vector<1x8x8xf32>
    %104 = tpu.matmul %103, %91, %cst_26 {dimension_numbers = #tpu.dot_dimension_numbers<[2], [1], [1], [2], [0, 0, 0, 1, 1, 2], [0], [0]>} : vector<1x8x8xbf16>, vector<1x8x8xbf16>, vector<1x8x8xf32> -> vector<1x8x8xf32>
    "tpu.trace_stop"() : () -> ()
    %105 = arith.truncf %104 : vector<1x8x8xf32> to vector<1x8x8xbf16>
    %106 = tpu.concatenate %36, %59, %82, %105 in 2 : vector<1x8x8xbf16>, vector<1x8x8xbf16>, vector<1x8x8xbf16>, vector<1x8x8xbf16> -> vector<1x8x32xbf16>
    %c0_27 = arith.constant 0 : index
    %c0_28 = arith.constant 0 : index
    %c0_29 = arith.constant 0 : index
    %107 = vector.load %arg7[%c0_27, %c0_28, %c0_29] : memref<1x8x32xf32, #tpu.memory_space<vmem>>, vector<1x8x32xf32>
    %108 = vector.shape_cast %106 : vector<1x8x32xbf16> to vector<8x32xbf16>
    %c0_30 = arith.constant 0 : index
    %c0_31 = arith.constant 0 : index
    %c0_32 = arith.constant 0 : index
    %109 = vector.load %arg6[%c0_30, %c0_31, %c0_32] : memref<1x32x32xbf16, #tpu.memory_space<vmem>>, vector<1x32x32xbf16>
    %110 = vector.shape_cast %109 : vector<1x32x32xbf16> to vector<32x32xbf16>
    %cst_33 = arith.constant dense<0.000000e+00> : vector<8x32xf32>
    %111 = tpu.matmul %108, %110, %cst_33 {dimension_numbers = #tpu.dot_dimension_numbers<[1], [0], [0], [1], [0, 0, 1, 1], [], []>} : vector<8x32xbf16>, vector<32x32xbf16>, vector<8x32xf32> -> vector<8x32xf32>
    %112 = vector.shape_cast %111 : vector<8x32xf32> to vector<1x8x32xf32>
    %113 = arith.addf %107, %112 : vector<1x8x32xf32>
    %c0_34 = arith.constant 0 : index
    %c0_35 = arith.constant 0 : index
    %c0_36 = arith.constant 0 : index
    %114 = vector.load %arg7[%c0_34, %c0_35, %c0_36] : memref<1x8x32xf32, #tpu.memory_space<vmem>>, vector<1x8x32xf32>
    tpu.vector_store %arg7[%c0_34, %c0_35, %c0_36], %113 {strides = array<i32>} : memref<1x8x32xf32, #tpu.memory_space<vmem>>, vector<1x8x32xf32>,
    return
  }
  func.func @transform_0(%arg0: i32, %arg1: i32) -> (i32, i32, i32) {
    %c0_i32 = arith.constant 0 : i32
    %c0_i32_0 = arith.constant 0 : i32
    %c0_i32_1 = arith.constant 0 : i32
    return %arg0, %c0_i32, %c0_i32_0 : i32, i32, i32
  }
  func.func @transform_1(%arg0: i32, %arg1: i32) -> (i32, i32) {
    %c0_i32 = arith.constant 0 : i32
    %c0_i32_0 = arith.constant 0 : i32
    %c0_i32_1 = arith.constant 0 : i32
    return %c0_i32, %c0_i32_0 : i32, i32
  }
  func.func @transform_2(%arg0: i32, %arg1: i32) -> (i32, i32, i32) {
    %c0_i32 = arith.constant 0 : i32
    %c0_i32_0 = arith.constant 0 : i32
    %c0_i32_1 = arith.constant 0 : i32
    return %arg1, %c0_i32, %c0_i32_0 : i32, i32, i32
  }
  func.func @transform_3(%arg0: i32, %arg1: i32) -> (i32, i32, i32) {
    %c0_i32 = arith.constant 0 : i32
    %c0_i32_0 = arith.constant 0 : i32
    %c0_i32_1 = arith.constant 0 : i32
    return %arg1, %c0_i32, %c0_i32_0 : i32, i32, i32
  }
  func.func @transform_4(%arg0: i32, %arg1: i32) -> (i32, i32, i32) {
    %c0_i32 = arith.constant 0 : i32
    %c0_i32_0 = arith.constant 0 : i32
    %c0_i32_1 = arith.constant 0 : i32
    return %arg1, %c0_i32, %c0_i32_0 : i32, i32, i32
  }
  func.func @transform_5(%arg0: i32, %arg1: i32) -> (i32, i32, i32) {
    %c0_i32 = arith.constant 0 : i32
    %c0_i32_0 = arith.constant 0 : i32
    %c0_i32_1 = arith.constant 0 : i32
    return %arg0, %c0_i32, %c0_i32_0 : i32, i32, i32
  }
}

module attributes {stable_mosaic.version = 11 : i64} {
  func.func @attn_block_kernel(%arg0: i32, %arg1: i32, %arg2: memref<1x8x32xf32, #tpu.memory_space<vmem>>, %arg3: memref<3x32xf32, #tpu.memory_space<vmem>>, %arg4: memref<1x32x96xbf16, #tpu.memory_space<vmem>>, %arg5: memref<1x1x96xf32, #tpu.memory_space<vmem>>, %arg6: memref<1x32x32xbf16, #tpu.memory_space<vmem>>, %arg7: memref<1x8x32xf32, #tpu.memory_space<vmem>>, %arg8: memref<1x8x32xbf16, #tpu.memory_space<vmem>>) attributes {dimension_semantics = [#tpu.dimension_semantics<parallel>, #tpu.dimension_semantics<arbitrary>], iteration_bounds = array<i64: 2, 1>, scalar_prefetch = 0 : i64, scratch_operands = 1 : i64, tpu.core_type = #tpu.core_type<tc>, window_params = [{transform_indices = @transform_0, window_bounds = array<i64: 1, 8, 32>}, {pipeline_mode = #tpu.pipeline_mode<synchronous>, transform_indices = @transform_1, window_bounds = array<i64: 3, 32>}, {transform_indices = @transform_2, window_bounds = array<i64: 1, 32, 96>}, {transform_indices = @transform_3, window_bounds = array<i64: 1, 1, 96>}, {transform_indices = @transform_4, window_bounds = array<i64: 1, 32, 32>}, {transform_indices = @transform_5, window_bounds = array<i64: 1, 8, 32>}]} {
    %c0 = arith.constant 0 : index
    %c0_0 = arith.constant 0 : index
    %0 = vector.load %arg3[%c0, %c0_0] : memref<3x32xf32, #tpu.memory_space<vmem>>, vector<3x32xf32>
    %c0_i32 = arith.constant 0 : i32
    %1 = arith.cmpi eq, %arg1, %c0_i32 : i32
    %2 = arith.extui %1 : i1 to i32
    %c0_i32_1 = arith.constant 0 : i32
    %3 = arith.cmpi ne, %2, %c0_i32_1 : i32
    scf.if %3 {
      %c0_37 = arith.constant 0 : index
      %c0_38 = arith.constant 0 : index
      %c0_39 = arith.constant 0 : index
      %115 = vector.load %arg2[%c0_37, %c0_38, %c0_39] : memref<1x8x32xf32, #tpu.memory_space<vmem>>, vector<1x8x32xf32>
      %116 = vector.extract_strided_slice %0 {offsets = [0, 0], sizes = [1, 32], strides = [1, 1]} : vector<3x32xf32> to vector<1x32xf32>
      %117 = vector.shape_cast %116 : vector<1x32xf32> to vector<32xf32>
      %118 = vector.extract_strided_slice %0 {offsets = [1, 0], sizes = [1, 32], strides = [1, 1]} : vector<3x32xf32> to vector<1x32xf32>
      %119 = vector.shape_cast %118 : vector<1x32xf32> to vector<32xf32>
      %cst_40 = arith.constant dense<0.000000e+00> : vector<1x8xf32>
      %120 = vector.multi_reduction <add>, %115, %cst_40 [2] : vector<1x8x32xf32> to vector<1x8xf32>
      %121 = vector.shape_cast %120 : vector<1x8xf32> to vector<1x8x1xf32>
      %cst_41 = arith.constant 3.200000e+01 : f32
      %122 = vector.broadcast %cst_41 : f32 to vector<1x8x1xf32>
      %123 = arith.divf %121, %122 : vector<1x8x1xf32>
      %124 = vector.broadcast %123 : vector<1x8x1xf32> to vector<1x8x32xf32>
      %125 = arith.subf %115, %124 : vector<1x8x32xf32>
      %126 = arith.mulf %125, %125 : vector<1x8x32xf32>
      %cst_42 = arith.constant dense<0.000000e+00> : vector<1x8xf32>
      %127 = vector.multi_reduction <add>, %126, %cst_42 [2] : vector<1x8x32xf32> to vector<1x8xf32>
      %128 = vector.shape_cast %127 : vector<1x8xf32> to vector<1x8x1xf32>
      %cst_43 = arith.constant 3.200000e+01 : f32
      %129 = vector.broadcast %cst_43 : f32 to vector<1x8x1xf32>
      %130 = arith.divf %128, %129 : vector<1x8x1xf32>
      %131 = vector.broadcast %123 : vector<1x8x1xf32> to vector<1x8x32xf32>
      %132 = arith.subf %115, %131 : vector<1x8x32xf32>
      %cst_44 = arith.constant 9.99999974E-6 : f32
      %133 = vector.broadcast %cst_44 : f32 to vector<1x8x1xf32>
      %134 = arith.addf %130, %133 : vector<1x8x1xf32>
      %135 = math.rsqrt %134 : vector<1x8x1xf32>
      %136 = vector.broadcast %135 : vector<1x8x1xf32> to vector<1x8x32xf32>
      %137 = arith.mulf %132, %136 : vector<1x8x32xf32>
      %138 = vector.shape_cast %117 : vector<32xf32> to vector<1x1x32xf32>
      %139 = vector.broadcast %138 : vector<1x1x32xf32> to vector<1x8x32xf32>
      %140 = arith.mulf %137, %139 : vector<1x8x32xf32>
      %141 = vector.shape_cast %119 : vector<32xf32> to vector<1x1x32xf32>
      %142 = vector.broadcast %141 : vector<1x1x32xf32> to vector<1x8x32xf32>
      %143 = arith.addf %140, %142 : vector<1x8x32xf32>
      %144 = arith.truncf %143 : vector<1x8x32xf32> to vector<1x8x32xbf16>
      %c0_45 = arith.constant 0 : index
      %c0_46 = arith.constant 0 : index
      %c0_47 = arith.constant 0 : index
      %145 = vector.load %arg8[%c0_45, %c0_46, %c0_47] : memref<1x8x32xbf16, #tpu.memory_space<vmem>>, vector<1x8x32xbf16>
      tpu.vector_store %arg8[%c0_45, %c0_46, %c0_47], %144 {strides = array<i32>} : memref<1x8x32xbf16, #tpu.memory_space<vmem>>, vector<1x8x32xbf16>,
      %146 = vector.extract_strided_slice %0 {offsets = [2, 0], sizes = [1, 32], strides = [1, 1]} : vector<3x32xf32> to vector<1x32xf32>
      %147 = vector.shape_cast %146 : vector<1x32xf32> to vector<32xf32>
      %148 = vector.shape_cast %147 : vector<32xf32> to vector<1x1x32xf32>
      %149 = vector.broadcast %148 : vector<1x1x32xf32> to vector<1x8x32xf32>
      %150 = arith.addf %115, %149 : vector<1x8x32xf32>
      %c0_48 = arith.constant 0 : index
      %c0_49 = arith.constant 0 : index
      %c0_50 = arith.constant 0 : index
      %151 = vector.load %arg7[%c0_48, %c0_49, %c0_50] : memref<1x8x32xf32, #tpu.memory_space<vmem>>, vector<1x8x32xf32>
      tpu.vector_store %arg7[%c0_48, %c0_49, %c0_50], %150 {strides = array<i32>} : memref<1x8x32xf32, #tpu.memory_space<vmem>>, vector<1x8x32xf32>,
    } else {
    }
    %c0_2 = arith.constant 0 : index
    %c0_3 = arith.constant 0 : index
    %c0_4 = arith.constant 0 : index
    %4 = vector.load %arg8[%c0_2, %c0_3, %c0_4] : memref<1x8x32xbf16, #tpu.memory_space<vmem>>, vector<1x8x32xbf16>
    %5 = vector.shape_cast %4 : vector<1x8x32xbf16> to vector<8x32xbf16>
    %c0_5 = arith.constant 0 : index
    %c0_6 = arith.constant 0 : index
    %c0_7 = arith.constant 0 : index
    %6 = vector.load %arg4[%c0_5, %c0_6, %c0_7] : memref<1x32x96xbf16, #tpu.memory_space<vmem>>, vector<1x32x96xbf16>
    %7 = vector.shape_cast %6 : vector<1x32x96xbf16> to vector<32x96xbf16>
    %cst = arith.constant dense<0.000000e+00> : vector<8x96xf32>
    %8 = tpu.matmul %5, %7, %cst {dimension_numbers = #tpu.dot_dimension_numbers<[1], [0], [0], [1], [0, 0, 1, 1], [], []>} : vector<8x32xbf16>, vector<32x96xbf16>, vector<8x96xf32> -> vector<8x96xf32>
    %c0_8 = arith.constant 0 : index
    %c0_9 = arith.constant 0 : index
    %c0_10 = arith.constant 0 : index
    %9 = vector.load %arg5[%c0_8, %c0_9, %c0_10] : memref<1x1x96xf32, #tpu.memory_space<vmem>>, vector<1x1x96xf32>
    %10 = vector.shape_cast %9 : vector<1x1x96xf32> to vector<96xf32>
    %11 = vector.shape_cast %10 : vector<96xf32> to vector<1x96xf32>
    %12 = vector.broadcast %11 : vector<1x96xf32> to vector<8x96xf32>
    %13 = arith.addf %8, %12 : vector<8x96xf32>
    %14 = vector.extract_strided_slice %13 {offsets = [0, 0], sizes = [8, 8], strides = [1, 1]} : vector<8x96xf32> to vector<8x8xf32>
    %15 = arith.truncf %14 : vector<8x8xf32> to vector<8x8xbf16>
    %16 = vector.shape_cast %15 : vector<8x8xbf16> to vector<1x8x8xbf16>
    %17 = vector.extract_strided_slice %13 {offsets = [0, 32], sizes = [8, 8], strides = [1, 1]} : vector<8x96xf32> to vector<8x8xf32>
    %18 = arith.truncf %17 : vector<8x8xf32> to vector<8x8xbf16>
    %19 = vector.shape_cast %18 : vector<8x8xbf16> to vector<1x8x8xbf16>
    %20 = vector.extract_strided_slice %13 {offsets = [0, 64], sizes = [8, 8], strides = [1, 1]} : vector<8x96xf32> to vector<8x8xf32>
    %21 = arith.truncf %20 : vector<8x8xf32> to vector<8x8xbf16>
    %22 = vector.shape_cast %21 : vector<8x8xbf16> to vector<1x8x8xbf16>
    "tpu.trace_start"() <{level = 10 : i32, message = "bld,bmd->blm"}> : () -> ()
    %cst_11 = arith.constant dense<0.000000e+00> : vector<1x8x8xf32>
    %23 = tpu.matmul %16, %19, %cst_11 {dimension_numbers = #tpu.dot_dimension_numbers<[2], [2], [1], [1], [0, 0, 0, 1, 1, 1], [0], [0]>} : vector<1x8x8xbf16>, vector<1x8x8xbf16>, vector<1x8x8xf32> -> vector<1x8x8xf32>
    "tpu.trace_stop"() : () -> ()
    %cst_12 = arith.constant dense<0xFF800000> : vector<1x8xf32>
    %24 = vector.multi_reduction <maximumf>, %23, %cst_12 [2] : vector<1x8x8xf32> to vector<1x8xf32>
    %25 = vector.shape_cast %24 : vector<1x8xf32> to vector<1x8x1xf32>
    %26 = vector.broadcast %25 : vector<1x8x1xf32> to vector<1x8x8xf32>
    %27 = arith.subf %23, %26 : vector<1x8x8xf32>
    %28 = math.exp %27 : vector<1x8x8xf32>
    %cst_13 = arith.constant dense<0.000000e+00> : vector<1x8xf32>
    %29 = vector.multi_reduction <add>, %28, %cst_13 [2] : vector<1x8x8xf32> to vector<1x8xf32>
    %30 = vector.shape_cast %29 : vector<1x8xf32> to vector<1x8x1xf32>
    %31 = tpu.reciprocal %30 {approx = true} : vector<1x8x1xf32> -> vector<1x8x1xf32>
    %32 = vector.broadcast %31 : vector<1x8x1xf32> to vector<1x8x8xf32>
    %33 = arith.mulf %28, %32 : vector<1x8x8xf32>
    %34 = arith.truncf %33 : vector<1x8x8xf32> to vector<1x8x8xbf16>
    "tpu.trace_start"() <{level = 10 : i32, message = "blm,bmd->bld"}> : () -> ()
    %cst_14 = arith.constant dense<0.000000e+00> : vector<1x8x8xf32>
    %35 = tpu.matmul %34, %22, %cst_14 {dimension_numbers = #tpu.dot_dimension_numbers<[2], [1], [1], [2], [0, 0, 0, 1, 1, 2], [0], [0]>} : vector<1x8x8xbf16>, vector<1x8x8xbf16>, vector<1x8x8xf32> -> vector<1x8x8xf32>
    "tpu.trace_stop"() : () -> ()
    %36 = arith.truncf %35 : vector<1x8x8xf32> to vector<1x8x8xbf16>
    %37 = vector.extract_strided_slice %13 {offsets = [0, 8], sizes = [8, 8], strides = [1, 1]} : vector<8x96xf32> to vector<8x8xf32>
    %38 = arith.truncf %37 : vector<8x8xf32> to vector<8x8xbf16>
    %39 = vector.shape_cast %38 : vector<8x8xbf16> to vector<1x8x8xbf16>
    %40 = vector.extract_strided_slice %13 {offsets = [0, 40], sizes = [8, 8], strides = [1, 1]} : vector<8x96xf32> to vector<8x8xf32>
    %41 = arith.truncf %40 : vector<8x8xf32> to vector<8x8xbf16>
    %42 = vector.shape_cast %41 : vector<8x8xbf16> to vector<1x8x8xbf16>
    %43 = vector.extract_strided_slice %13 {offsets = [0, 72], sizes = [8, 8], strides = [1, 1]} : vector<8x96xf32> to vector<8x8xf32>
    %44 = arith.truncf %43 : vector<8x8xf32> to vector<8x8xbf16>
    %45 = vector.shape_cast %44 : vector<8x8xbf16> to vector<1x8x8xbf16>
    "tpu.trace_start"() <{level = 10 : i32, message = "bld,bmd->blm"}> : () -> ()
    %cst_15 = arith.constant dense<0.000000e+00> : vector<1x8x8xf32>
    %46 = tpu.matmul %39, %42, %cst_15 {dimension_numbers = #tpu.dot_dimension_numbers<[2], [2], [1], [1], [0, 0, 0, 1, 1, 1], [0], [0]>} : vector<1x8x8xbf16>, vector<1x8x8xbf16>, vector<1x8x8xf32> -> vector<1x8x8xf32>
    "tpu.trace_stop"() : () -> ()
    %cst_16 = arith.constant dense<0xFF800000> : vector<1x8xf32>
    %47 = vector.multi_reduction <maximumf>, %46, %cst_16 [2] : vector<1x8x8xf32> to vector<1x8xf32>
    %48 = vector.shape_cast %47 : vector<1x8xf32> to vector<1x8x1xf32>
    %49 = vector.broadcast %48 : vector<1x8x1xf32> to vector<1x8x8xf32>
    %50 = arith.subf %46, %49 : vector<1x8x8xf32>
    %51 = math.exp %50 : vector<1x8x8xf32>
    %cst_17 = arith.constant dense<0.000000e+00> : vector<1x8xf32>
    %52 = vector.multi_reduction <add>, %51, %cst_17 [2] : vector<1x8x8xf32> to vector<1x8xf32>
    %53 = vector.shape_cast %52 : vector<1x8xf32> to vector<1x8x1xf32>
    %54 = tpu.reciprocal %53 {approx = true} : vector<1x8x1xf32> -> vector<1x8x1xf32>
    %55 = vector.broadcast %54 : vector<1x8x1xf32> to vector<1x8x8xf32>
    %56 = arith.mulf %51, %55 : vector<1x8x8xf32>
    %57 = arith.truncf %56 : vector<1x8x8xf32> to vector<1x8x8xbf16>
    "tpu.trace_start"() <{level = 10 : i32, message = "blm,bmd->bld"}> : () -> ()
    %cst_18 = arith.constant dense<0.000000e+00> : vector<1x8x8xf32>
    %58 = tpu.matmul %57, %45, %cst_18 {dimension_numbers = #tpu.dot_dimension_numbers<[2], [1], [1], [2], [0, 0, 0, 1, 1, 2], [0], [0]>} : vector<1x8x8xbf16>, vector<1x8x8xbf16>, vector<1x8x8xf32> -> vector<1x8x8xf32>
    "tpu.trace_stop"() : () -> ()
    %59 = arith.truncf %58 : vector<1x8x8xf32> to vector<1x8x8xbf16>
    %60 = vector.extract_strided_slice %13 {offsets = [0, 16], sizes = [8, 8], strides = [1, 1]} : vector<8x96xf32> to vector<8x8xf32>
    %61 = arith.truncf %60 : vector<8x8xf32> to vector<8x8xbf16>
    %62 = vector.shape_cast %61 : vector<8x8xbf16> to vector<1x8x8xbf16>
    %63 = vector.extract_strided_slice %13 {offsets = [0, 48], sizes = [8, 8], strides = [1, 1]} : vector<8x96xf32> to vector<8x8xf32>
    %64 = arith.truncf %63 : vector<8x8xf32> to vector<8x8xbf16>
    %65 = vector.shape_cast %64 : vector<8x8xbf16> to vector<1x8x8xbf16>
    %66 = vector.extract_strided_slice %13 {offsets = [0, 80], sizes = [8, 8], strides = [1, 1]} : vector<8x96xf32> to vector<8x8xf32>
    %67 = arith.truncf %66 : vector<8x8xf32> to vector<8x8xbf16>
    %68 = vector.shape_cast %67 : vector<8x8xbf16> to vector<1x8x8xbf16>
    "tpu.trace_start"() <{level = 10 : i32, message = "bld,bmd->blm"}> : () -> ()
    %cst_19 = arith.constant dense<0.000000e+00> : vector<1x8x8xf32>
    %69 = tpu.matmul %62, %65, %cst_19 {dimension_numbers = #tpu.dot_dimension_numbers<[2], [2], [1], [1], [0, 0, 0, 1, 1, 1], [0], [0]>} : vector<1x8x8xbf16>, vector<1x8x8xbf16>, vector<1x8x8xf32> -> vector<1x8x8xf32>
    "tpu.trace_stop"() : () -> ()
    %cst_20 = arith.constant dense<0xFF800000> : vector<1x8xf32>
    %70 = vector.multi_reduction <maximumf>, %69, %cst_20 [2] : vector<1x8x8xf32> to vector<1x8xf32>
    %71 = vector.shape_cast %70 : vector<1x8xf32> to vector<1x8x1xf32>
    %72 = vector.broadcast %71 : vector<1x8x1xf32> to vector<1x8x8xf32>
    %73 = arith.subf %69, %72 : vector<1x8x8xf32>
    %74 = math.exp %73 : vector<1x8x8xf32>
    %cst_21 = arith.constant dense<0.000000e+00> : vector<1x8xf32>
    %75 = vector.multi_reduction <add>, %74, %cst_21 [2] : vector<1x8x8xf32> to vector<1x8xf32>
    %76 = vector.shape_cast %75 : vector<1x8xf32> to vector<1x8x1xf32>
    %77 = tpu.reciprocal %76 {approx = true} : vector<1x8x1xf32> -> vector<1x8x1xf32>
    %78 = vector.broadcast %77 : vector<1x8x1xf32> to vector<1x8x8xf32>
    %79 = arith.mulf %74, %78 : vector<1x8x8xf32>
    %80 = arith.truncf %79 : vector<1x8x8xf32> to vector<1x8x8xbf16>
    "tpu.trace_start"() <{level = 10 : i32, message = "blm,bmd->bld"}> : () -> ()
    %cst_22 = arith.constant dense<0.000000e+00> : vector<1x8x8xf32>
    %81 = tpu.matmul %80, %68, %cst_22 {dimension_numbers = #tpu.dot_dimension_numbers<[2], [1], [1], [2], [0, 0, 0, 1, 1, 2], [0], [0]>} : vector<1x8x8xbf16>, vector<1x8x8xbf16>, vector<1x8x8xf32> -> vector<1x8x8xf32>
    "tpu.trace_stop"() : () -> ()
    %82 = arith.truncf %81 : vector<1x8x8xf32> to vector<1x8x8xbf16>
    %83 = vector.extract_strided_slice %13 {offsets = [0, 24], sizes = [8, 8], strides = [1, 1]} : vector<8x96xf32> to vector<8x8xf32>
    %84 = arith.truncf %83 : vector<8x8xf32> to vector<8x8xbf16>
    %85 = vector.shape_cast %84 : vector<8x8xbf16> to vector<1x8x8xbf16>
    %86 = vector.extract_strided_slice %13 {offsets = [0, 56], sizes = [8, 8], strides = [1, 1]} : vector<8x96xf32> to vector<8x8xf32>
    %87 = arith.truncf %86 : vector<8x8xf32> to vector<8x8xbf16>
    %88 = vector.shape_cast %87 : vector<8x8xbf16> to vector<1x8x8xbf16>
    %89 = vector.extract_strided_slice %13 {offsets = [0, 88], sizes = [8, 8], strides = [1, 1]} : vector<8x96xf32> to vector<8x8xf32>
    %90 = arith.truncf %89 : vector<8x8xf32> to vector<8x8xbf16>
    %91 = vector.shape_cast %90 : vector<8x8xbf16> to vector<1x8x8xbf16>
    "tpu.trace_start"() <{level = 10 : i32, message = "bld,bmd->blm"}> : () -> ()
    %cst_23 = arith.constant dense<0.000000e+00> : vector<1x8x8xf32>
    %92 = tpu.matmul %85, %88, %cst_23 {dimension_numbers = #tpu.dot_dimension_numbers<[2], [2], [1], [1], [0, 0, 0, 1, 1, 1], [0], [0]>} : vector<1x8x8xbf16>, vector<1x8x8xbf16>, vector<1x8x8xf32> -> vector<1x8x8xf32>
    "tpu.trace_stop"() : () -> ()
    %cst_24 = arith.constant dense<0xFF800000> : vector<1x8xf32>
    %93 = vector.multi_reduction <maximumf>, %92, %cst_24 [2] : vector<1x8x8xf32> to vector<1x8xf32>
    %94 = vector.shape_cast %93 : vector<1x8xf32> to vector<1x8x1xf32>
    %95 = vector.broadcast %94 : vector<1x8x1xf32> to vector<1x8x8xf32>
    %96 = arith.subf %92, %95 : vector<1x8x8xf32>
    %97 = math.exp %96 : vector<1x8x8xf32>
    %cst_25 = arith.constant dense<0.000000e+00> : vector<1x8xf32>
    %98 = vector.multi_reduction <add>, %97, %cst_25 [2] : vector<1x8x8xf32> to vector<1x8xf32>
    %99 = vector.shape_cast %98 : vector<1x8xf32> to vector<1x8x1xf32>
    %100 = tpu.reciprocal %99 {approx = true} : vector<1x8x1xf32> -> vector<1x8x1xf32>
    %101 = vector.broadcast %100 : vector<1x8x1xf32> to vector<1x8x8xf32>
    %102 = arith.mulf %97, %101 : vector<1x8x8xf32>
    %103 = arith.truncf %102 : vector<1x8x8xf32> to vector<1x8x8xbf16>
    "tpu.trace_start"() <{level = 10 : i32, message = "blm,bmd->bld"}> : () -> ()
    %cst_26 = arith.constant dense<0.000000e+00> : vector<1x8x8xf32>
    %104 = tpu.matmul %103, %91, %cst_26 {dimension_numbers = #tpu.dot_dimension_numbers<[2], [1], [1], [2], [0, 0, 0, 1, 1, 2], [0], [0]>} : vector<1x8x8xbf16>, vector<1x8x8xbf16>, vector<1x8x8xf32> -> vector<1x8x8xf32>
    "tpu.trace_stop"() : () -> ()
    %105 = arith.truncf %104 : vector<1x8x8xf32> to vector<1x8x8xbf16>
    %106 = tpu.concatenate %36, %59, %82, %105 in 2 : vector<1x8x8xbf16>, vector<1x8x8xbf16>, vector<1x8x8xbf16>, vector<1x8x8xbf16> -> vector<1x8x32xbf16>
    %c0_27 = arith.constant 0 : index
    %c0_28 = arith.constant 0 : index
    %c0_29 = arith.constant 0 : index
    %107 = vector.load %arg7[%c0_27, %c0_28, %c0_29] : memref<1x8x32xf32, #tpu.memory_space<vmem>>, vector<1x8x32xf32>
    %108 = vector.shape_cast %106 : vector<1x8x32xbf16> to vector<8x32xbf16>
    %c0_30 = arith.constant 0 : index
    %c0_31 = arith.constant 0 : index
    %c0_32 = arith.constant 0 : index
    %109 = vector.load %arg6[%c0_30, %c0_31, %c0_32] : memref<1x32x32xbf16, #tpu.memory_space<vmem>>, vector<1x32x32xbf16>
    %110 = vector.shape_cast %109 : vector<1x32x32xbf16> to vector<32x32xbf16>
    %cst_33 = arith.constant dense<0.000000e+00> : vector<8x32xf32>
    %111 = tpu.matmul %108, %110, %cst_33 {dimension_numbers = #tpu.dot_dimension_numbers<[1], [0], [0], [1], [0, 0, 1, 1], [], []>} : vector<8x32xbf16>, vector<32x32xbf16>, vector<8x32xf32> -> vector<8x32xf32>
    %112 = vector.shape_cast %111 : vector<8x32xf32> to vector<1x8x32xf32>
    %113 = arith.addf %107, %112 : vector<1x8x32xf32>
    %c0_34 = arith.constant 0 : index
    %c0_35 = arith.constant 0 : index
    %c0_36 = arith.constant 0 : index
    %114 = vector.load %arg7[%c0_34, %c0_35, %c0_36] : memref<1x8x32xf32, #tpu.memory_space<vmem>>, vector<1x8x32xf32>
    tpu.vector_store %arg7[%c0_34, %c0_35, %c0_36], %113 {strides = array<i32>} : memref<1x8x32xf32, #tpu.memory_space<vmem>>, vector<1x8x32xf32>,
    return
  }
  func.func @transform_0(%arg0: i32, %arg1: i32) -> (i32, i32, i32) {
    %c0_i32 = arith.constant 0 : i32
    %c0_i32_0 = arith.constant 0 : i32
    %c0_i32_1 = arith.constant 0 : i32
    return %arg0, %c0_i32, %c0_i32_0 : i32, i32, i32
  }
  func.func @transform_1(%arg0: i32, %arg1: i32) -> (i32, i32) {
    %c0_i32 = arith.constant 0 : i32
    %c0_i32_0 = arith.constant 0 : i32
    %c0_i32_1 = arith.constant 0 : i32
    return %c0_i32, %c0_i32_0 : i32, i32
  }
  func.func @transform_2(%arg0: i32, %arg1: i32) -> (i32, i32, i32) {
    %c0_i32 = arith.constant 0 : i32
    %c0_i32_0 = arith.constant 0 : i32
    %c0_i32_1 = arith.constant 0 : i32
    return %arg1, %c0_i32, %c0_i32_0 : i32, i32, i32
  }
  func.func @transform_3(%arg0: i32, %arg1: i32) -> (i32, i32, i32) {
    %c0_i32 = arith.constant 0 : i32
    %c0_i32_0 = arith.constant 0 : i32
    %c0_i32_1 = arith.constant 0 : i32
    return %arg1, %c0_i32, %c0_i32_0 : i32, i32, i32
  }
  func.func @transform_4(%arg0: i32, %arg1: i32) -> (i32, i32, i32) {
    %c0_i32 = arith.constant 0 : i32
    %c0_i32_0 = arith.constant 0 : i32
    %c0_i32_1 = arith.constant 0 : i32
    return %arg1, %c0_i32, %c0_i32_0 : i32, i32, i32
  }
  func.func @transform_5(%arg0: i32, %arg1: i32) -> (i32, i32, i32) {
    %c0_i32 = arith.constant 0 : i32
    %c0_i32_0 = arith.constant 0 : i32
    %c0_i32_1 = arith.constant 0 : i32
    return %arg0, %c0_i32, %c0_i32_0 : i32, i32, i32
  }
}

</mosaic_0001>

<llo_original>
// kernel: forward.5
$region0: #{forward.5}
  #allocation0 [shape = 'u32[]', space=smem, size = 0x4, offset = 0x4, fixed_abs, tag = 'smem constant byte address 0x4 - core index']
  #allocation1 [shape = 'u32[144,128]{1,0:T(1,128)}', space=vmem, size = 0x12000, scoped, tag = 'internal scratch']
  #allocation2 [shape = 'bf16[1,8,32]{2,1,0:T(8,128)(2,1)}', space=vmem, size = 0x800, scoped, tag = 'scratch operand']
  %s0 = inlined_call_operand.vmem [shape: f32[2,8,32], index: 0, kind: input, shape index: {}, may-alias: {0,5}]
  %s1 = inlined_call_operand.vmem [shape: f32[3,32], index: 1, kind: input, shape index: {}]
  %s2 = inlined_call_operand.vmem [shape: bf16[32,128], index: 2, kind: input, shape index: {}]
  %s3 = inlined_call_operand.vmem [shape: f32[1,128], index: 3, kind: input, shape index: {}]
  %s4 = inlined_call_operand.vmem [shape: bf16[128,32], index: 4, kind: input, shape index: {}]
  %s5 = inlined_call_operand.vmem [shape: f32[2,8,32], index: 5, kind: output, shape index: {}, may-alias: {0,5}]
  %s6 = sld [smem:[#allocation0]]
  $region57: #{forward.5} parent=0
    _
  %s8 = ssub.s32 1, %s6
  %s9 = scalar_select 0, %s8, %s6
  loop: start=0, step=1, limit=4
  $region2: #{forward.5} parent=0 // loop_pre_header
    _
  $region3: #{forward.5} parent=0 // loop_header
    %s11 = sphi 0, %s15
    %p12 = scmp.ge.s32.totalorder %s11, 4
    %s18 = sphi 0, %s30
    %s19 = sphi 0, %s26
    %s20 = sphi 0, %s18
    %s21 = sphi 0, %s19
    %s22 = sphi 0, %s20
    %s23 = sphi 0, %s21
    %s33 = sphi 0, %s35
    %s36 = sphi 0, %s33
    %s37 = sphi 0, %s36
    %s53 = sphi 0, %s37
    %s57 = sphi 0, %s57
    %s59 = sphi 0, %s57
    %s60 = sphi 0, %s59
    %s74 = sphi 0, %s60
    %s80 = sphi 0, %s82
    %s83 = sphi 0, %s80
    %s84 = sphi 0, %s83
    %s100 = sphi 0, %s84
    %s106 = sphi 0, %s108
    %s109 = sphi 0, %s106
    %s110 = sphi 0, %s109
    %s126 = sphi 0, %s110
    %s132 = sphi 0, %s134
    %s135 = sphi 0, %s132
    %s136 = sphi 0, %s135
    %s152 = sphi 0, %s136
    %s158 = sphi 0, %s160
    %s161 = sphi 0, %s158
    %s162 = sphi 0, %s161
    %s178 = sphi 0, %s162
  $region4: #{forward.5} parent=0 // loop_header_branch
    %14 = sbr.rel (%p12) target = $region8
  $region5: #{forward.5} parent=0 // loop_body
    %s16 = ssub.s32 %s11, 1
    %s17 = ssub.s32 %s11, 2
    %s24 = sadd.s32 1, %s19
    %p25 = scmp.ge.s32.totalorder %s24, 1
    %s26 = scalar_select %p25, 0, %s24
    %s27 = sadd.s32 1, %s18
    %s28 = scalar_select %p25, %s27, %s18
    %p29 = scmp.ge.s32.totalorder %s28, 2
    %s30 = scalar_select %p29, 0, %s28
    %s31 = ssub.s32 %s18, %s30
    %p32 = scmp.eq.s32.totalorder %s31, 0
    %s34 = sadd.s32 %s33, 1
    %s35 = scalar_select %p32, %s33, %s34
    %p38 = pneg %p32
    %p39 = scmp.eq.s32.totalorder %s11, 1
    %p40 = por %p38, %p39
    %p41 = scmp.ne.s32.totalorder %s33, %s36
    %p42 = scmp.eq.s32.totalorder %s11, 0
    %p43 = por %p41, %p42
    %p44 = scmp.ne.s32.totalorder %s33, %s36
    %p45 = scmp.eq.s32.totalorder %s16, 1
    %p46 = por %p44, %p45
    %p47 = scmp.ne.s32.totalorder %s36, %s37
    %p48 = scmp.eq.s32.totalorder %s16, 0
    %p49 = por %p47, %p48
    %p50 = scmp.ne.s32.totalorder %s36, %s37
    %p51 = scmp.eq.s32.totalorder %s17, 1
    %p52 = por %p50, %p51
    %p54 = scmp.ne.s32.totalorder %s37, %s53
    %p55 = scmp.eq.s32.totalorder %s17, 0
    %p56 = por %p54, %p55
    %s58 = sadd.s32 %s57, 1
    %p61 = scmp.eq.s32.totalorder %s11, 1
    %p62 = scmp.ne.s32.totalorder %s57, %s59
    %p63 = scmp.eq.s32.totalorder %s11, 0
    %p64 = por %p62, %p63
    %p65 = scmp.ne.s32.totalorder %s57, %s59
    %p66 = scmp.eq.s32.totalorder %s16, 1
    %p67 = por %p65, %p66
    %p68 = scmp.ne.s32.totalorder %s59, %s60
    %p69 = scmp.eq.s32.totalorder %s16, 0
    %p70 = por %p68, %p69
    %p71 = scmp.ne.s32.totalorder %s59, %s60
    %p72 = scmp.eq.s32.totalorder %s17, 1
    %p73 = por %p71, %p72
    %p75 = scmp.ne.s32.totalorder %s60, %s74
    %p76 = scmp.eq.s32.totalorder %s17, 0
    %p77 = por %p75, %p76
    %s78 = ssub.s32 %s19, %s26
    %p79 = scmp.eq.s32.totalorder %s78, 0
    %s81 = sadd.s32 %s80, 1
    %s82 = scalar_select %p79, %s80, %s81
    %p85 = pneg %p79
    %p86 = scmp.eq.s32.totalorder %s11, 1
    %p87 = por %p85, %p86
    %p88 = scmp.ne.s32.totalorder %s80, %s83
    %p89 = scmp.eq.s32.totalorder %s11, 0
    %p90 = por %p88, %p89
    %p91 = scmp.ne.s32.totalorder %s80, %s83
    %p92 = scmp.eq.s32.totalorder %s16, 1
    %p93 = por %p91, %p92
    %p94 = scmp.ne.s32.totalorder %s83, %s84
    %p95 = scmp.eq.s32.totalorder %s16, 0
    %p96 = por %p94, %p95
    %p97 = scmp.ne.s32.totalorder %s83, %s84
    %p98 = scmp.eq.s32.totalorder %s17, 1
    %p99 = por %p97, %p98
    %p101 = scmp.ne.s32.totalorder %s84, %s100
    %p102 = scmp.eq.s32.totalorder %s17, 0
    %p103 = por %p101, %p102
    %s104 = ssub.s32 %s19, %s26
    %p105 = scmp.eq.s32.totalorder %s104, 0
    %s107 = sadd.s32 %s106, 1
    %s108 = scalar_select %p105, %s106, %s107
    %p111 = pneg %p105
    %p112 = scmp.eq.s32.totalorder %s11, 1
    %p113 = por %p111, %p112
    %p114 = scmp.ne.s32.totalorder %s106, %s109
    %p115 = scmp.eq.s32.totalorder %s11, 0
    %p116 = por %p114, %p115
    %p117 = scmp.ne.s32.totalorder %s106, %s109
    %p118 = scmp.eq.s32.totalorder %s16, 1
    %p119 = por %p117, %p118
    %p120 = scmp.ne.s32.totalorder %s109, %s110
    %p121 = scmp.eq.s32.totalorder %s16, 0
    %p122 = por %p120, %p121
    %p123 = scmp.ne.s32.totalorder %s109, %s110
    %p124 = scmp.eq.s32.totalorder %s17, 1
    %p125 = por %p123, %p124
    %p127 = scmp.ne.s32.totalorder %s110, %s126
    %p128 = scmp.eq.s32.totalorder %s17, 0
    %p129 = por %p127, %p128
    %s130 = ssub.s32 %s19, %s26
    %p131 = scmp.eq.s32.totalorder %s130, 0
    %s133 = sadd.s32 %s132, 1
    %s134 = scalar_select %p131, %s132, %s133
    %p137 = pneg %p131
    %p138 = scmp.eq.s32.totalorder %s11, 1
    %p139 = por %p137, %p138
    %p140 = scmp.ne.s32.totalorder %s132, %s135
    %p141 = scmp.eq.s32.totalorder %s11, 0
    %p142 = por %p140, %p141
    %p143 = scmp.ne.s32.totalorder %s132, %s135
    %p144 = scmp.eq.s32.totalorder %s16, 1
    %p145 = por %p143, %p144
    %p146 = scmp.ne.s32.totalorder %s135, %s136
    %p147 = scmp.eq.s32.totalorder %s16, 0
    %p148 = por %p146, %p147
    %p149 = scmp.ne.s32.totalorder %s135, %s136
    %p150 = scmp.eq.s32.totalorder %s17, 1
    %p151 = por %p149, %p150
    %p153 = scmp.ne.s32.totalorder %s136, %s152
    %p154 = scmp.eq.s32.totalorder %s17, 0
    %p155 = por %p153, %p154
    %s156 = ssub.s32 %s18, %s30
    %p157 = scmp.eq.s32.totalorder %s156, 0
    %s159 = sadd.s32 %s158, 1
    %s160 = scalar_select %p157, %s158, %s159
    %p163 = pneg %p157
    %p164 = scmp.eq.s32.totalorder %s11, 1
    %p165 = por %p163, %p164
    %p166 = scmp.ne.s32.totalorder %s158, %s161
    %p167 = scmp.eq.s32.totalorder %s11, 0
    %p168 = por %p166, %p167
    %p169 = scmp.ne.s32.totalorder %s158, %s161
    %p170 = scmp.eq.s32.totalorder %s16, 1
    %p171 = por %p169, %p170
    %p172 = scmp.ne.s32.totalorder %s161, %s162
    %p173 = scmp.eq.s32.totalorder %s16, 0
    %p174 = por %p172, %p173
    %p175 = scmp.ne.s32.totalorder %s161, %s162
    %p176 = scmp.eq.s32.totalorder %s17, 1
    %p177 = por %p175, %p176
    %p179 = scmp.ne.s32.totalorder %s162, %s178
    %p180 = scmp.eq.s32.totalorder %s17, 0
    %p181 = por %p179, %p180
    %p182 = scmp.le.s32.totalorder 1, %s11
    %p183 = scmp.lt.s32.totalorder %s11, 3
    %p184 = pnand %p182, %p183
    %p185 = pneg %p184
    // Predicated region
    $region9: #{forward.5} parent=5 // pred_check
      _
    $region10: #{forward.5} parent=5 // pred_check_branch
      %187 = sbr.rel (%p184) target = $region12
    $region11: #{forward.5} parent=5 // pred_region
      %s188 = ssub.s32 %s11, 1
      // Predicated region
      $region13: #{forward.5} parent=11 // pred_check
        %p189 = pneg %p70
      $region14: #{forward.5} parent=11 // pred_check_branch
        %191 = sbr.rel (%p189) target = $region16
      $region15: #{forward.5} parent=11 // pred_region
        _
      $region16: #{forward.5} parent=11 // pred_fallthru
        _
      // Predicated region
      $region17: #{forward.5} parent=11 // pred_check
        %p192 = pneg %p96
      $region18: #{forward.5} parent=11 // pred_check_branch
        %194 = sbr.rel (%p192) target = $region20
      $region19: #{forward.5} parent=11 // pred_region
        %p195 = scmp.lt.s32.totalorder %s21, 0
        %s196 = scalar_select %p195, %s21, 0
        %s197 = smul.addr %s196, 4
        %s198 = scalar_lea.vmem %s2, %s197
      $region20: #{forward.5} parent=11 // pred_fallthru
        _
      // Predicated region
      $region21: #{forward.5} parent=11 // pred_check
        %p199 = pneg %p122
      $region22: #{forward.5} parent=11 // pred_check_branch
        %201 = sbr.rel (%p199) target = $region24
      $region23: #{forward.5} parent=11 // pred_region
        %p202 = scmp.lt.s32.totalorder %s21, 0
        %s203 = scalar_select %p202, %s21, 0
        %s204 = scalar_lea.vmem %s3, %s203
      $region24: #{forward.5} parent=11 // pred_fallthru
        _
      // Predicated region
      $region25: #{forward.5} parent=11 // pred_check
        %p205 = pneg %p148
      $region26: #{forward.5} parent=11 // pred_check_branch
        %207 = sbr.rel (%p205) target = $region28
      $region27: #{forward.5} parent=11 // pred_region
        %s208 = smul.u32 16, %s21
        %p209 = scmp.lt.s32.totalorder %s208, 15
        %s210 = scalar_select %p209, %s208, 15
        %s211 = smul.addr %s210, 4
        %s212 = scalar_lea.vmem %s4, %s211
        %s213 = smul.u32 16, %s21
      $region28: #{forward.5} parent=11 // pred_fallthru
        _
    $region12: #{forward.5} parent=5 // pred_fallthru
      _
    %p214 = scmp.lt.s32.totalorder %s11, 2
    // Predicated region
    $region29: #{forward.5} parent=5 // pred_check
      %p215 = pneg %p214
    $region30: #{forward.5} parent=5 // pred_check_branch
      %217 = sbr.rel (%p215) target = $region32
    $region31: #{forward.5} parent=5 // pred_region
      // Predicated region
      $region33: #{forward.5} parent=31 // pred_check
        %p218 = pneg %p43
      $region34: #{forward.5} parent=31 // pred_check_branch
        %220 = sbr.rel (%p218) target = $region36
      $region35: #{forward.5} parent=31 // pred_region
        %p221 = scmp.lt.s32.totalorder %s18, 1
        %s222 = scalar_select %p221, %s18, 1
        %s223 = smul.addr %s222, 8
        %s224 = scalar_lea.vmem %s0, %s223
      $region36: #{forward.5} parent=31 // pred_fallthru
        _
    $region32: #{forward.5} parent=5 // pred_fallthru
      _
    %p225 = scmp.le.s32.totalorder 1, %s11
    %p226 = scmp.lt.s32.totalorder %s11, 3
    %p227 = pnand %p225, %p226
    %p228 = pneg %p227
    // Predicated region
    $region37: #{forward.5} parent=5 // pred_check
      _
    $region38: #{forward.5} parent=5 // pred_check_branch
      %230 = sbr.rel (%p227) target = $region40
    $region39: #{forward.5} parent=5 // pred_region
      %s231 = ssub.s32 %s11, 1
      %p232 = scmp.lt.s32.totalorder %s20, 1
      %s233 = scalar_select %p232, %s20, 1
      %s234 = smul.addr %s233, 8
      %s235 = scalar_lea.vmem %s0, %s234
      %p236 = pneg %p49
      %p237 = pneg %p46
      %p238 = pneg %p70
      %p239 = pneg %p67
      %p240 = scmp.lt.s32.totalorder %s21, 0
      %s241 = scalar_select %p240, %s21, 0
      %s242 = smul.addr %s241, 4
      %s243 = scalar_lea.vmem %s2, %s242
      %p244 = pneg %p96
      %p245 = pneg %p93
      %p246 = scmp.lt.s32.totalorder %s21, 0
      %s247 = scalar_select %p246, %s21, 0
      %s248 = scalar_lea.vmem %s3, %s247
      %p249 = pneg %p122
      %p250 = pneg %p119
      %s251 = smul.u32 16, %s21
      %p252 = scmp.lt.s32.totalorder %s251, 15
      %s253 = scalar_select %p252, %s251, 15
      %s254 = smul.addr %s253, 4
      %s255 = scalar_lea.vmem %s4, %s254
      %p256 = pneg %p148
      %p257 = pneg %p145
      %p258 = pneg %p174
      %p259 = pneg %p171
      %p260 = scmp.lt.s32.totalorder %s20, 1
      %s261 = scalar_select %p260, %s20, 1
      %s262 = smul.addr %s261, 8
      %s263 = scalar_lea.vmem %s5, %s262
      %p264 = scmp.lt.s32.totalorder %s20, 1
      %s265 = scalar_select %p264, %s20, 1
      %s266 = smul.addr %s265, 8
      %s267 = scalar_lea.vmem %s0, %s266
      %p268 = scmp.lt.s32.totalorder %s21, 0
      %s269 = scalar_select %p268, %s21, 0
      %s270 = smul.addr %s269, 4
      %s271 = scalar_lea.vmem %s2, %s270
      %p272 = scmp.lt.s32.totalorder %s21, 0
      %s273 = scalar_select %p272, %s21, 0
      %s274 = scalar_lea.vmem %s3, %s273
      %s275 = smul.u32 16, %s21
      %p276 = scmp.lt.s32.totalorder %s275, 15
      %s277 = scalar_select %p276, %s275, 15
      %s278 = smul.addr %s277, 4
      %s279 = scalar_lea.vmem %s4, %s278
      %s280 = smul.u32 16, %s21
      %p281 = scmp.lt.s32.totalorder %s20, 1
      %s282 = scalar_select %p281, %s20, 1
      %s283 = smul.addr %s282, 8
      %s284 = scalar_lea.vmem %s5, %s283
      %v288 = vld [vmem:[%s1] sm:$0x7]
      %p289 = scmp.eq.s32.totalorder %s21, 0
      // Predicated region
      $region41: #{forward.5} parent=39 // pred_check
        %p290 = pneg %p289
      $region42: #{forward.5} parent=39 // pred_check_branch
        %292 = sbr.rel (%p290) target = $region44
      $region43: #{forward.5} parent=39 // pred_region
        %v293 = vld [vmem:[%s267] sm:$0xff]
        %vm294 = vcmask 261120
        %v295 = vsel %vm294, %v293, 0.0
        %296 = vadd.xlane.f32.xlu0 %v295
        %v297 = vpop.xlane.xlu0 %296
        %v298 = vrcp.pop 32.0
        %v299 = vmul.f32 %v297, %v298
        %v300 = vsub.f32 %v293, %v299
        %v301 = vmul.f32 %v300, %v300
        %v302 = vsel %vm294, %v301, 0.0
        %303 = vadd.xlane.f32.xlu0 %v302
        %v304 = vpop.xlane.xlu0 %303
        %v305 = vmul.f32 %v304, %v298
        %v306 = vadd.f32 %v305, 1e-05
        %v307 = vrsqrt.pop %v306
        %v308 = vmul.f32 %v300, %v307
        %v309 = vlaneseq
        %v310 = vshrl.u32 %v309, 7
        %v311 = vsub.s32 0, %v310
        %v312 = vrot.slane %v288, %v311
        %v313 = vmul.f32 %v308, %v312
        %v314 = vlaneseq
        %v315 = vshrl.u32 %v314, 7
        %v316 = vsub.s32 1, %v315
        %v317 = vrot.slane %v288, %v316
        %v318 = vadd.f32 %v313, %v317
        %v319 = vpack.c.bf16 %v318, %v318
        %vm320 = vcmask 257024
        %321 = vst.msk [vmem:[#allocation2] sm:$0xf] %vm320, %v319
        %v322 = vlaneseq
        %v323 = vshrl.u32 %v322, 7
        %v324 = vsub.s32 2, %v323
        %v325 = vrot.slane %v288, %v324
        %v326 = vadd.f32 %v293, %v325
        %327 = vst.msk [vmem:[%s284] sm:$0xff] %vm294, %v326
      $region44: #{forward.5} parent=39 // pred_fallthru
        _
      %v328 = vld [vmem:[#allocation2] sm:$0xf]
      %v329 = vld [vmem:[%s271] sm:$0xf]
      %v330 = vld [vmem:[%s271 + $0x4] sm:$0xf]
      %v331 = vld [vmem:[%s271 + $0x8] sm:$0xf]
      %v332 = vld [vmem:[%s271 + $0xc] sm:$0xf]
      %v333 = vld [vmem:[%s274] sm:$0x1]
      %v335 = vlaneseq
      %v336 = vshrl.u32 %v335, 7
      %v337 = vsub.s32 0, %v336
      %v338 = vrot.slane %v333, %v337
      %v344 = vunpack.c.l.b16 %v329
      %v345 = vunpack.c.l.b16 %v330
      %v346 = vunpack.c.l.b16 %v331
      %v347 = vunpack.c.l.b16 %v332
      %v348 = vpack.c.b16 %v345, %v344
      %v349 = vpack.c.b16 %v347, %v346
      %vm352 = vcmask 261120
      %v354 = vsel %vm352, %v328, 0
      %356 = vmatprep.subr.bf16.mxu0 0
      %357 = vmatpush1.bf16.msra.mxu0 %v348
      %358 = vmatprep.subr.bf16.mxu0 0
      %359 = vmatpush1.bf16.msra.mxu0 %v349
      %360 = vmatprep.subr.bf16.mxu0 0
      %361 = vmatpush1.bf16.msra.mxu0 0
      %362 = vmatprep.subr.bf16.mxu0 0
      %363 = vmatpush1.bf16.msra.mxu0 0
      %364 = vmatprep.subr.bf16.mxu0 0
      %365 = vmatpush1.bf16.msra.mxu0 0
      %366 = vmatprep.subr.bf16.mxu0 0
      %367 = vmatpush1.bf16.msra.mxu0 0
      %368 = vmatprep.subr.bf16.mxu0 0
      %369 = vmatpush1.bf16.msra.mxu0 0
      %370 = vmatprep.subr.bf16.mxu0 0
      %371 = vmatpush1.bf16.msra.mxu0 0
      %372 = vmatprep.subr.bf16.mxu0 0
      %373 = vmatpush1.bf16.msra.mxu0 0
      %374 = vmatprep.subr.bf16.mxu0 0
      %375 = vmatpush1.bf16.msra.mxu0 0
      %376 = vmatprep.subr.bf16.mxu0 0
      %377 = vmatpush1.bf16.msra.mxu0 0
      %378 = vmatprep.subr.bf16.mxu0 0
      %379 = vmatpush1.bf16.msra.mxu0 0
      %380 = vmatprep.subr.bf16.mxu0 0
      %381 = vmatpush1.bf16.msra.mxu0 0
      %382 = vmatprep.subr.bf16.mxu0 0
      %383 = vmatpush1.bf16.msra.mxu0 0
      %384 = vmatprep.subr.bf16.mxu0 0
      %385 = vmatpush1.bf16.msra.mxu0 0
      %386 = vmatprep.subr.bf16.mxu0 0
      %387 = vmatpush1.bf16.msra.mxu0 0
      %388 = vmatprep.mubr.bf16.mxu0 0
      %389 = vmatmul.mubr.bf16.gmra.mrb[0].mxu0 %v354
      %v390 = vpop.f32.mrb[0].mxu0
      %v391 = vadd.f32 %v338, %v390
      %v392 = vpop.f32.mrb[0].mxu0
      %v393 = vpop.f32.mrb[0].mxu0
      %v394 = vpop.f32.mrb[0].mxu0
      %395 = vdwg.mxu0
      %v396 = vpack.c.bf16 %v391, %v391
      %v397 = vmul.bf16 %v396, 1071267802
      %v398 = vxor.u32 %v397, 2147516416
      %v400 = vmul.bf16 %v398, 1069105081
      %v401 = vpow.bf16.pop %v400
      %v402 = vadd.bf16 %v401, 1065369472
      %v403 = vrcp.bf16.pop %v402
      %v404 = vmul.bf16 1065369472, %v403
      %v405 = vmul.bf16 %v396, %v404
      %v406 = vld [vmem:[%s284] sm:$0xff]
      %v407 = vld [vmem:[%s279] sm:$0xf]
      %v408 = vld [vmem:[%s279 + $0x4] sm:$0xf]
      %v409 = vld [vmem:[%s279 + $0x8] sm:$0xf]
      %v410 = vld [vmem:[%s279 + $0xc] sm:$0xf]
      %v411 = vld [vmem:[%s279 + $0x10] sm:$0xf]
      %v412 = vld [vmem:[%s279 + $0x14] sm:$0xf]
      %v413 = vld [vmem:[%s279 + $0x18] sm:$0xf]
      %v414 = vld [vmem:[%s279 + $0x1c] sm:$0xf]
      %v415 = vld [vmem:[%s279 + $0x20] sm:$0xf]
      %v416 = vld [vmem:[%s279 + $0x24] sm:$0xf]
      %v417 = vld [vmem:[%s279 + $0x28] sm:$0xf]
      %v418 = vld [vmem:[%s279 + $0x2c] sm:$0xf]
      %v419 = vld [vmem:[%s279 + $0x30] sm:$0xf]
      %v420 = vld [vmem:[%s279 + $0x34] sm:$0xf]
      %v421 = vld [vmem:[%s279 + $0x38] sm:$0xf]
      %v422 = vld [vmem:[%s279 + $0x3c] sm:$0xf]
      %v439 = vunpack.c.l.b16 %v407
      %v440 = vunpack.c.l.b16 %v408
      %v441 = vunpack.c.l.b16 %v409
      %v442 = vunpack.c.l.b16 %v410
      %v443 = vunpack.c.l.b16 %v411
      %v444 = vunpack.c.l.b16 %v412
      %v445 = vunpack.c.l.b16 %v413
      %v446 = vunpack.c.l.b16 %v414
      %v447 = vunpack.c.l.b16 %v415
      %v448 = vunpack.c.l.b16 %v416
      %v449 = vunpack.c.l.b16 %v417
      %v450 = vunpack.c.l.b16 %v418
      %v451 = vunpack.c.l.b16 %v419
      %v452 = vunpack.c.l.b16 %v420
      %v453 = vunpack.c.l.b16 %v421
      %v454 = vunpack.c.l.b16 %v422
      %v455 = vpack.c.b16 %v440, %v439
      %v456 = vpack.c.b16 %v442, %v441
      %v457 = vpack.c.b16 %v444, %v443
      %v458 = vpack.c.b16 %v446, %v445
      %v459 = vpack.c.b16 %v448, %v447
      %v460 = vpack.c.b16 %v450, %v449
      %v461 = vpack.c.b16 %v452, %v451
      %v462 = vpack.c.b16 %v454, %v453
      %471 = vmatprep.subr.bf16.mxu0 0
      %472 = vmatpush1.bf16.msra.mxu0 %v455
      %473 = vmatprep.subr.bf16.mxu0 0
      %474 = vmatpush1.bf16.msra.mxu0 %v456
      %475 = vmatprep.subr.bf16.mxu0 0
      %476 = vmatpush1.bf16.msra.mxu0 %v457
      %477 = vmatprep.subr.bf16.mxu0 0
      %478 = vmatpush1.bf16.msra.mxu0 %v458
      %479 = vmatprep.subr.bf16.mxu0 0
      %480 = vmatpush1.bf16.msra.mxu0 %v459
      %481 = vmatprep.subr.bf16.mxu0 0
      %482 = vmatpush1.bf16.msra.mxu0 %v460
      %483 = vmatprep.subr.bf16.mxu0 0
      %484 = vmatpush1.bf16.msra.mxu0 %v461
      %485 = vmatprep.subr.bf16.mxu0 0
      %486 = vmatpush1.bf16.msra.mxu0 %v462
      %487 = vmatprep.subr.bf16.mxu0 0
      %488 = vmatpush1.bf16.msra.mxu0 0
      %489 = vmatprep.subr.bf16.mxu0 0
      %490 = vmatpush1.bf16.msra.mxu0 0
      %491 = vmatprep.subr.bf16.mxu0 0
      %492 = vmatpush1.bf16.msra.mxu0 0
      %493 = vmatprep.subr.bf16.mxu0 0
      %494 = vmatpush1.bf16.msra.mxu0 0
      %495 = vmatprep.subr.bf16.mxu0 0
      %496 = vmatpush1.bf16.msra.mxu0 0
      %497 = vmatprep.subr.bf16.mxu0 0
      %498 = vmatpush1.bf16.msra.mxu0 0
      %499 = vmatprep.subr.bf16.mxu0 0
      %500 = vmatpush1.bf16.msra.mxu0 0
      %501 = vmatprep.subr.bf16.mxu0 0
      %502 = vmatpush1.bf16.msra.mxu0 0
      %503 = vmatprep.mubr.bf16.mxu0 0
      %504 = vmatmul.mubr.bf16.gmra.mrb[0].mxu0 %v405
      %v505 = vpop.f32.mrb[0].mxu0
      %v506 = vadd.f32 0.0, %v505
      %v507 = vpop.f32.mrb[0].mxu0
      %v508 = vpop.f32.mrb[0].mxu0
      %v509 = vpop.f32.mrb[0].mxu0
      %510 = vdwg.mxu0
      %v511 = vadd.f32 %v406, %v506
      %512 = vst.msk [vmem:[%s284] sm:$0xff] %vm352, %v511
      %p513 = scmp.lt.s32.totalorder %s20, 1
      %s514 = scalar_select %p513, %s20, 1
      %s515 = smul.addr %s514, 8
      %s516 = scalar_lea.vmem %s5, %s515
      // Predicated region
      $region45: #{forward.5} parent=39 // pred_check
        %p517 = pneg %p171
      $region46: #{forward.5} parent=39 // pred_check_branch
        %519 = sbr.rel (%p517) target = $region48
      $region47: #{forward.5} parent=39 // pred_region
        _
      $region48: #{forward.5} parent=39 // pred_fallthru
        _
    $region40: #{forward.5} parent=5 // pred_fallthru
      _
    %p520 = scmp.le.s32.totalorder 2, %s11
    // Predicated region
    $region49: #{forward.5} parent=5 // pred_check
      %p521 = pneg %p520
    $region50: #{forward.5} parent=5 // pred_check_branch
      %523 = sbr.rel (%p521) target = $region52
    $region51: #{forward.5} parent=5 // pred_region
      %s524 = ssub.s32 %s11, 2
      // Predicated region
      $region53: #{forward.5} parent=51 // pred_check
        %p525 = pneg %p177
      $region54: #{forward.5} parent=51 // pred_check_branch
        %527 = sbr.rel (%p525) target = $region56
      $region55: #{forward.5} parent=51 // pred_region
        %p528 = scmp.lt.s32.totalorder %s22, 1
        %s529 = scalar_select %p528, %s22, 1
        %s530 = smul.addr %s529, 8
        %s531 = scalar_lea.vmem %s5, %s530
      $region56: #{forward.5} parent=51 // pred_fallthru
        _
    $region52: #{forward.5} parent=5 // pred_fallthru
      _
  $region6: #{forward.5} parent=0 // loop_footer
    %s15 = sadd.s32 1, %s11
  $region7: #{forward.5} parent=0 // loop_footer_branch
    %10 = sbr.rel target = $region3
  $region8: #{forward.5} parent=0 // loop_exit
    _

// kernel: forward.6
$region0: #{forward.6}
  #allocation0 [shape = 'u32[]', space=smem, size = 0x4, offset = 0x4, fixed_abs, tag = 'smem constant byte address 0x4 - core index']
  #allocation1 [shape = 'u32[144,128]{1,0:T(1,128)}', space=vmem, size = 0x12000, scoped, tag = 'internal scratch']
  #allocation2 [shape = 'bf16[1,8,32]{2,1,0:T(8,128)(2,1)}', space=vmem, size = 0x800, scoped, tag = 'scratch operand']
  %s0 = inlined_call_operand.vmem [shape: f32[2,8,32], index: 0, kind: input, shape index: {}, may-alias: {0,5}]
  %s1 = inlined_call_operand.vmem [shape: f32[3,32], index: 1, kind: input, shape index: {}]
  %s2 = inlined_call_operand.vmem [shape: bf16[1,32,96], index: 2, kind: input, shape index: {}]
  %s3 = inlined_call_operand.vmem [shape: f32[1,1,96], index: 3, kind: input, shape index: {}]
  %s4 = inlined_call_operand.vmem [shape: bf16[1,32,32], index: 4, kind: input, shape index: {}]
  %s5 = inlined_call_operand.vmem [shape: f32[2,8,32], index: 5, kind: output, shape index: {}, may-alias: {0,5}]
  %s6 = sld [smem:[#allocation0]]
  $region57: #{forward.6} parent=0
    _
  %s8 = ssub.s32 1, %s6
  %s9 = scalar_select 0, %s8, %s6
  loop: start=0, step=1, limit=4
  $region2: #{forward.6} parent=0 // loop_pre_header
    _
  $region3: #{forward.6} parent=0 // loop_header
    %s11 = sphi 0, %s15
    %p12 = scmp.ge.s32.totalorder %s11, 4
    %s18 = sphi 0, %s30
    %s19 = sphi 0, %s26
    %s20 = sphi 0, %s18
    %s21 = sphi 0, %s19
    %s22 = sphi 0, %s20
    %s23 = sphi 0, %s21
    %s33 = sphi 0, %s35
    %s36 = sphi 0, %s33
    %s37 = sphi 0, %s36
    %s53 = sphi 0, %s37
    %s57 = sphi 0, %s57
    %s59 = sphi 0, %s57
    %s60 = sphi 0, %s59
    %s74 = sphi 0, %s60
    %s80 = sphi 0, %s82
    %s83 = sphi 0, %s80
    %s84 = sphi 0, %s83
    %s100 = sphi 0, %s84
    %s106 = sphi 0, %s108
    %s109 = sphi 0, %s106
    %s110 = sphi 0, %s109
    %s126 = sphi 0, %s110
    %s132 = sphi 0, %s134
    %s135 = sphi 0, %s132
    %s136 = sphi 0, %s135
    %s152 = sphi 0, %s136
    %s158 = sphi 0, %s160
    %s161 = sphi 0, %s158
    %s162 = sphi 0, %s161
    %s178 = sphi 0, %s162
  $region4: #{forward.6} parent=0 // loop_header_branch
    %14 = sbr.rel (%p12) target = $region8
  $region5: #{forward.6} parent=0 // loop_body
    %s16 = ssub.s32 %s11, 1
    %s17 = ssub.s32 %s11, 2
    %s24 = sadd.s32 1, %s19
    %p25 = scmp.ge.s32.totalorder %s24, 1
    %s26 = scalar_select %p25, 0, %s24
    %s27 = sadd.s32 1, %s18
    %s28 = scalar_select %p25, %s27, %s18
    %p29 = scmp.ge.s32.totalorder %s28, 2
    %s30 = scalar_select %p29, 0, %s28
    %s31 = ssub.s32 %s18, %s30
    %p32 = scmp.eq.s32.totalorder %s31, 0
    %s34 = sadd.s32 %s33, 1
    %s35 = scalar_select %p32, %s33, %s34
    %p38 = pneg %p32
    %p39 = scmp.eq.s32.totalorder %s11, 1
    %p40 = por %p38, %p39
    %p41 = scmp.ne.s32.totalorder %s33, %s36
    %p42 = scmp.eq.s32.totalorder %s11, 0
    %p43 = por %p41, %p42
    %p44 = scmp.ne.s32.totalorder %s33, %s36
    %p45 = scmp.eq.s32.totalorder %s16, 1
    %p46 = por %p44, %p45
    %p47 = scmp.ne.s32.totalorder %s36, %s37
    %p48 = scmp.eq.s32.totalorder %s16, 0
    %p49 = por %p47, %p48
    %p50 = scmp.ne.s32.totalorder %s36, %s37
    %p51 = scmp.eq.s32.totalorder %s17, 1
    %p52 = por %p50, %p51
    %p54 = scmp.ne.s32.totalorder %s37, %s53
    %p55 = scmp.eq.s32.totalorder %s17, 0
    %p56 = por %p54, %p55
    %s58 = sadd.s32 %s57, 1
    %p61 = scmp.eq.s32.totalorder %s11, 1
    %p62 = scmp.ne.s32.totalorder %s57, %s59
    %p63 = scmp.eq.s32.totalorder %s11, 0
    %p64 = por %p62, %p63
    %p65 = scmp.ne.s32.totalorder %s57, %s59
    %p66 = scmp.eq.s32.totalorder %s16, 1
    %p67 = por %p65, %p66
    %p68 = scmp.ne.s32.totalorder %s59, %s60
    %p69 = scmp.eq.s32.totalorder %s16, 0
    %p70 = por %p68, %p69
    %p71 = scmp.ne.s32.totalorder %s59, %s60
    %p72 = scmp.eq.s32.totalorder %s17, 1
    %p73 = por %p71, %p72
    %p75 = scmp.ne.s32.totalorder %s60, %s74
    %p76 = scmp.eq.s32.totalorder %s17, 0
    %p77 = por %p75, %p76
    %s78 = ssub.s32 %s19, %s26
    %p79 = scmp.eq.s32.totalorder %s78, 0
    %s81 = sadd.s32 %s80, 1
    %s82 = scalar_select %p79, %s80, %s81
    %p85 = pneg %p79
    %p86 = scmp.eq.s32.totalorder %s11, 1
    %p87 = por %p85, %p86
    %p88 = scmp.ne.s32.totalorder %s80, %s83
    %p89 = scmp.eq.s32.totalorder %s11, 0
    %p90 = por %p88, %p89
    %p91 = scmp.ne.s32.totalorder %s80, %s83
    %p92 = scmp.eq.s32.totalorder %s16, 1
    %p93 = por %p91, %p92
    %p94 = scmp.ne.s32.totalorder %s83, %s84
    %p95 = scmp.eq.s32.totalorder %s16, 0
    %p96 = por %p94, %p95
    %p97 = scmp.ne.s32.totalorder %s83, %s84
    %p98 = scmp.eq.s32.totalorder %s17, 1
    %p99 = por %p97, %p98
    %p101 = scmp.ne.s32.totalorder %s84, %s100
    %p102 = scmp.eq.s32.totalorder %s17, 0
    %p103 = por %p101, %p102
    %s104 = ssub.s32 %s19, %s26
    %p105 = scmp.eq.s32.totalorder %s104, 0
    %s107 = sadd.s32 %s106, 1
    %s108 = scalar_select %p105, %s106, %s107
    %p111 = pneg %p105
    %p112 = scmp.eq.s32.totalorder %s11, 1
    %p113 = por %p111, %p112
    %p114 = scmp.ne.s32.totalorder %s106, %s109
    %p115 = scmp.eq.s32.totalorder %s11, 0
    %p116 = por %p114, %p115
    %p117 = scmp.ne.s32.totalorder %s106, %s109
    %p118 = scmp.eq.s32.totalorder %s16, 1
    %p119 = por %p117, %p118
    %p120 = scmp.ne.s32.totalorder %s109, %s110
    %p121 = scmp.eq.s32.totalorder %s16, 0
    %p122 = por %p120, %p121
    %p123 = scmp.ne.s32.totalorder %s109, %s110
    %p124 = scmp.eq.s32.totalorder %s17, 1
    %p125 = por %p123, %p124
    %p127 = scmp.ne.s32.totalorder %s110, %s126
    %p128 = scmp.eq.s32.totalorder %s17, 0
    %p129 = por %p127, %p128
    %s130 = ssub.s32 %s19, %s26
    %p131 = scmp.eq.s32.totalorder %s130, 0
    %s133 = sadd.s32 %s132, 1
    %s134 = scalar_select %p131, %s132, %s133
    %p137 = pneg %p131
    %p138 = scmp.eq.s32.totalorder %s11, 1
    %p139 = por %p137, %p138
    %p140 = scmp.ne.s32.totalorder %s132, %s135
    %p141 = scmp.eq.s32.totalorder %s11, 0
    %p142 = por %p140, %p141
    %p143 = scmp.ne.s32.totalorder %s132, %s135
    %p144 = scmp.eq.s32.totalorder %s16, 1
    %p145 = por %p143, %p144
    %p146 = scmp.ne.s32.totalorder %s135, %s136
    %p147 = scmp.eq.s32.totalorder %s16, 0
    %p148 = por %p146, %p147
    %p149 = scmp.ne.s32.totalorder %s135, %s136
    %p150 = scmp.eq.s32.totalorder %s17, 1
    %p151 = por %p149, %p150
    %p153 = scmp.ne.s32.totalorder %s136, %s152
    %p154 = scmp.eq.s32.totalorder %s17, 0
    %p155 = por %p153, %p154
    %s156 = ssub.s32 %s18, %s30
    %p157 = scmp.eq.s32.totalorder %s156, 0
    %s159 = sadd.s32 %s158, 1
    %s160 = scalar_select %p157, %s158, %s159
    %p163 = pneg %p157
    %p164 = scmp.eq.s32.totalorder %s11, 1
    %p165 = por %p163, %p164
    %p166 = scmp.ne.s32.totalorder %s158, %s161
    %p167 = scmp.eq.s32.totalorder %s11, 0
    %p168 = por %p166, %p167
    %p169 = scmp.ne.s32.totalorder %s158, %s161
    %p170 = scmp.eq.s32.totalorder %s16, 1
    %p171 = por %p169, %p170
    %p172 = scmp.ne.s32.totalorder %s161, %s162
    %p173 = scmp.eq.s32.totalorder %s16, 0
    %p174 = por %p172, %p173
    %p175 = scmp.ne.s32.totalorder %s161, %s162
    %p176 = scmp.eq.s32.totalorder %s17, 1
    %p177 = por %p175, %p176
    %p179 = scmp.ne.s32.totalorder %s162, %s178
    %p180 = scmp.eq.s32.totalorder %s17, 0
    %p181 = por %p179, %p180
    %p182 = scmp.le.s32.totalorder 1, %s11
    %p183 = scmp.lt.s32.totalorder %s11, 3
    %p184 = pnand %p182, %p183
    %p185 = pneg %p184
    // Predicated region
    $region9: #{forward.6} parent=5 // pred_check
      _
    $region10: #{forward.6} parent=5 // pred_check_branch
      %187 = sbr.rel (%p184) target = $region12
    $region11: #{forward.6} parent=5 // pred_region
      %s188 = ssub.s32 %s11, 1
      // Predicated region
      $region13: #{forward.6} parent=11 // pred_check
        %p189 = pneg %p70
      $region14: #{forward.6} parent=11 // pred_check_branch
        %191 = sbr.rel (%p189) target = $region16
      $region15: #{forward.6} parent=11 // pred_region
        _
      $region16: #{forward.6} parent=11 // pred_fallthru
        _
      // Predicated region
      $region17: #{forward.6} parent=11 // pred_check
        %p192 = pneg %p96
      $region18: #{forward.6} parent=11 // pred_check_branch
        %194 = sbr.rel (%p192) target = $region20
      $region19: #{forward.6} parent=11 // pred_region
        %p195 = scmp.lt.s32.totalorder %s21, 0
        %s196 = scalar_select %p195, %s21, 0
        %s197 = smul.addr %s196, 4
        %s198 = smul.addr %s197, 4
        %s199 = scalar_lea.vmem %s2, %s198
      $region20: #{forward.6} parent=11 // pred_fallthru
        _
      // Predicated region
      $region21: #{forward.6} parent=11 // pred_check
        %p200 = pneg %p122
      $region22: #{forward.6} parent=11 // pred_check_branch
        %202 = sbr.rel (%p200) target = $region24
      $region23: #{forward.6} parent=11 // pred_region
        %p203 = scmp.lt.s32.totalorder %s21, 0
        %s204 = scalar_select %p203, %s21, 0
        %s205 = scalar_lea.vmem %s3, %s204
      $region24: #{forward.6} parent=11 // pred_fallthru
        _
      // Predicated region
      $region25: #{forward.6} parent=11 // pred_check
        %p206 = pneg %p148
      $region26: #{forward.6} parent=11 // pred_check_branch
        %208 = sbr.rel (%p206) target = $region28
      $region27: #{forward.6} parent=11 // pred_region
        %p209 = scmp.lt.s32.totalorder %s21, 0
        %s210 = scalar_select %p209, %s21, 0
        %s211 = smul.addr %s210, 4
        %s212 = smul.addr %s211, 4
        %s213 = scalar_lea.vmem %s4, %s212
      $region28: #{forward.6} parent=11 // pred_fallthru
        _
    $region12: #{forward.6} parent=5 // pred_fallthru
      _
    %p214 = scmp.lt.s32.totalorder %s11, 2
    // Predicated region
    $region29: #{forward.6} parent=5 // pred_check
      %p215 = pneg %p214
    $region30: #{forward.6} parent=5 // pred_check_branch
      %217 = sbr.rel (%p215) target = $region32
    $region31: #{forward.6} parent=5 // pred_region
      // Predicated region
      $region33: #{forward.6} parent=31 // pred_check
        %p218 = pneg %p43
      $region34: #{forward.6} parent=31 // pred_check_branch
        %220 = sbr.rel (%p218) target = $region36
      $region35: #{forward.6} parent=31 // pred_region
        %p221 = scmp.lt.s32.totalorder %s18, 1
        %s222 = scalar_select %p221, %s18, 1
        %s223 = smul.addr %s222, 8
        %s224 = scalar_lea.vmem %s0, %s223
      $region36: #{forward.6} parent=31 // pred_fallthru
        _
    $region32: #{forward.6} parent=5 // pred_fallthru
      _
    %p225 = scmp.le.s32.totalorder 1, %s11
    %p226 = scmp.lt.s32.totalorder %s11, 3
    %p227 = pnand %p225, %p226
    %p228 = pneg %p227
    // Predicated region
    $region37: #{forward.6} parent=5 // pred_check
      _
    $region38: #{forward.6} parent=5 // pred_check_branch
      %230 = sbr.rel (%p227) target = $region40
    $region39: #{forward.6} parent=5 // pred_region
      %s231 = ssub.s32 %s11, 1
      %p232 = scmp.lt.s32.totalorder %s20, 1
      %s233 = scalar_select %p232, %s20, 1
      %s234 = smul.addr %s233, 8
      %s235 = scalar_lea.vmem %s0, %s234
      %p236 = pneg %p49
      %p237 = pneg %p46
      %p238 = pneg %p70
      %p239 = pneg %p67
      %p240 = scmp.lt.s32.totalorder %s21, 0
      %s241 = scalar_select %p240, %s21, 0
      %s242 = smul.addr %s241, 4
      %s243 = smul.addr %s242, 4
      %s244 = scalar_lea.vmem %s2, %s243
      %p245 = pneg %p96
      %p246 = pneg %p93
      %p247 = scmp.lt.s32.totalorder %s21, 0
      %s248 = scalar_select %p247, %s21, 0
      %s249 = scalar_lea.vmem %s3, %s248
      %p250 = pneg %p122
      %p251 = pneg %p119
      %p252 = scmp.lt.s32.totalorder %s21, 0
      %s253 = scalar_select %p252, %s21, 0
      %s254 = smul.addr %s253, 4
      %s255 = smul.addr %s254, 4
      %s256 = scalar_lea.vmem %s4, %s255
      %p257 = pneg %p148
      %p258 = pneg %p145
      %p259 = pneg %p174
      %p260 = pneg %p171
      %p261 = scmp.lt.s32.totalorder %s20, 1
      %s262 = scalar_select %p261, %s20, 1
      %s263 = smul.addr %s262, 8
      %s264 = scalar_lea.vmem %s5, %s263
      %p265 = scmp.lt.s32.totalorder %s20, 1
      %s266 = scalar_select %p265, %s20, 1
      %s267 = smul.addr %s266, 8
      %s268 = scalar_lea.vmem %s0, %s267
      %p269 = scmp.lt.s32.totalorder %s21, 0
      %s270 = scalar_select %p269, %s21, 0
      %s271 = smul.addr %s270, 4
      %s272 = smul.addr %s271, 4
      %s273 = scalar_lea.vmem %s2, %s272
      %p274 = scmp.lt.s32.totalorder %s21, 0
      %s275 = scalar_select %p274, %s21, 0
      %s276 = scalar_lea.vmem %s3, %s275
      %p277 = scmp.lt.s32.totalorder %s21, 0
      %s278 = scalar_select %p277, %s21, 0
      %s279 = smul.addr %s278, 4
      %s280 = smul.addr %s279, 4
      %s281 = scalar_lea.vmem %s4, %s280
      %p282 = scmp.lt.s32.totalorder %s20, 1
      %s283 = scalar_select %p282, %s20, 1
      %s284 = smul.addr %s283, 8
      %s285 = scalar_lea.vmem %s5, %s284
      %v287 = vld [vmem:[%s1] sm:$0x7]
      %p288 = scmp.eq.s32.totalorder %s21, 0
      // Predicated region
      $region41: #{forward.6} parent=39 // pred_check
        %p289 = pneg %p288
      $region42: #{forward.6} parent=39 // pred_check_branch
        %291 = sbr.rel (%p289) target = $region44
      $region43: #{forward.6} parent=39 // pred_region
        %v292 = vld [vmem:[%s268] sm:$0xff]
        %vm293 = vcmask 261120
        %v294 = vsel %vm293, %v292, 0.0
        %295 = vadd.xlane.f32.xlu0 %v294
        %v296 = vpop.xlane.xlu0 %295
        %v297 = vrcp.pop 32.0
        %v298 = vmul.f32 %v296, %v297
        %v299 = vsub.f32 %v292, %v298
        %v300 = vmul.f32 %v299, %v299
        %v301 = vsel %vm293, %v300, 0.0
        %302 = vadd.xlane.f32.xlu0 %v301
        %v303 = vpop.xlane.xlu0 %302
        %v304 = vmul.f32 %v303, %v297
        %v305 = vadd.f32 %v304, 1e-05
        %v306 = vrsqrt.pop %v305
        %v307 = vmul.f32 %v299, %v306
        %v308 = vlaneseq
        %v309 = vshrl.u32 %v308, 7
        %v310 = vsub.s32 0, %v309
        %v311 = vrot.slane %v287, %v310
        %v312 = vmul.f32 %v307, %v311
        %v313 = vlaneseq
        %v314 = vshrl.u32 %v313, 7
        %v315 = vsub.s32 1, %v314
        %v316 = vrot.slane %v287, %v315
        %v317 = vadd.f32 %v312, %v316
        %v318 = vpack.c.bf16 %v317, %v317
        %vm319 = vcmask 257024
        %320 = vst.msk [vmem:[#allocation2] sm:$0xf] %vm319, %v318
        %v321 = vlaneseq
        %v322 = vshrl.u32 %v321, 7
        %v323 = vsub.s32 2, %v322
        %v324 = vrot.slane %v287, %v323
        %v325 = vadd.f32 %v292, %v324
        %326 = vst.msk [vmem:[%s285] sm:$0xff] %vm293, %v325
      $region44: #{forward.6} parent=39 // pred_fallthru
        _
      %v327 = vld [vmem:[#allocation2] sm:$0xf]
      %v328 = vld [vmem:[%s273] sm:$0xf]
      %v329 = vld [vmem:[%s273 + $0x4] sm:$0xf]
      %v330 = vld [vmem:[%s273 + $0x8] sm:$0xf]
      %v331 = vld [vmem:[%s273 + $0xc] sm:$0xf]
      %v332 = vld [vmem:[%s276] sm:$0x1]
      %v334 = vlaneseq
      %v335 = vshrl.u32 %v334, 7
      %v336 = vsub.s32 0, %v335
      %v337 = vrot.slane %v332, %v336
      %v343 = vunpack.c.l.b16 %v328
      %v344 = vunpack.c.l.b16 %v329
      %v345 = vunpack.c.l.b16 %v330
      %v346 = vunpack.c.l.b16 %v331
      %v347 = vpack.c.b16 %v344, %v343
      %v348 = vpack.c.b16 %v346, %v345
      %vm351 = vcmask 261120
      %v353 = vsel %vm351, %v327, 0
      %355 = vmatprep.subr.bf16.mxu0 0
      %356 = vmatpush1.bf16.msra.mxu0 %v347
      %357 = vmatprep.subr.bf16.mxu0 0
      %358 = vmatpush1.bf16.msra.mxu0 %v348
      %359 = vmatprep.subr.bf16.mxu0 0
      %360 = vmatpush1.bf16.msra.mxu0 0
      %361 = vmatprep.subr.bf16.mxu0 0
      %362 = vmatpush1.bf16.msra.mxu0 0
      %363 = vmatprep.subr.bf16.mxu0 0
      %364 = vmatpush1.bf16.msra.mxu0 0
      %365 = vmatprep.subr.bf16.mxu0 0
      %366 = vmatpush1.bf16.msra.mxu0 0
      %367 = vmatprep.subr.bf16.mxu0 0
      %368 = vmatpush1.bf16.msra.mxu0 0
      %369 = vmatprep.subr.bf16.mxu0 0
      %370 = vmatpush1.bf16.msra.mxu0 0
      %371 = vmatprep.subr.bf16.mxu0 0
      %372 = vmatpush1.bf16.msra.mxu0 0
      %373 = vmatprep.subr.bf16.mxu0 0
      %374 = vmatpush1.bf16.msra.mxu0 0
      %375 = vmatprep.subr.bf16.mxu0 0
      %376 = vmatpush1.bf16.msra.mxu0 0
      %377 = vmatprep.subr.bf16.mxu0 0
      %378 = vmatpush1.bf16.msra.mxu0 0
      %379 = vmatprep.subr.bf16.mxu0 0
      %380 = vmatpush1.bf16.msra.mxu0 0
      %381 = vmatprep.subr.bf16.mxu0 0
      %382 = vmatpush1.bf16.msra.mxu0 0
      %383 = vmatprep.subr.bf16.mxu0 0
      %384 = vmatpush1.bf16.msra.mxu0 0
      %385 = vmatprep.subr.bf16.mxu0 0
      %386 = vmatpush1.bf16.msra.mxu0 0
      %387 = vmatprep.mubr.bf16.mxu0 0
      %388 = vmatmul.mubr.bf16.gmra.mrb[0].mxu0 %v353
      %v389 = vpop.f32.mrb[0].mxu0
      %v390 = vadd.f32 %v337, %v389
      %v391 = vpop.f32.mrb[0].mxu0
      %v392 = vpop.f32.mrb[0].mxu0
      %v393 = vpop.f32.mrb[0].mxu0
      %394 = vdwg.mxu0
      %v395 = vpack.c.bf16 %v390, %v390
      %397 = vrot.lane.b32.xlu0 %v395, 96
      %v398 = vpop.permute.xlu0 %397
      %vm399 = vcmask 64512
      %v401 = vsel %vm399, %v395, 0
      %v404 = vsel %vm399, %v398, 0
      %406 = vmatprep.subr.bf16.mxu0 0
      %407 = vmatpush1.bf16.xpose.msra.mxu0 %v404
      %408 = vmatprep.subr.bf16.mxu0 0
      %409 = vmatpush1.bf16.xpose.msra.mxu0 0
      %410 = vmatprep.subr.bf16.mxu0 0
      %411 = vmatpush1.bf16.xpose.msra.mxu0 0
      %412 = vmatprep.subr.bf16.mxu0 0
      %413 = vmatpush1.bf16.xpose.msra.mxu0 0
      %414 = vmatprep.subr.bf16.mxu0 0
      %415 = vmatpush1.bf16.xpose.msra.mxu0 0
      %416 = vmatprep.subr.bf16.mxu0 0
      %417 = vmatpush1.bf16.xpose.msra.mxu0 0
      %418 = vmatprep.subr.bf16.mxu0 0
      %419 = vmatpush1.bf16.xpose.msra.mxu0 0
      %420 = vmatprep.subr.bf16.mxu0 0
      %421 = vmatpush1.bf16.xpose.msra.mxu0 0
      %422 = vmatprep.subr.bf16.mxu0 0
      %423 = vmatpush1.bf16.xpose.msra.mxu0 0
      %424 = vmatprep.subr.bf16.mxu0 0
      %425 = vmatpush1.bf16.xpose.msra.mxu0 0
      %426 = vmatprep.subr.bf16.mxu0 0
      %427 = vmatpush1.bf16.xpose.msra.mxu0 0
      %428 = vmatprep.subr.bf16.mxu0 0
      %429 = vmatpush1.bf16.xpose.msra.mxu0 0
      %430 = vmatprep.subr.bf16.mxu0 0
      %431 = vmatpush1.bf16.xpose.msra.mxu0 0
      %432 = vmatprep.subr.bf16.mxu0 0
      %433 = vmatpush1.bf16.xpose.msra.mxu0 0
      %434 = vmatprep.subr.bf16.mxu0 0
      %435 = vmatpush1.bf16.xpose.msra.mxu0 0
      %436 = vmatprep.subr.bf16.mxu0 0
      %437 = vmatpush1.bf16.xpose.msra.mxu0 0
      %438 = vmatprep.mubr.bf16.mxu0 0
      %439 = vmatmul.mubr.bf16.gmra.mrb[0].mxu0 %v401
      %v440 = vpop.f32.mrb[0].mxu0
      %v441 = vadd.f32 0.0, %v440
      %v442 = vpop.f32.mrb[0].mxu0
      %v443 = vpop.f32.mrb[0].mxu0
      %v444 = vpop.f32.mrb[0].mxu0
      %445 = vdwg.mxu0
      %v446 = vsel %vm399, %v441, -inf
      %447 = vmax.xlane.f32.xlu0 %v446
      %v448 = vpop.xlane.xlu0 %447
      %v449 = vsub.f32 %v441, %v448
      %v450 = vmul.f32 %v449, 1.442695
      %v451 = vpow.pop %v450
      %v452 = vsel %vm399, %v451, 0.0
      %453 = vadd.xlane.f32.xlu0 %v452
      %v454 = vpop.xlane.xlu0 %453
      %v455 = vrcp.pop %v454
      %v456 = vmul.f32 %v451, %v455
      %v457 = vpack.c.bf16 %v456, %v456
      %458 = vrot.lane.b32.xlu0 %v395, 64
      %v459 = vpop.permute.xlu0 %458
      %v461 = vsel %vm399, %v457, 0
      %vm463 = vcmask 1043456
      %v465 = vsel %vm463, %v459, 0
      %467 = vmatprep.subr.bf16.mxu0 0
      %468 = vmatpush1.bf16.msra.mxu0 %v465
      %469 = vmatprep.subr.bf16.mxu0 0
      %470 = vmatpush1.bf16.msra.mxu0 0
      %471 = vmatprep.subr.bf16.mxu0 0
      %472 = vmatpush1.bf16.msra.mxu0 0
      %473 = vmatprep.subr.bf16.mxu0 0
      %474 = vmatpush1.bf16.msra.mxu0 0
      %475 = vmatprep.subr.bf16.mxu0 0
      %476 = vmatpush1.bf16.msra.mxu0 0
      %477 = vmatprep.subr.bf16.mxu0 0
      %478 = vmatpush1.bf16.msra.mxu0 0
      %479 = vmatprep.subr.bf16.mxu0 0
      %480 = vmatpush1.bf16.msra.mxu0 0
      %481 = vmatprep.subr.bf16.mxu0 0
      %482 = vmatpush1.bf16.msra.mxu0 0
      %483 = vmatprep.subr.bf16.mxu0 0
      %484 = vmatpush1.bf16.msra.mxu0 0
      %485 = vmatprep.subr.bf16.mxu0 0
      %486 = vmatpush1.bf16.msra.mxu0 0
      %487 = vmatprep.subr.bf16.mxu0 0
      %488 = vmatpush1.bf16.msra.mxu0 0
      %489 = vmatprep.subr.bf16.mxu0 0
      %490 = vmatpush1.bf16.msra.mxu0 0
      %491 = vmatprep.subr.bf16.mxu0 0
      %492 = vmatpush1.bf16.msra.mxu0 0
      %493 = vmatprep.subr.bf16.mxu0 0
      %494 = vmatpush1.bf16.msra.mxu0 0
      %495 = vmatprep.subr.bf16.mxu0 0
      %496 = vmatpush1.bf16.msra.mxu0 0
      %497 = vmatprep.subr.bf16.mxu0 0
      %498 = vmatpush1.bf16.msra.mxu0 0
      %499 = vmatprep.mubr.bf16.mxu0 0
      %500 = vmatmul.mubr.bf16.gmra.mrb[0].mxu0 %v461
      %v501 = vpop.f32.mrb[0].mxu0
      %v502 = vadd.f32 0.0, %v501
      %v503 = vpop.f32.mrb[0].mxu0
      %v504 = vpop.f32.mrb[0].mxu0
      %v505 = vpop.f32.mrb[0].mxu0
      %506 = vdwg.mxu0
      %v507 = vpack.c.bf16 %v502, %v502
      %508 = vrot.lane.b32.xlu0 %v395, 120
      %v509 = vpop.permute.xlu0 %508
      %510 = vrot.lane.b32.xlu0 %v395, 88
      %v511 = vpop.permute.xlu0 %510
      %v513 = vsel %vm399, %v509, 0
      %v516 = vsel %vm399, %v511, 0
      %518 = vmatprep.subr.bf16.mxu0 0
      %519 = vmatpush1.bf16.xpose.msra.mxu0 %v516
      %520 = vmatprep.subr.bf16.mxu0 0
      %521 = vmatpush1.bf16.xpose.msra.mxu0 0
      %522 = vmatprep.subr.bf16.mxu0 0
      %523 = vmatpush1.bf16.xpose.msra.mxu0 0
      %524 = vmatprep.subr.bf16.mxu0 0
      %525 = vmatpush1.bf16.xpose.msra.mxu0 0
      %526 = vmatprep.subr.bf16.mxu0 0
      %527 = vmatpush1.bf16.xpose.msra.mxu0 0
      %528 = vmatprep.subr.bf16.mxu0 0
      %529 = vmatpush1.bf16.xpose.msra.mxu0 0
      %530 = vmatprep.subr.bf16.mxu0 0
      %531 = vmatpush1.bf16.xpose.msra.mxu0 0
      %532 = vmatprep.subr.bf16.mxu0 0
      %533 = vmatpush1.bf16.xpose.msra.mxu0 0
      %534 = vmatprep.subr.bf16.mxu0 0
      %535 = vmatpush1.bf16.xpose.msra.mxu0 0
      %536 = vmatprep.subr.bf16.mxu0 0
      %537 = vmatpush1.bf16.xpose.msra.mxu0 0
      %538 = vmatprep.subr.bf16.mxu0 0
      %539 = vmatpush1.bf16.xpose.msra.mxu0 0
      %540 = vmatprep.subr.bf16.mxu0 0
      %541 = vmatpush1.bf16.xpose.msra.mxu0 0
      %542 = vmatprep.subr.bf16.mxu0 0
      %543 = vmatpush1.bf16.xpose.msra.mxu0 0
      %544 = vmatprep.subr.bf16.mxu0 0
      %545 = vmatpush1.bf16.xpose.msra.mxu0 0
      %546 = vmatprep.subr.bf16.mxu0 0
      %547 = vmatpush1.bf16.xpose.msra.mxu0 0
      %548 = vmatprep.subr.bf16.mxu0 0
      %549 = vmatpush1.bf16.xpose.msra.mxu0 0
      %550 = vmatprep.mubr.bf16.mxu0 0
      %551 = vmatmul.mubr.bf16.gmra.mrb[0].mxu0 %v513
      %v552 = vpop.f32.mrb[0].mxu0
      %v553 = vadd.f32 0.0, %v552
      %v554 = vpop.f32.mrb[0].mxu0
      %v555 = vpop.f32.mrb[0].mxu0
      %v556 = vpop.f32.mrb[0].mxu0
      %557 = vdwg.mxu0
      %v558 = vsel %vm399, %v553, -inf
      %559 = vmax.xlane.f32.xlu0 %v558
      %v560 = vpop.xlane.xlu0 %559
      %v561 = vsub.f32 %v553, %v560
      %v562 = vmul.f32 %v561, 1.442695
      %v563 = vpow.pop %v562
      %v564 = vsel %vm399, %v563, 0.0
      %565 = vadd.xlane.f32.xlu0 %v564
      %v566 = vpop.xlane.xlu0 %565
      %v567 = vrcp.pop %v566
      %v568 = vmul.f32 %v563, %v567
      %v569 = vpack.c.bf16 %v568, %v568
      %570 = vrot.lane.b32.xlu0 %v395, 56
      %v571 = vpop.permute.xlu0 %570
      %v573 = vsel %vm399, %v569, 0
      %v576 = vsel %vm463, %v571, 0
      %578 = vmatprep.subr.bf16.mxu0 0
      %579 = vmatpush1.bf16.msra.mxu0 %v576
      %580 = vmatprep.subr.bf16.mxu0 0
      %581 = vmatpush1.bf16.msra.mxu0 0
      %582 = vmatprep.subr.bf16.mxu0 0
      %583 = vmatpush1.bf16.msra.mxu0 0
      %584 = vmatprep.subr.bf16.mxu0 0
      %585 = vmatpush1.bf16.msra.mxu0 0
      %586 = vmatprep.subr.bf16.mxu0 0
      %587 = vmatpush1.bf16.msra.mxu0 0
      %588 = vmatprep.subr.bf16.mxu0 0
      %589 = vmatpush1.bf16.msra.mxu0 0
      %590 = vmatprep.subr.bf16.mxu0 0
      %591 = vmatpush1.bf16.msra.mxu0 0
      %592 = vmatprep.subr.bf16.mxu0 0
      %593 = vmatpush1.bf16.msra.mxu0 0
      %594 = vmatprep.subr.bf16.mxu0 0
      %595 = vmatpush1.bf16.msra.mxu0 0
      %596 = vmatprep.subr.bf16.mxu0 0
      %597 = vmatpush1.bf16.msra.mxu0 0
      %598 = vmatprep.subr.bf16.mxu0 0
      %599 = vmatpush1.bf16.msra.mxu0 0
      %600 = vmatprep.subr.bf16.mxu0 0
      %601 = vmatpush1.bf16.msra.mxu0 0
      %602 = vmatprep.subr.bf16.mxu0 0
      %603 = vmatpush1.bf16.msra.mxu0 0
      %604 = vmatprep.subr.bf16.mxu0 0
      %605 = vmatpush1.bf16.msra.mxu0 0
      %606 = vmatprep.subr.bf16.mxu0 0
      %607 = vmatpush1.bf16.msra.mxu0 0
      %608 = vmatprep.subr.bf16.mxu0 0
      %609 = vmatpush1.bf16.msra.mxu0 0
      %610 = vmatprep.mubr.bf16.mxu0 0
      %611 = vmatmul.mubr.bf16.gmra.mrb[0].mxu0 %v573
      %v612 = vpop.f32.mrb[0].mxu0
      %v613 = vadd.f32 0.0, %v612
      %v614 = vpop.f32.mrb[0].mxu0
      %v615 = vpop.f32.mrb[0].mxu0
      %v616 = vpop.f32.mrb[0].mxu0
      %617 = vdwg.mxu0
      %v618 = vpack.c.bf16 %v613, %v613
      %619 = vrot.lane.b32.xlu0 %v395, 112
      %v620 = vpop.permute.xlu0 %619
      %621 = vrot.lane.b32.xlu0 %v395, 80
      %v622 = vpop.permute.xlu0 %621
      %v624 = vsel %vm399, %v620, 0
      %v627 = vsel %vm399, %v622, 0
      %629 = vmatprep.subr.bf16.mxu0 0
      %630 = vmatpush1.bf16.xpose.msra.mxu0 %v627
      %631 = vmatprep.subr.bf16.mxu0 0
      %632 = vmatpush1.bf16.xpose.msra.mxu0 0
      %633 = vmatprep.subr.bf16.mxu0 0
      %634 = vmatpush1.bf16.xpose.msra.mxu0 0
      %635 = vmatprep.subr.bf16.mxu0 0
      %636 = vmatpush1.bf16.xpose.msra.mxu0 0
      %637 = vmatprep.subr.bf16.mxu0 0
      %638 = vmatpush1.bf16.xpose.msra.mxu0 0
      %639 = vmatprep.subr.bf16.mxu0 0
      %640 = vmatpush1.bf16.xpose.msra.mxu0 0
      %641 = vmatprep.subr.bf16.mxu0 0
      %642 = vmatpush1.bf16.xpose.msra.mxu0 0
      %643 = vmatprep.subr.bf16.mxu0 0
      %644 = vmatpush1.bf16.xpose.msra.mxu0 0
      %645 = vmatprep.subr.bf16.mxu0 0
      %646 = vmatpush1.bf16.xpose.msra.mxu0 0
      %647 = vmatprep.subr.bf16.mxu0 0
      %648 = vmatpush1.bf16.xpose.msra.mxu0 0
      %649 = vmatprep.subr.bf16.mxu0 0
      %650 = vmatpush1.bf16.xpose.msra.mxu0 0
      %651 = vmatprep.subr.bf16.mxu0 0
      %652 = vmatpush1.bf16.xpose.msra.mxu0 0
      %653 = vmatprep.subr.bf16.mxu0 0
      %654 = vmatpush1.bf16.xpose.msra.mxu0 0
      %655 = vmatprep.subr.bf16.mxu0 0
      %656 = vmatpush1.bf16.xpose.msra.mxu0 0
      %657 = vmatprep.subr.bf16.mxu0 0
      %658 = vmatpush1.bf16.xpose.msra.mxu0 0
      %659 = vmatprep.subr.bf16.mxu0 0
      %660 = vmatpush1.bf16.xpose.msra.mxu0 0
      %661 = vmatprep.mubr.bf16.mxu0 0
      %662 = vmatmul.mubr.bf16.gmra.mrb[0].mxu0 %v624
      %v663 = vpop.f32.mrb[0].mxu0
      %v664 = vadd.f32 0.0, %v663
      %v665 = vpop.f32.mrb[0].mxu0
      %v666 = vpop.f32.mrb[0].mxu0
      %v667 = vpop.f32.mrb[0].mxu0
      %668 = vdwg.mxu0
      %v669 = vsel %vm399, %v664, -inf
      %670 = vmax.xlane.f32.xlu0 %v669
      %v671 = vpop.xlane.xlu0 %670
      %v672 = vsub.f32 %v664, %v671
      %v673 = vmul.f32 %v672, 1.442695
      %v674 = vpow.pop %v673
      %v675 = vsel %vm399, %v674, 0.0
      %676 = vadd.xlane.f32.xlu0 %v675
      %v677 = vpop.xlane.xlu0 %676
      %v678 = vrcp.pop %v677
      %v679 = vmul.f32 %v674, %v678
      %v680 = vpack.c.bf16 %v679, %v679
      %681 = vrot.lane.b32.xlu0 %v395, 48
      %v682 = vpop.permute.xlu0 %681
      %v684 = vsel %vm399, %v680, 0
      %v687 = vsel %vm463, %v682, 0
      %689 = vmatprep.subr.bf16.mxu0 0
      %690 = vmatpush1.bf16.msra.mxu0 %v687
      %691 = vmatprep.subr.bf16.mxu0 0
      %692 = vmatpush1.bf16.msra.mxu0 0
      %693 = vmatprep.subr.bf16.mxu0 0
      %694 = vmatpush1.bf16.msra.mxu0 0
      %695 = vmatprep.subr.bf16.mxu0 0
      %696 = vmatpush1.bf16.msra.mxu0 0
      %697 = vmatprep.subr.bf16.mxu0 0
      %698 = vmatpush1.bf16.msra.mxu0 0
      %699 = vmatprep.subr.bf16.mxu0 0
      %700 = vmatpush1.bf16.msra.mxu0 0
      %701 = vmatprep.subr.bf16.mxu0 0
      %702 = vmatpush1.bf16.msra.mxu0 0
      %703 = vmatprep.subr.bf16.mxu0 0
      %704 = vmatpush1.bf16.msra.mxu0 0
      %705 = vmatprep.subr.bf16.mxu0 0
      %706 = vmatpush1.bf16.msra.mxu0 0
      %707 = vmatprep.subr.bf16.mxu0 0
      %708 = vmatpush1.bf16.msra.mxu0 0
      %709 = vmatprep.subr.bf16.mxu0 0
      %710 = vmatpush1.bf16.msra.mxu0 0
      %711 = vmatprep.subr.bf16.mxu0 0
      %712 = vmatpush1.bf16.msra.mxu0 0
      %713 = vmatprep.subr.bf16.mxu0 0
      %714 = vmatpush1.bf16.msra.mxu0 0
      %715 = vmatprep.subr.bf16.mxu0 0
      %716 = vmatpush1.bf16.msra.mxu0 0
      %717 = vmatprep.subr.bf16.mxu0 0
      %718 = vmatpush1.bf16.msra.mxu0 0
      %719 = vmatprep.subr.bf16.mxu0 0
      %720 = vmatpush1.bf16.msra.mxu0 0
      %721 = vmatprep.mubr.bf16.mxu0 0
      %722 = vmatmul.mubr.bf16.gmra.mrb[0].mxu0 %v684
      %v723 = vpop.f32.mrb[0].mxu0
      %v724 = vadd.f32 0.0, %v723
      %v725 = vpop.f32.mrb[0].mxu0
      %v726 = vpop.f32.mrb[0].mxu0
      %v727 = vpop.f32.mrb[0].mxu0
      %728 = vdwg.mxu0
      %v729 = vpack.c.bf16 %v724, %v724
      %730 = vrot.lane.b32.xlu0 %v395, 104
      %v731 = vpop.permute.xlu0 %730
      %732 = vrot.lane.b32.xlu0 %v395, 72
      %v733 = vpop.permute.xlu0 %732
      %v735 = vsel %vm399, %v731, 0
      %v738 = vsel %vm399, %v733, 0
      %740 = vmatprep.subr.bf16.mxu0 0
      %741 = vmatpush1.bf16.xpose.msra.mxu0 %v738
      %742 = vmatprep.subr.bf16.mxu0 0
      %743 = vmatpush1.bf16.xpose.msra.mxu0 0
      %744 = vmatprep.subr.bf16.mxu0 0
      %745 = vmatpush1.bf16.xpose.msra.mxu0 0
      %746 = vmatprep.subr.bf16.mxu0 0
      %747 = vmatpush1.bf16.xpose.msra.mxu0 0
      %748 = vmatprep.subr.bf16.mxu0 0
      %749 = vmatpush1.bf16.xpose.msra.mxu0 0
      %750 = vmatprep.subr.bf16.mxu0 0
      %751 = vmatpush1.bf16.xpose.msra.mxu0 0
      %752 = vmatprep.subr.bf16.mxu0 0
      %753 = vmatpush1.bf16.xpose.msra.mxu0 0
      %754 = vmatprep.subr.bf16.mxu0 0
      %755 = vmatpush1.bf16.xpose.msra.mxu0 0
      %756 = vmatprep.subr.bf16.mxu0 0
      %757 = vmatpush1.bf16.xpose.msra.mxu0 0
      %758 = vmatprep.subr.bf16.mxu0 0
      %759 = vmatpush1.bf16.xpose.msra.mxu0 0
      %760 = vmatprep.subr.bf16.mxu0 0
      %761 = vmatpush1.bf16.xpose.msra.mxu0 0
      %762 = vmatprep.subr.bf16.mxu0 0
      %763 = vmatpush1.bf16.xpose.msra.mxu0 0
      %764 = vmatprep.subr.bf16.mxu0 0
      %765 = vmatpush1.bf16.xpose.msra.mxu0 0
      %766 = vmatprep.subr.bf16.mxu0 0
      %767 = vmatpush1.bf16.xpose.msra.mxu0 0
      %768 = vmatprep.subr.bf16.mxu0 0
      %769 = vmatpush1.bf16.xpose.msra.mxu0 0
      %770 = vmatprep.subr.bf16.mxu0 0
      %771 = vmatpush1.bf16.xpose.msra.mxu0 0
      %772 = vmatprep.mubr.bf16.mxu0 0
      %773 = vmatmul.mubr.bf16.gmra.mrb[0].mxu0 %v735
      %v774 = vpop.f32.mrb[0].mxu0
      %v775 = vadd.f32 0.0, %v774
      %v776 = vpop.f32.mrb[0].mxu0
      %v777 = vpop.f32.mrb[0].mxu0
      %v778 = vpop.f32.mrb[0].mxu0
      %779 = vdwg.mxu0
      %v780 = vsel %vm399, %v775, -inf
      %781 = vmax.xlane.f32.xlu0 %v780
      %v782 = vpop.xlane.xlu0 %781
      %v783 = vsub.f32 %v775, %v782
      %v784 = vmul.f32 %v783, 1.442695
      %v785 = vpow.pop %v784
      %v786 = vsel %vm399, %v785, 0.0
      %787 = vadd.xlane.f32.xlu0 %v786
      %v788 = vpop.xlane.xlu0 %787
      %v789 = vrcp.pop %v788
      %v790 = vmul.f32 %v785, %v789
      %v791 = vpack.c.bf16 %v790, %v790
      %792 = vrot.lane.b32.xlu0 %v395, 40
      %v793 = vpop.permute.xlu0 %792
      %v795 = vsel %vm399, %v791, 0
      %v798 = vsel %vm463, %v793, 0
      %800 = vmatprep.subr.bf16.mxu0 0
      %801 = vmatpush1.bf16.msra.mxu0 %v798
      %802 = vmatprep.subr.bf16.mxu0 0
      %803 = vmatpush1.bf16.msra.mxu0 0
      %804 = vmatprep.subr.bf16.mxu0 0
      %805 = vmatpush1.bf16.msra.mxu0 0
      %806 = vmatprep.subr.bf16.mxu0 0
      %807 = vmatpush1.bf16.msra.mxu0 0
      %808 = vmatprep.subr.bf16.mxu0 0
      %809 = vmatpush1.bf16.msra.mxu0 0
      %810 = vmatprep.subr.bf16.mxu0 0
      %811 = vmatpush1.bf16.msra.mxu0 0
      %812 = vmatprep.subr.bf16.mxu0 0
      %813 = vmatpush1.bf16.msra.mxu0 0
      %814 = vmatprep.subr.bf16.mxu0 0
      %815 = vmatpush1.bf16.msra.mxu0 0
      %816 = vmatprep.subr.bf16.mxu0 0
      %817 = vmatpush1.bf16.msra.mxu0 0
      %818 = vmatprep.subr.bf16.mxu0 0
      %819 = vmatpush1.bf16.msra.mxu0 0
      %820 = vmatprep.subr.bf16.mxu0 0
      %821 = vmatpush1.bf16.msra.mxu0 0
      %822 = vmatprep.subr.bf16.mxu0 0
      %823 = vmatpush1.bf16.msra.mxu0 0
      %824 = vmatprep.subr.bf16.mxu0 0
      %825 = vmatpush1.bf16.msra.mxu0 0
      %826 = vmatprep.subr.bf16.mxu0 0
      %827 = vmatpush1.bf16.msra.mxu0 0
      %828 = vmatprep.subr.bf16.mxu0 0
      %829 = vmatpush1.bf16.msra.mxu0 0
      %830 = vmatprep.subr.bf16.mxu0 0
      %831 = vmatpush1.bf16.msra.mxu0 0
      %832 = vmatprep.mubr.bf16.mxu0 0
      %833 = vmatmul.mubr.bf16.gmra.mrb[0].mxu0 %v795
      %v834 = vpop.f32.mrb[0].mxu0
      %v835 = vadd.f32 0.0, %v834
      %v836 = vpop.f32.mrb[0].mxu0
      %v837 = vpop.f32.mrb[0].mxu0
      %v838 = vpop.f32.mrb[0].mxu0
      %839 = vdwg.mxu0
      %v840 = vpack.c.bf16 %v835, %v835
      %842 = vrot.lane.b32.xlu0 %v618, 8
      %v843 = vpop.permute.xlu0 %842
      %845 = vrot.lane.b32.xlu0 %v729, 16
      %v846 = vpop.permute.xlu0 %845
      %848 = vrot.lane.b32.xlu0 %v840, 24
      %v849 = vpop.permute.xlu0 %848
      %v852 = vsel %vm399, %v507, %v843
      %vm853 = vcmask 130048
      %v855 = vsel %vm853, %v852, %v846
      %vm856 = vcmask 195584
      %v858 = vsel %vm856, %v855, %v849
      %v859 = vld [vmem:[%s285] sm:$0xff]
      %v860 = vld [vmem:[%s281] sm:$0xf]
      %v861 = vld [vmem:[%s281 + $0x4] sm:$0xf]
      %v862 = vld [vmem:[%s281 + $0x8] sm:$0xf]
      %v863 = vld [vmem:[%s281 + $0xc] sm:$0xf]
      %v868 = vunpack.c.l.b16 %v860
      %v869 = vunpack.c.l.b16 %v861
      %v870 = vunpack.c.l.b16 %v862
      %v871 = vunpack.c.l.b16 %v863
      %v872 = vpack.c.b16 %v869, %v868
      %v873 = vpack.c.b16 %v871, %v870
      %v876 = vsel %vm351, %v858, 0
      %878 = vmatprep.subr.bf16.mxu0 0
      %879 = vmatpush1.bf16.msra.mxu0 %v872
      %880 = vmatprep.subr.bf16.mxu0 0
      %881 = vmatpush1.bf16.msra.mxu0 %v873
      %882 = vmatprep.subr.bf16.mxu0 0
      %883 = vmatpush1.bf16.msra.mxu0 0
      %884 = vmatprep.subr.bf16.mxu0 0
      %885 = vmatpush1.bf16.msra.mxu0 0
      %886 = vmatprep.subr.bf16.mxu0 0
      %887 = vmatpush1.bf16.msra.mxu0 0
      %888 = vmatprep.subr.bf16.mxu0 0
      %889 = vmatpush1.bf16.msra.mxu0 0
      %890 = vmatprep.subr.bf16.mxu0 0
      %891 = vmatpush1.bf16.msra.mxu0 0
      %892 = vmatprep.subr.bf16.mxu0 0
      %893 = vmatpush1.bf16.msra.mxu0 0
      %894 = vmatprep.subr.bf16.mxu0 0
      %895 = vmatpush1.bf16.msra.mxu0 0
      %896 = vmatprep.subr.bf16.mxu0 0
      %897 = vmatpush1.bf16.msra.mxu0 0
      %898 = vmatprep.subr.bf16.mxu0 0
      %899 = vmatpush1.bf16.msra.mxu0 0
      %900 = vmatprep.subr.bf16.mxu0 0
      %901 = vmatpush1.bf16.msra.mxu0 0
      %902 = vmatprep.subr.bf16.mxu0 0
      %903 = vmatpush1.bf16.msra.mxu0 0
      %904 = vmatprep.subr.bf16.mxu0 0
      %905 = vmatpush1.bf16.msra.mxu0 0
      %906 = vmatprep.subr.bf16.mxu0 0
      %907 = vmatpush1.bf16.msra.mxu0 0
      %908 = vmatprep.subr.bf16.mxu0 0
      %909 = vmatpush1.bf16.msra.mxu0 0
      %910 = vmatprep.mubr.bf16.mxu0 0
      %911 = vmatmul.mubr.bf16.gmra.mrb[0].mxu0 %v876
      %v912 = vpop.f32.mrb[0].mxu0
      %v913 = vadd.f32 0.0, %v912
      %v914 = vpop.f32.mrb[0].mxu0
      %v915 = vpop.f32.mrb[0].mxu0
      %v916 = vpop.f32.mrb[0].mxu0
      %917 = vdwg.mxu0
      %v918 = vadd.f32 %v859, %v913
      %919 = vst.msk [vmem:[%s285] sm:$0xff] %vm351, %v918
      %p920 = scmp.lt.s32.totalorder %s20, 1
      %s921 = scalar_select %p920, %s20, 1
      %s922 = smul.addr %s921, 8
      %s923 = scalar_lea.vmem %s5, %s922
      // Predicated region
      $region45: #{forward.6} parent=39 // pred_check
        %p924 = pneg %p171
      $region46: #{forward.6} parent=39 // pred_check_branch
        %926 = sbr.rel (%p924) target = $region48
      $region47: #{forward.6} parent=39 // pred_region
        _
      $region48: #{forward.6} parent=39 // pred_fallthru
        _
    $region40: #{forward.6} parent=5 // pred_fallthru
      _
    %p927 = scmp.le.s32.totalorder 2, %s11
    // Predicated region
    $region49: #{forward.6} parent=5 // pred_check
      %p928 = pneg %p927
    $region50: #{forward.6} parent=5 // pred_check_branch
      %930 = sbr.rel (%p928) target = $region52
    $region51: #{forward.6} parent=5 // pred_region
      %s931 = ssub.s32 %s11, 2
      // Predicated region
      $region53: #{forward.6} parent=51 // pred_check
        %p932 = pneg %p177
      $region54: #{forward.6} parent=51 // pred_check_branch
        %934 = sbr.rel (%p932) target = $region56
      $region55: #{forward.6} parent=51 // pred_region
        %p935 = scmp.lt.s32.totalorder %s22, 1
        %s936 = scalar_select %p935, %s22, 1
        %s937 = smul.addr %s936, 8
        %s938 = scalar_lea.vmem %s5, %s937
      $region56: #{forward.6} parent=51 // pred_fallthru
        _
    $region52: #{forward.6} parent=5 // pred_fallthru
      _
  $region6: #{forward.6} parent=0 // loop_footer
    %s15 = sadd.s32 1, %s11
  $region7: #{forward.6} parent=0 // loop_footer_branch
    %10 = sbr.rel target = $region3
  $region8: #{forward.6} parent=0 // loop_exit
    _

// kernel: forward.4
$region0: #{forward.4}
  #allocation0 [shape = 'u32[]', space=smem, size = 0x4, offset = 0x4, fixed_abs, tag = 'smem constant byte address 0x4 - core index']
  #allocation1 [shape = 'u32[144,128]{1,0:T(1,128)}', space=vmem, size = 0x12000, scoped, tag = 'internal scratch']
  #allocation2 [shape = 'bf16[1,8,32]{2,1,0:T(8,128)(2,1)}', space=vmem, size = 0x800, scoped, tag = 'scratch operand']
  %s0 = inlined_call_operand.vmem [shape: f32[2,8,32], index: 0, kind: input, shape index: {}, may-alias: {0,5}]
  %s1 = inlined_call_operand.hbm [shape: f32[3,32], index: 1, kind: input, shape index: {}]
  %s2 = inlined_call_operand.vmem [shape: bf16[1,32,96], index: 2, kind: input, shape index: {}]
  %s3 = inlined_call_operand.vmem [shape: f32[1,1,96], index: 3, kind: input, shape index: {}]
  %s4 = inlined_call_operand.vmem [shape: bf16[1,32,32], index: 4, kind: input, shape index: {}]
  %s5 = inlined_call_operand.vmem [shape: f32[2,8,32], index: 5, kind: output, shape index: {}, may-alias: {0,5}]
  %s6 = sld [smem:[#allocation0]]
  $region61: #{forward.4} parent=0
    _
  %s8 = ssub.s32 1, %s6
  %s9 = scalar_select 0, %s8, %s6
  $region1: #{forward.4} parent=0
    #allocation3 [shape = 'u8[2048]{0}', space=vmem, size = 0x800, scoped, tag = 'input window, operand 1, single buffered']
    #allocation4 [shape = 's32[2]{0}', space=sflag, size = 0x8, scoped, tag = 'scoped memory for forward.4']
    %10 = vsyncpa [#allocation4], 0
    loop: start=0, step=1, limit=4
    $region2: #{forward.4} parent=1 // loop_pre_header
      _
    $region3: #{forward.4} parent=1 // loop_header
      %s12 = sphi 0, %s16
      %p13 = scmp.ge.s32.totalorder %s12, 4
      %s19 = sphi 0, %s31
      %s20 = sphi 0, %s27
      %s21 = sphi 0, %s19
      %s22 = sphi 0, %s20
      %s23 = sphi 0, %s21
      %s24 = sphi 0, %s22
      %s34 = sphi 0, %s36
      %s37 = sphi 0, %s34
      %s38 = sphi 0, %s37
      %s54 = sphi 0, %s38
      %s58 = sphi 0, %s58
      %s60 = sphi 0, %s58
      %s61 = sphi 0, %s60
      %s75 = sphi 0, %s61
      %s81 = sphi 0, %s83
      %s84 = sphi 0, %s81
      %s85 = sphi 0, %s84
      %s101 = sphi 0, %s85
      %s107 = sphi 0, %s109
      %s110 = sphi 0, %s107
      %s111 = sphi 0, %s110
      %s127 = sphi 0, %s111
      %s133 = sphi 0, %s135
      %s136 = sphi 0, %s133
      %s137 = sphi 0, %s136
      %s153 = sphi 0, %s137
      %s159 = sphi 0, %s161
      %s162 = sphi 0, %s159
      %s163 = sphi 0, %s162
      %s179 = sphi 0, %s163
    $region4: #{forward.4} parent=1 // loop_header_branch
      %15 = sbr.rel (%p13) target = $region8
    $region5: #{forward.4} parent=1 // loop_body
      %s17 = ssub.s32 %s12, 1
      %s18 = ssub.s32 %s12, 2
      %s25 = sadd.s32 1, %s20
      %p26 = scmp.ge.s32.totalorder %s25, 1
      %s27 = scalar_select %p26, 0, %s25
      %s28 = sadd.s32 1, %s19
      %s29 = scalar_select %p26, %s28, %s19
      %p30 = scmp.ge.s32.totalorder %s29, 2
      %s31 = scalar_select %p30, 0, %s29
      %s32 = ssub.s32 %s19, %s31
      %p33 = scmp.eq.s32.totalorder %s32, 0
      %s35 = sadd.s32 %s34, 1
      %s36 = scalar_select %p33, %s34, %s35
      %p39 = pneg %p33
      %p40 = scmp.eq.s32.totalorder %s12, 1
      %p41 = por %p39, %p40
      %p42 = scmp.ne.s32.totalorder %s34, %s37
      %p43 = scmp.eq.s32.totalorder %s12, 0
      %p44 = por %p42, %p43
      %p45 = scmp.ne.s32.totalorder %s34, %s37
      %p46 = scmp.eq.s32.totalorder %s17, 1
      %p47 = por %p45, %p46
      %p48 = scmp.ne.s32.totalorder %s37, %s38
      %p49 = scmp.eq.s32.totalorder %s17, 0
      %p50 = por %p48, %p49
      %p51 = scmp.ne.s32.totalorder %s37, %s38
      %p52 = scmp.eq.s32.totalorder %s18, 1
      %p53 = por %p51, %p52
      %p55 = scmp.ne.s32.totalorder %s38, %s54
      %p56 = scmp.eq.s32.totalorder %s18, 0
      %p57 = por %p55, %p56
      %s59 = sadd.s32 %s58, 1
      %p62 = scmp.eq.s32.totalorder %s12, 1
      %p63 = scmp.ne.s32.totalorder %s58, %s60
      %p64 = scmp.eq.s32.totalorder %s12, 0
      %p65 = por %p63, %p64
      %p66 = scmp.ne.s32.totalorder %s58, %s60
      %p67 = scmp.eq.s32.totalorder %s17, 1
      %p68 = por %p66, %p67
      %p69 = scmp.ne.s32.totalorder %s60, %s61
      %p70 = scmp.eq.s32.totalorder %s17, 0
      %p71 = por %p69, %p70
      %p72 = scmp.ne.s32.totalorder %s60, %s61
      %p73 = scmp.eq.s32.totalorder %s18, 1
      %p74 = por %p72, %p73
      %p76 = scmp.ne.s32.totalorder %s61, %s75
      %p77 = scmp.eq.s32.totalorder %s18, 0
      %p78 = por %p76, %p77
      %s79 = ssub.s32 %s20, %s27
      %p80 = scmp.eq.s32.totalorder %s79, 0
      %s82 = sadd.s32 %s81, 1
      %s83 = scalar_select %p80, %s81, %s82
      %p86 = pneg %p80
      %p87 = scmp.eq.s32.totalorder %s12, 1
      %p88 = por %p86, %p87
      %p89 = scmp.ne.s32.totalorder %s81, %s84
      %p90 = scmp.eq.s32.totalorder %s12, 0
      %p91 = por %p89, %p90
      %p92 = scmp.ne.s32.totalorder %s81, %s84
      %p93 = scmp.eq.s32.totalorder %s17, 1
      %p94 = por %p92, %p93
      %p95 = scmp.ne.s32.totalorder %s84, %s85
      %p96 = scmp.eq.s32.totalorder %s17, 0
      %p97 = por %p95, %p96
      %p98 = scmp.ne.s32.totalorder %s84, %s85
      %p99 = scmp.eq.s32.totalorder %s18, 1
      %p100 = por %p98, %p99
      %p102 = scmp.ne.s32.totalorder %s85, %s101
      %p103 = scmp.eq.s32.totalorder %s18, 0
      %p104 = por %p102, %p103
      %s105 = ssub.s32 %s20, %s27
      %p106 = scmp.eq.s32.totalorder %s105, 0
      %s108 = sadd.s32 %s107, 1
      %s109 = scalar_select %p106, %s107, %s108
      %p112 = pneg %p106
      %p113 = scmp.eq.s32.totalorder %s12, 1
      %p114 = por %p112, %p113
      %p115 = scmp.ne.s32.totalorder %s107, %s110
      %p116 = scmp.eq.s32.totalorder %s12, 0
      %p117 = por %p115, %p116
      %p118 = scmp.ne.s32.totalorder %s107, %s110
      %p119 = scmp.eq.s32.totalorder %s17, 1
      %p120 = por %p118, %p119
      %p121 = scmp.ne.s32.totalorder %s110, %s111
      %p122 = scmp.eq.s32.totalorder %s17, 0
      %p123 = por %p121, %p122
      %p124 = scmp.ne.s32.totalorder %s110, %s111
      %p125 = scmp.eq.s32.totalorder %s18, 1
      %p126 = por %p124, %p125
      %p128 = scmp.ne.s32.totalorder %s111, %s127
      %p129 = scmp.eq.s32.totalorder %s18, 0
      %p130 = por %p128, %p129
      %s131 = ssub.s32 %s20, %s27
      %p132 = scmp.eq.s32.totalorder %s131, 0
      %s134 = sadd.s32 %s133, 1
      %s135 = scalar_select %p132, %s133, %s134
      %p138 = pneg %p132
      %p139 = scmp.eq.s32.totalorder %s12, 1
      %p140 = por %p138, %p139
      %p141 = scmp.ne.s32.totalorder %s133, %s136
      %p142 = scmp.eq.s32.totalorder %s12, 0
      %p143 = por %p141, %p142
      %p144 = scmp.ne.s32.totalorder %s133, %s136
      %p145 = scmp.eq.s32.totalorder %s17, 1
      %p146 = por %p144, %p145
      %p147 = scmp.ne.s32.totalorder %s136, %s137
      %p148 = scmp.eq.s32.totalorder %s17, 0
      %p149 = por %p147, %p148
      %p150 = scmp.ne.s32.totalorder %s136, %s137
      %p151 = scmp.eq.s32.totalorder %s18, 1
      %p152 = por %p150, %p151
      %p154 = scmp.ne.s32.totalorder %s137, %s153
      %p155 = scmp.eq.s32.totalorder %s18, 0
      %p156 = por %p154, %p155
      %s157 = ssub.s32 %s19, %s31
      %p158 = scmp.eq.s32.totalorder %s157, 0
      %s160 = sadd.s32 %s159, 1
      %s161 = scalar_select %p158, %s159, %s160
      %p164 = pneg %p158
      %p165 = scmp.eq.s32.totalorder %s12, 1
      %p166 = por %p164, %p165
      %p167 = scmp.ne.s32.totalorder %s159, %s162
      %p168 = scmp.eq.s32.totalorder %s12, 0
      %p169 = por %p167, %p168
      %p170 = scmp.ne.s32.totalorder %s159, %s162
      %p171 = scmp.eq.s32.totalorder %s17, 1
      %p172 = por %p170, %p171
      %p173 = scmp.ne.s32.totalorder %s162, %s163
      %p174 = scmp.eq.s32.totalorder %s17, 0
      %p175 = por %p173, %p174
      %p176 = scmp.ne.s32.totalorder %s162, %s163
      %p177 = scmp.eq.s32.totalorder %s18, 1
      %p178 = por %p176, %p177
      %p180 = scmp.ne.s32.totalorder %s163, %s179
      %p181 = scmp.eq.s32.totalorder %s18, 0
      %p182 = por %p180, %p181
      %p183 = scmp.le.s32.totalorder 1, %s12
      %p184 = scmp.lt.s32.totalorder %s12, 3
      %p185 = pnand %p183, %p184
      %p186 = pneg %p185
      // Predicated region
      $region9: #{forward.4} parent=5 // pred_check
        _
      $region10: #{forward.4} parent=5 // pred_check_branch
        %188 = sbr.rel (%p185) target = $region12
      $region11: #{forward.4} parent=5 // pred_region
        %s189 = ssub.s32 %s12, 1
        // Predicated region
        $region13: #{forward.4} parent=11 // pred_check
          %p190 = pneg %p71
        $region14: #{forward.4} parent=11 // pred_check_branch
          %192 = sbr.rel (%p190) target = $region16
        $region15: #{forward.4} parent=11 // pred_region
          %s194 = ssub.s32 64, 64
          %195 = vsyncadd [#allocation4], %s194
          %s197 = sshll.u32 [#allocation3], 4
          %s198 = int_to_ptr.vmem [resolvable:$true] %s197
          %200 = dma.hbm_to_vmem [thread:$0]  %s1, 64, %s198, [#allocation4]
        $region16: #{forward.4} parent=11 // pred_fallthru
          _
        // Predicated region
        $region17: #{forward.4} parent=11 // pred_check
          %p201 = pneg %p97
        $region18: #{forward.4} parent=11 // pred_check_branch
          %203 = sbr.rel (%p201) target = $region20
        $region19: #{forward.4} parent=11 // pred_region
          %p204 = scmp.lt.s32.totalorder %s22, 0
          %s205 = scalar_select %p204, %s22, 0
          %s206 = smul.addr %s205, 4
          %s207 = smul.addr %s206, 4
          %s208 = scalar_lea.vmem %s2, %s207
        $region20: #{forward.4} parent=11 // pred_fallthru
          _
        // Predicated region
        $region21: #{forward.4} parent=11 // pred_check
          %p209 = pneg %p123
        $region22: #{forward.4} parent=11 // pred_check_branch
          %211 = sbr.rel (%p209) target = $region24
        $region23: #{forward.4} parent=11 // pred_region
          %p212 = scmp.lt.s32.totalorder %s22, 0
          %s213 = scalar_select %p212, %s22, 0
          %s214 = scalar_lea.vmem %s3, %s213
        $region24: #{forward.4} parent=11 // pred_fallthru
          _
        // Predicated region
        $region25: #{forward.4} parent=11 // pred_check
          %p215 = pneg %p149
        $region26: #{forward.4} parent=11 // pred_check_branch
          %217 = sbr.rel (%p215) target = $region28
        $region27: #{forward.4} parent=11 // pred_region
          %p218 = scmp.lt.s32.totalorder %s22, 0
          %s219 = scalar_select %p218, %s22, 0
          %s220 = smul.addr %s219, 4
          %s221 = smul.addr %s220, 4
          %s222 = scalar_lea.vmem %s4, %s221
        $region28: #{forward.4} parent=11 // pred_fallthru
          _
      $region12: #{forward.4} parent=5 // pred_fallthru
        _
      %p223 = scmp.lt.s32.totalorder %s12, 2
      // Predicated region
      $region29: #{forward.4} parent=5 // pred_check
        %p224 = pneg %p223
      $region30: #{forward.4} parent=5 // pred_check_branch
        %226 = sbr.rel (%p224) target = $region32
      $region31: #{forward.4} parent=5 // pred_region
        // Predicated region
        $region33: #{forward.4} parent=31 // pred_check
          %p227 = pneg %p44
        $region34: #{forward.4} parent=31 // pred_check_branch
          %229 = sbr.rel (%p227) target = $region36
        $region35: #{forward.4} parent=31 // pred_region
          %p230 = scmp.lt.s32.totalorder %s19, 1
          %s231 = scalar_select %p230, %s19, 1
          %s232 = smul.addr %s231, 8
          %s233 = scalar_lea.vmem %s0, %s232
        $region36: #{forward.4} parent=31 // pred_fallthru
          _
      $region32: #{forward.4} parent=5 // pred_fallthru
        _
      %p234 = scmp.le.s32.totalorder 1, %s12
      %p235 = scmp.lt.s32.totalorder %s12, 3
      %p236 = pnand %p234, %p235
      %p237 = pneg %p236
      // Predicated region
      $region37: #{forward.4} parent=5 // pred_check
        _
      $region38: #{forward.4} parent=5 // pred_check_branch
        %239 = sbr.rel (%p236) target = $region40
      $region39: #{forward.4} parent=5 // pred_region
        %s240 = ssub.s32 %s12, 1
        // Predicated region
        $region41: #{forward.4} parent=39 // pred_check
          %p241 = pneg %p71
        $region42: #{forward.4} parent=39 // pred_check_branch
          %243 = sbr.rel (%p241) target = $region44
        $region43: #{forward.4} parent=39 // pred_region
          %244 = dma.done [#allocation4], 64
        $region44: #{forward.4} parent=39 // pred_fallthru
          _
        %p245 = scmp.lt.s32.totalorder %s21, 1
        %s246 = scalar_select %p245, %s21, 1
        %s247 = smul.addr %s246, 8
        %s248 = scalar_lea.vmem %s0, %s247
        %p249 = pneg %p50
        %p250 = pneg %p47
        %p251 = pneg %p71
        %p252 = pneg %p68
        %p253 = scmp.lt.s32.totalorder %s22, 0
        %s254 = scalar_select %p253, %s22, 0
        %s255 = smul.addr %s254, 4
        %s256 = smul.addr %s255, 4
        %s257 = scalar_lea.vmem %s2, %s256
        %p258 = pneg %p97
        %p259 = pneg %p94
        %p260 = scmp.lt.s32.totalorder %s22, 0
        %s261 = scalar_select %p260, %s22, 0
        %s262 = scalar_lea.vmem %s3, %s261
        %p263 = pneg %p123
        %p264 = pneg %p120
        %p265 = scmp.lt.s32.totalorder %s22, 0
        %s266 = scalar_select %p265, %s22, 0
        %s267 = smul.addr %s266, 4
        %s268 = smul.addr %s267, 4
        %s269 = scalar_lea.vmem %s4, %s268
        %p270 = pneg %p149
        %p271 = pneg %p146
        %p272 = pneg %p175
        %p273 = pneg %p172
        %p274 = scmp.lt.s32.totalorder %s21, 1
        %s275 = scalar_select %p274, %s21, 1
        %s276 = smul.addr %s275, 8
        %s277 = scalar_lea.vmem %s5, %s276
        %p278 = scmp.lt.s32.totalorder %s21, 1
        %s279 = scalar_select %p278, %s21, 1
        %s280 = smul.addr %s279, 8
        %s281 = scalar_lea.vmem %s0, %s280
        %p282 = scmp.lt.s32.totalorder %s22, 0
        %s283 = scalar_select %p282, %s22, 0
        %s284 = smul.addr %s283, 4
        %s285 = smul.addr %s284, 4
        %s286 = scalar_lea.vmem %s2, %s285
        %p287 = scmp.lt.s32.totalorder %s22, 0
        %s288 = scalar_select %p287, %s22, 0
        %s289 = scalar_lea.vmem %s3, %s288
        %p290 = scmp.lt.s32.totalorder %s22, 0
        %s291 = scalar_select %p290, %s22, 0
        %s292 = smul.addr %s291, 4
        %s293 = smul.addr %s292, 4
        %s294 = scalar_lea.vmem %s4, %s293
        %p295 = scmp.lt.s32.totalorder %s21, 1
        %s296 = scalar_select %p295, %s21, 1
        %s297 = smul.addr %s296, 8
        %s298 = scalar_lea.vmem %s5, %s297
        %v300 = vld [vmem:[#allocation3] sm:$0x7]
        %p301 = scmp.eq.s32.totalorder %s22, 0
        // Predicated region
        $region45: #{forward.4} parent=39 // pred_check
          %p302 = pneg %p301
        $region46: #{forward.4} parent=39 // pred_check_branch
          %304 = sbr.rel (%p302) target = $region48
        $region47: #{forward.4} parent=39 // pred_region
          %v305 = vld [vmem:[%s281] sm:$0xff]
          %vm306 = vcmask 261120
          %v307 = vsel %vm306, %v305, 0.0
          %308 = vadd.xlane.f32.xlu0 %v307
          %v309 = vpop.xlane.xlu0 %308
          %v310 = vrcp.pop 32.0
          %v311 = vmul.f32 %v309, %v310
          %v312 = vsub.f32 %v305, %v311
          %v313 = vmul.f32 %v312, %v312
          %v314 = vsel %vm306, %v313, 0.0
          %315 = vadd.xlane.f32.xlu0 %v314
          %v316 = vpop.xlane.xlu0 %315
          %v317 = vmul.f32 %v316, %v310
          %v318 = vadd.f32 %v317, 1e-05
          %v319 = vrsqrt.pop %v318
          %v320 = vmul.f32 %v312, %v319
          %v321 = vlaneseq
          %v322 = vshrl.u32 %v321, 7
          %v323 = vsub.s32 0, %v322
          %v324 = vrot.slane %v300, %v323
          %v325 = vmul.f32 %v320, %v324
          %v326 = vlaneseq
          %v327 = vshrl.u32 %v326, 7
          %v328 = vsub.s32 1, %v327
          %v329 = vrot.slane %v300, %v328
          %v330 = vadd.f32 %v325, %v329
          %v331 = vpack.c.bf16 %v330, %v330
          %vm332 = vcmask 257024
          %333 = vst.msk [vmem:[#allocation2] sm:$0xf] %vm332, %v331
          %v334 = vlaneseq
          %v335 = vshrl.u32 %v334, 7
          %v336 = vsub.s32 2, %v335
          %v337 = vrot.slane %v300, %v336
          %v338 = vadd.f32 %v305, %v337
          %339 = vst.msk [vmem:[%s298] sm:$0xff] %vm306, %v338
        $region48: #{forward.4} parent=39 // pred_fallthru
          _
        %v340 = vld [vmem:[#allocation2] sm:$0xf]
        %v341 = vld [vmem:[%s286] sm:$0xf]
        %v342 = vld [vmem:[%s286 + $0x4] sm:$0xf]
        %v343 = vld [vmem:[%s286 + $0x8] sm:$0xf]
        %v344 = vld [vmem:[%s286 + $0xc] sm:$0xf]
        %v345 = vld [vmem:[%s289] sm:$0x1]
        %v347 = vlaneseq
        %v348 = vshrl.u32 %v347, 7
        %v349 = vsub.s32 0, %v348
        %v350 = vrot.slane %v345, %v349
        %v356 = vunpack.c.l.b16 %v341
        %v357 = vunpack.c.l.b16 %v342
        %v358 = vunpack.c.l.b16 %v343
        %v359 = vunpack.c.l.b16 %v344
        %v360 = vpack.c.b16 %v357, %v356
        %v361 = vpack.c.b16 %v359, %v358
        %vm364 = vcmask 261120
        %v366 = vsel %vm364, %v340, 0
        %368 = vmatprep.subr.bf16.mxu0 0
        %369 = vmatpush1.bf16.msra.mxu0 %v360
        %370 = vmatprep.subr.bf16.mxu0 0
        %371 = vmatpush1.bf16.msra.mxu0 %v361
        %372 = vmatprep.subr.bf16.mxu0 0
        %373 = vmatpush1.bf16.msra.mxu0 0
        %374 = vmatprep.subr.bf16.mxu0 0
        %375 = vmatpush1.bf16.msra.mxu0 0
        %376 = vmatprep.subr.bf16.mxu0 0
        %377 = vmatpush1.bf16.msra.mxu0 0
        %378 = vmatprep.subr.bf16.mxu0 0
        %379 = vmatpush1.bf16.msra.mxu0 0
        %380 = vmatprep.subr.bf16.mxu0 0
        %381 = vmatpush1.bf16.msra.mxu0 0
        %382 = vmatprep.subr.bf16.mxu0 0
        %383 = vmatpush1.bf16.msra.mxu0 0
        %384 = vmatprep.subr.bf16.mxu0 0
        %385 = vmatpush1.bf16.msra.mxu0 0
        %386 = vmatprep.subr.bf16.mxu0 0
        %387 = vmatpush1.bf16.msra.mxu0 0
        %388 = vmatprep.subr.bf16.mxu0 0
        %389 = vmatpush1.bf16.msra.mxu0 0
        %390 = vmatprep.subr.bf16.mxu0 0
        %391 = vmatpush1.bf16.msra.mxu0 0
        %392 = vmatprep.subr.bf16.mxu0 0
        %393 = vmatpush1.bf16.msra.mxu0 0
        %394 = vmatprep.subr.bf16.mxu0 0
        %395 = vmatpush1.bf16.msra.mxu0 0
        %396 = vmatprep.subr.bf16.mxu0 0
        %397 = vmatpush1.bf16.msra.mxu0 0
        %398 = vmatprep.subr.bf16.mxu0 0
        %399 = vmatpush1.bf16.msra.mxu0 0
        %400 = vmatprep.mubr.bf16.mxu0 0
        %401 = vmatmul.mubr.bf16.gmra.mrb[0].mxu0 %v366
        %v402 = vpop.f32.mrb[0].mxu0
        %v403 = vadd.f32 %v350, %v402
        %v404 = vpop.f32.mrb[0].mxu0
        %v405 = vpop.f32.mrb[0].mxu0
        %v406 = vpop.f32.mrb[0].mxu0
        %407 = vdwg.mxu0
        %v408 = vpack.c.bf16 %v403, %v403
        %410 = vrot.lane.b32.xlu0 %v408, 96
        %v411 = vpop.permute.xlu0 %410
        %vm412 = vcmask 64512
        %v414 = vsel %vm412, %v408, 0
        %v417 = vsel %vm412, %v411, 0
        %419 = vmatprep.subr.bf16.mxu0 0
        %420 = vmatpush1.bf16.xpose.msra.mxu0 %v417
        %421 = vmatprep.subr.bf16.mxu0 0
        %422 = vmatpush1.bf16.xpose.msra.mxu0 0
        %423 = vmatprep.subr.bf16.mxu0 0
        %424 = vmatpush1.bf16.xpose.msra.mxu0 0
        %425 = vmatprep.subr.bf16.mxu0 0
        %426 = vmatpush1.bf16.xpose.msra.mxu0 0
        %427 = vmatprep.subr.bf16.mxu0 0
        %428 = vmatpush1.bf16.xpose.msra.mxu0 0
        %429 = vmatprep.subr.bf16.mxu0 0
        %430 = vmatpush1.bf16.xpose.msra.mxu0 0
        %431 = vmatprep.subr.bf16.mxu0 0
        %432 = vmatpush1.bf16.xpose.msra.mxu0 0
        %433 = vmatprep.subr.bf16.mxu0 0
        %434 = vmatpush1.bf16.xpose.msra.mxu0 0
        %435 = vmatprep.subr.bf16.mxu0 0
        %436 = vmatpush1.bf16.xpose.msra.mxu0 0
        %437 = vmatprep.subr.bf16.mxu0 0
        %438 = vmatpush1.bf16.xpose.msra.mxu0 0
        %439 = vmatprep.subr.bf16.mxu0 0
        %440 = vmatpush1.bf16.xpose.msra.mxu0 0
        %441 = vmatprep.subr.bf16.mxu0 0
        %442 = vmatpush1.bf16.xpose.msra.mxu0 0
        %443 = vmatprep.subr.bf16.mxu0 0
        %444 = vmatpush1.bf16.xpose.msra.mxu0 0
        %445 = vmatprep.subr.bf16.mxu0 0
        %446 = vmatpush1.bf16.xpose.msra.mxu0 0
        %447 = vmatprep.subr.bf16.mxu0 0
        %448 = vmatpush1.bf16.xpose.msra.mxu0 0
        %449 = vmatprep.subr.bf16.mxu0 0
        %450 = vmatpush1.bf16.xpose.msra.mxu0 0
        %451 = vmatprep.mubr.bf16.mxu0 0
        %452 = vmatmul.mubr.bf16.gmra.mrb[0].mxu0 %v414
        %v453 = vpop.f32.mrb[0].mxu0
        %v454 = vadd.f32 0.0, %v453
        %v455 = vpop.f32.mrb[0].mxu0
        %v456 = vpop.f32.mrb[0].mxu0
        %v457 = vpop.f32.mrb[0].mxu0
        %458 = vdwg.mxu0
        %v459 = vsel %vm412, %v454, -inf
        %460 = vmax.xlane.f32.xlu0 %v459
        %v461 = vpop.xlane.xlu0 %460
        %v462 = vsub.f32 %v454, %v461
        %v463 = vmul.f32 %v462, 1.442695
        %v464 = vpow.pop %v463
        %v465 = vsel %vm412, %v464, 0.0
        %466 = vadd.xlane.f32.xlu0 %v465
        %v467 = vpop.xlane.xlu0 %466
        %v468 = vrcp.pop %v467
        %v469 = vmul.f32 %v464, %v468
        %v470 = vpack.c.bf16 %v469, %v469
        %471 = vrot.lane.b32.xlu0 %v408, 64
        %v472 = vpop.permute.xlu0 %471
        %v474 = vsel %vm412, %v470, 0
        %vm476 = vcmask 1043456
        %v478 = vsel %vm476, %v472, 0
        %480 = vmatprep.subr.bf16.mxu0 0
        %481 = vmatpush1.bf16.msra.mxu0 %v478
        %482 = vmatprep.subr.bf16.mxu0 0
        %483 = vmatpush1.bf16.msra.mxu0 0
        %484 = vmatprep.subr.bf16.mxu0 0
        %485 = vmatpush1.bf16.msra.mxu0 0
        %486 = vmatprep.subr.bf16.mxu0 0
        %487 = vmatpush1.bf16.msra.mxu0 0
        %488 = vmatprep.subr.bf16.mxu0 0
        %489 = vmatpush1.bf16.msra.mxu0 0
        %490 = vmatprep.subr.bf16.mxu0 0
        %491 = vmatpush1.bf16.msra.mxu0 0
        %492 = vmatprep.subr.bf16.mxu0 0
        %493 = vmatpush1.bf16.msra.mxu0 0
        %494 = vmatprep.subr.bf16.mxu0 0
        %495 = vmatpush1.bf16.msra.mxu0 0
        %496 = vmatprep.subr.bf16.mxu0 0
        %497 = vmatpush1.bf16.msra.mxu0 0
        %498 = vmatprep.subr.bf16.mxu0 0
        %499 = vmatpush1.bf16.msra.mxu0 0
        %500 = vmatprep.subr.bf16.mxu0 0
        %501 = vmatpush1.bf16.msra.mxu0 0
        %502 = vmatprep.subr.bf16.mxu0 0
        %503 = vmatpush1.bf16.msra.mxu0 0
        %504 = vmatprep.subr.bf16.mxu0 0
        %505 = vmatpush1.bf16.msra.mxu0 0
        %506 = vmatprep.subr.bf16.mxu0 0
        %507 = vmatpush1.bf16.msra.mxu0 0
        %508 = vmatprep.subr.bf16.mxu0 0
        %509 = vmatpush1.bf16.msra.mxu0 0
        %510 = vmatprep.subr.bf16.mxu0 0
        %511 = vmatpush1.bf16.msra.mxu0 0
        %512 = vmatprep.mubr.bf16.mxu0 0
        %513 = vmatmul.mubr.bf16.gmra.mrb[0].mxu0 %v474
        %v514 = vpop.f32.mrb[0].mxu0
        %v515 = vadd.f32 0.0, %v514
        %v516 = vpop.f32.mrb[0].mxu0
        %v517 = vpop.f32.mrb[0].mxu0
        %v518 = vpop.f32.mrb[0].mxu0
        %519 = vdwg.mxu0
        %v520 = vpack.c.bf16 %v515, %v515
        %521 = vrot.lane.b32.xlu0 %v408, 120
        %v522 = vpop.permute.xlu0 %521
        %523 = vrot.lane.b32.xlu0 %v408, 88
        %v524 = vpop.permute.xlu0 %523
        %v526 = vsel %vm412, %v522, 0
        %v529 = vsel %vm412, %v524, 0
        %531 = vmatprep.subr.bf16.mxu0 0
        %532 = vmatpush1.bf16.xpose.msra.mxu0 %v529
        %533 = vmatprep.subr.bf16.mxu0 0
        %534 = vmatpush1.bf16.xpose.msra.mxu0 0
        %535 = vmatprep.subr.bf16.mxu0 0
        %536 = vmatpush1.bf16.xpose.msra.mxu0 0
        %537 = vmatprep.subr.bf16.mxu0 0
        %538 = vmatpush1.bf16.xpose.msra.mxu0 0
        %539 = vmatprep.subr.bf16.mxu0 0
        %540 = vmatpush1.bf16.xpose.msra.mxu0 0
        %541 = vmatprep.subr.bf16.mxu0 0
        %542 = vmatpush1.bf16.xpose.msra.mxu0 0
        %543 = vmatprep.subr.bf16.mxu0 0
        %544 = vmatpush1.bf16.xpose.msra.mxu0 0
        %545 = vmatprep.subr.bf16.mxu0 0
        %546 = vmatpush1.bf16.xpose.msra.mxu0 0
        %547 = vmatprep.subr.bf16.mxu0 0
        %548 = vmatpush1.bf16.xpose.msra.mxu0 0
        %549 = vmatprep.subr.bf16.mxu0 0
        %550 = vmatpush1.bf16.xpose.msra.mxu0 0
        %551 = vmatprep.subr.bf16.mxu0 0
        %552 = vmatpush1.bf16.xpose.msra.mxu0 0
        %553 = vmatprep.subr.bf16.mxu0 0
        %554 = vmatpush1.bf16.xpose.msra.mxu0 0
        %555 = vmatprep.subr.bf16.mxu0 0
        %556 = vmatpush1.bf16.xpose.msra.mxu0 0
        %557 = vmatprep.subr.bf16.mxu0 0
        %558 = vmatpush1.bf16.xpose.msra.mxu0 0
        %559 = vmatprep.subr.bf16.mxu0 0
        %560 = vmatpush1.bf16.xpose.msra.mxu0 0
        %561 = vmatprep.subr.bf16.mxu0 0
        %562 = vmatpush1.bf16.xpose.msra.mxu0 0
        %563 = vmatprep.mubr.bf16.mxu0 0
        %564 = vmatmul.mubr.bf16.gmra.mrb[0].mxu0 %v526
        %v565 = vpop.f32.mrb[0].mxu0
        %v566 = vadd.f32 0.0, %v565
        %v567 = vpop.f32.mrb[0].mxu0
        %v568 = vpop.f32.mrb[0].mxu0
        %v569 = vpop.f32.mrb[0].mxu0
        %570 = vdwg.mxu0
        %v571 = vsel %vm412, %v566, -inf
        %572 = vmax.xlane.f32.xlu0 %v571
        %v573 = vpop.xlane.xlu0 %572
        %v574 = vsub.f32 %v566, %v573
        %v575 = vmul.f32 %v574, 1.442695
        %v576 = vpow.pop %v575
        %v577 = vsel %vm412, %v576, 0.0
        %578 = vadd.xlane.f32.xlu0 %v577
        %v579 = vpop.xlane.xlu0 %578
        %v580 = vrcp.pop %v579
        %v581 = vmul.f32 %v576, %v580
        %v582 = vpack.c.bf16 %v581, %v581
        %583 = vrot.lane.b32.xlu0 %v408, 56
        %v584 = vpop.permute.xlu0 %583
        %v586 = vsel %vm412, %v582, 0
        %v589 = vsel %vm476, %v584, 0
        %591 = vmatprep.subr.bf16.mxu0 0
        %592 = vmatpush1.bf16.msra.mxu0 %v589
        %593 = vmatprep.subr.bf16.mxu0 0
        %594 = vmatpush1.bf16.msra.mxu0 0
        %595 = vmatprep.subr.bf16.mxu0 0
        %596 = vmatpush1.bf16.msra.mxu0 0
        %597 = vmatprep.subr.bf16.mxu0 0
        %598 = vmatpush1.bf16.msra.mxu0 0
        %599 = vmatprep.subr.bf16.mxu0 0
        %600 = vmatpush1.bf16.msra.mxu0 0
        %601 = vmatprep.subr.bf16.mxu0 0
        %602 = vmatpush1.bf16.msra.mxu0 0
        %603 = vmatprep.subr.bf16.mxu0 0
        %604 = vmatpush1.bf16.msra.mxu0 0
        %605 = vmatprep.subr.bf16.mxu0 0
        %606 = vmatpush1.bf16.msra.mxu0 0
        %607 = vmatprep.subr.bf16.mxu0 0
        %608 = vmatpush1.bf16.msra.mxu0 0
        %609 = vmatprep.subr.bf16.mxu0 0
        %610 = vmatpush1.bf16.msra.mxu0 0
        %611 = vmatprep.subr.bf16.mxu0 0
        %612 = vmatpush1.bf16.msra.mxu0 0
        %613 = vmatprep.subr.bf16.mxu0 0
        %614 = vmatpush1.bf16.msra.mxu0 0
        %615 = vmatprep.subr.bf16.mxu0 0
        %616 = vmatpush1.bf16.msra.mxu0 0
        %617 = vmatprep.subr.bf16.mxu0 0
        %618 = vmatpush1.bf16.msra.mxu0 0
        %619 = vmatprep.subr.bf16.mxu0 0
        %620 = vmatpush1.bf16.msra.mxu0 0
        %621 = vmatprep.subr.bf16.mxu0 0
        %622 = vmatpush1.bf16.msra.mxu0 0
        %623 = vmatprep.mubr.bf16.mxu0 0
        %624 = vmatmul.mubr.bf16.gmra.mrb[0].mxu0 %v586
        %v625 = vpop.f32.mrb[0].mxu0
        %v626 = vadd.f32 0.0, %v625
        %v627 = vpop.f32.mrb[0].mxu0
        %v628 = vpop.f32.mrb[0].mxu0
        %v629 = vpop.f32.mrb[0].mxu0
        %630 = vdwg.mxu0
        %v631 = vpack.c.bf16 %v626, %v626
        %632 = vrot.lane.b32.xlu0 %v408, 112
        %v633 = vpop.permute.xlu0 %632
        %634 = vrot.lane.b32.xlu0 %v408, 80
        %v635 = vpop.permute.xlu0 %634
        %v637 = vsel %vm412, %v633, 0
        %v640 = vsel %vm412, %v635, 0
        %642 = vmatprep.subr.bf16.mxu0 0
        %643 = vmatpush1.bf16.xpose.msra.mxu0 %v640
        %644 = vmatprep.subr.bf16.mxu0 0
        %645 = vmatpush1.bf16.xpose.msra.mxu0 0
        %646 = vmatprep.subr.bf16.mxu0 0
        %647 = vmatpush1.bf16.xpose.msra.mxu0 0
        %648 = vmatprep.subr.bf16.mxu0 0
        %649 = vmatpush1.bf16.xpose.msra.mxu0 0
        %650 = vmatprep.subr.bf16.mxu0 0
        %651 = vmatpush1.bf16.xpose.msra.mxu0 0
        %652 = vmatprep.subr.bf16.mxu0 0
        %653 = vmatpush1.bf16.xpose.msra.mxu0 0
        %654 = vmatprep.subr.bf16.mxu0 0
        %655 = vmatpush1.bf16.xpose.msra.mxu0 0
        %656 = vmatprep.subr.bf16.mxu0 0
        %657 = vmatpush1.bf16.xpose.msra.mxu0 0
        %658 = vmatprep.subr.bf16.mxu0 0
        %659 = vmatpush1.bf16.xpose.msra.mxu0 0
        %660 = vmatprep.subr.bf16.mxu0 0
        %661 = vmatpush1.bf16.xpose.msra.mxu0 0
        %662 = vmatprep.subr.bf16.mxu0 0
        %663 = vmatpush1.bf16.xpose.msra.mxu0 0
        %664 = vmatprep.subr.bf16.mxu0 0
        %665 = vmatpush1.bf16.xpose.msra.mxu0 0
        %666 = vmatprep.subr.bf16.mxu0 0
        %667 = vmatpush1.bf16.xpose.msra.mxu0 0
        %668 = vmatprep.subr.bf16.mxu0 0
        %669 = vmatpush1.bf16.xpose.msra.mxu0 0
        %670 = vmatprep.subr.bf16.mxu0 0
        %671 = vmatpush1.bf16.xpose.msra.mxu0 0
        %672 = vmatprep.subr.bf16.mxu0 0
        %673 = vmatpush1.bf16.xpose.msra.mxu0 0
        %674 = vmatprep.mubr.bf16.mxu0 0
        %675 = vmatmul.mubr.bf16.gmra.mrb[0].mxu0 %v637
        %v676 = vpop.f32.mrb[0].mxu0
        %v677 = vadd.f32 0.0, %v676
        %v678 = vpop.f32.mrb[0].mxu0
        %v679 = vpop.f32.mrb[0].mxu0
        %v680 = vpop.f32.mrb[0].mxu0
        %681 = vdwg.mxu0
        %v682 = vsel %vm412, %v677, -inf
        %683 = vmax.xlane.f32.xlu0 %v682
        %v684 = vpop.xlane.xlu0 %683
        %v685 = vsub.f32 %v677, %v684
        %v686 = vmul.f32 %v685, 1.442695
        %v687 = vpow.pop %v686
        %v688 = vsel %vm412, %v687, 0.0
        %689 = vadd.xlane.f32.xlu0 %v688
        %v690 = vpop.xlane.xlu0 %689
        %v691 = vrcp.pop %v690
        %v692 = vmul.f32 %v687, %v691
        %v693 = vpack.c.bf16 %v692, %v692
        %694 = vrot.lane.b32.xlu0 %v408, 48
        %v695 = vpop.permute.xlu0 %694
        %v697 = vsel %vm412, %v693, 0
        %v700 = vsel %vm476, %v695, 0
        %702 = vmatprep.subr.bf16.mxu0 0
        %703 = vmatpush1.bf16.msra.mxu0 %v700
        %704 = vmatprep.subr.bf16.mxu0 0
        %705 = vmatpush1.bf16.msra.mxu0 0
        %706 = vmatprep.subr.bf16.mxu0 0
        %707 = vmatpush1.bf16.msra.mxu0 0
        %708 = vmatprep.subr.bf16.mxu0 0
        %709 = vmatpush1.bf16.msra.mxu0 0
        %710 = vmatprep.subr.bf16.mxu0 0
        %711 = vmatpush1.bf16.msra.mxu0 0
        %712 = vmatprep.subr.bf16.mxu0 0
        %713 = vmatpush1.bf16.msra.mxu0 0
        %714 = vmatprep.subr.bf16.mxu0 0
        %715 = vmatpush1.bf16.msra.mxu0 0
        %716 = vmatprep.subr.bf16.mxu0 0
        %717 = vmatpush1.bf16.msra.mxu0 0
        %718 = vmatprep.subr.bf16.mxu0 0
        %719 = vmatpush1.bf16.msra.mxu0 0
        %720 = vmatprep.subr.bf16.mxu0 0
        %721 = vmatpush1.bf16.msra.mxu0 0
        %722 = vmatprep.subr.bf16.mxu0 0
        %723 = vmatpush1.bf16.msra.mxu0 0
        %724 = vmatprep.subr.bf16.mxu0 0
        %725 = vmatpush1.bf16.msra.mxu0 0
        %726 = vmatprep.subr.bf16.mxu0 0
        %727 = vmatpush1.bf16.msra.mxu0 0
        %728 = vmatprep.subr.bf16.mxu0 0
        %729 = vmatpush1.bf16.msra.mxu0 0
        %730 = vmatprep.subr.bf16.mxu0 0
        %731 = vmatpush1.bf16.msra.mxu0 0
        %732 = vmatprep.subr.bf16.mxu0 0
        %733 = vmatpush1.bf16.msra.mxu0 0
        %734 = vmatprep.mubr.bf16.mxu0 0
        %735 = vmatmul.mubr.bf16.gmra.mrb[0].mxu0 %v697
        %v736 = vpop.f32.mrb[0].mxu0
        %v737 = vadd.f32 0.0, %v736
        %v738 = vpop.f32.mrb[0].mxu0
        %v739 = vpop.f32.mrb[0].mxu0
        %v740 = vpop.f32.mrb[0].mxu0
        %741 = vdwg.mxu0
        %v742 = vpack.c.bf16 %v737, %v737
        %743 = vrot.lane.b32.xlu0 %v408, 104
        %v744 = vpop.permute.xlu0 %743
        %745 = vrot.lane.b32.xlu0 %v408, 72
        %v746 = vpop.permute.xlu0 %745
        %v748 = vsel %vm412, %v744, 0
        %v751 = vsel %vm412, %v746, 0
        %753 = vmatprep.subr.bf16.mxu0 0
        %754 = vmatpush1.bf16.xpose.msra.mxu0 %v751
        %755 = vmatprep.subr.bf16.mxu0 0
        %756 = vmatpush1.bf16.xpose.msra.mxu0 0
        %757 = vmatprep.subr.bf16.mxu0 0
        %758 = vmatpush1.bf16.xpose.msra.mxu0 0
        %759 = vmatprep.subr.bf16.mxu0 0
        %760 = vmatpush1.bf16.xpose.msra.mxu0 0
        %761 = vmatprep.subr.bf16.mxu0 0
        %762 = vmatpush1.bf16.xpose.msra.mxu0 0
        %763 = vmatprep.subr.bf16.mxu0 0
        %764 = vmatpush1.bf16.xpose.msra.mxu0 0
        %765 = vmatprep.subr.bf16.mxu0 0
        %766 = vmatpush1.bf16.xpose.msra.mxu0 0
        %767 = vmatprep.subr.bf16.mxu0 0
        %768 = vmatpush1.bf16.xpose.msra.mxu0 0
        %769 = vmatprep.subr.bf16.mxu0 0
        %770 = vmatpush1.bf16.xpose.msra.mxu0 0
        %771 = vmatprep.subr.bf16.mxu0 0
        %772 = vmatpush1.bf16.xpose.msra.mxu0 0
        %773 = vmatprep.subr.bf16.mxu0 0
        %774 = vmatpush1.bf16.xpose.msra.mxu0 0
        %775 = vmatprep.subr.bf16.mxu0 0
        %776 = vmatpush1.bf16.xpose.msra.mxu0 0
        %777 = vmatprep.subr.bf16.mxu0 0
        %778 = vmatpush1.bf16.xpose.msra.mxu0 0
        %779 = vmatprep.subr.bf16.mxu0 0
        %780 = vmatpush1.bf16.xpose.msra.mxu0 0
        %781 = vmatprep.subr.bf16.mxu0 0
        %782 = vmatpush1.bf16.xpose.msra.mxu0 0
        %783 = vmatprep.subr.bf16.mxu0 0
        %784 = vmatpush1.bf16.xpose.msra.mxu0 0
        %785 = vmatprep.mubr.bf16.mxu0 0
        %786 = vmatmul.mubr.bf16.gmra.mrb[0].mxu0 %v748
        %v787 = vpop.f32.mrb[0].mxu0
        %v788 = vadd.f32 0.0, %v787
        %v789 = vpop.f32.mrb[0].mxu0
        %v790 = vpop.f32.mrb[0].mxu0
        %v791 = vpop.f32.mrb[0].mxu0
        %792 = vdwg.mxu0
        %v793 = vsel %vm412, %v788, -inf
        %794 = vmax.xlane.f32.xlu0 %v793
        %v795 = vpop.xlane.xlu0 %794
        %v796 = vsub.f32 %v788, %v795
        %v797 = vmul.f32 %v796, 1.442695
        %v798 = vpow.pop %v797
        %v799 = vsel %vm412, %v798, 0.0
        %800 = vadd.xlane.f32.xlu0 %v799
        %v801 = vpop.xlane.xlu0 %800
        %v802 = vrcp.pop %v801
        %v803 = vmul.f32 %v798, %v802
        %v804 = vpack.c.bf16 %v803, %v803
        %805 = vrot.lane.b32.xlu0 %v408, 40
        %v806 = vpop.permute.xlu0 %805
        %v808 = vsel %vm412, %v804, 0
        %v811 = vsel %vm476, %v806, 0
        %813 = vmatprep.subr.bf16.mxu0 0
        %814 = vmatpush1.bf16.msra.mxu0 %v811
        %815 = vmatprep.subr.bf16.mxu0 0
        %816 = vmatpush1.bf16.msra.mxu0 0
        %817 = vmatprep.subr.bf16.mxu0 0
        %818 = vmatpush1.bf16.msra.mxu0 0
        %819 = vmatprep.subr.bf16.mxu0 0
        %820 = vmatpush1.bf16.msra.mxu0 0
        %821 = vmatprep.subr.bf16.mxu0 0
        %822 = vmatpush1.bf16.msra.mxu0 0
        %823 = vmatprep.subr.bf16.mxu0 0
        %824 = vmatpush1.bf16.msra.mxu0 0
        %825 = vmatprep.subr.bf16.mxu0 0
        %826 = vmatpush1.bf16.msra.mxu0 0
        %827 = vmatprep.subr.bf16.mxu0 0
        %828 = vmatpush1.bf16.msra.mxu0 0
        %829 = vmatprep.subr.bf16.mxu0 0
        %830 = vmatpush1.bf16.msra.mxu0 0
        %831 = vmatprep.subr.bf16.mxu0 0
        %832 = vmatpush1.bf16.msra.mxu0 0
        %833 = vmatprep.subr.bf16.mxu0 0
        %834 = vmatpush1.bf16.msra.mxu0 0
        %835 = vmatprep.subr.bf16.mxu0 0
        %836 = vmatpush1.bf16.msra.mxu0 0
        %837 = vmatprep.subr.bf16.mxu0 0
        %838 = vmatpush1.bf16.msra.mxu0 0
        %839 = vmatprep.subr.bf16.mxu0 0
        %840 = vmatpush1.bf16.msra.mxu0 0
        %841 = vmatprep.subr.bf16.mxu0 0
        %842 = vmatpush1.bf16.msra.mxu0 0
        %843 = vmatprep.subr.bf16.mxu0 0
        %844 = vmatpush1.bf16.msra.mxu0 0
        %845 = vmatprep.mubr.bf16.mxu0 0
        %846 = vmatmul.mubr.bf16.gmra.mrb[0].mxu0 %v808
        %v847 = vpop.f32.mrb[0].mxu0
        %v848 = vadd.f32 0.0, %v847
        %v849 = vpop.f32.mrb[0].mxu0
        %v850 = vpop.f32.mrb[0].mxu0
        %v851 = vpop.f32.mrb[0].mxu0
        %852 = vdwg.mxu0
        %v853 = vpack.c.bf16 %v848, %v848
        %855 = vrot.lane.b32.xlu0 %v631, 8
        %v856 = vpop.permute.xlu0 %855
        %858 = vrot.lane.b32.xlu0 %v742, 16
        %v859 = vpop.permute.xlu0 %858
        %861 = vrot.lane.b32.xlu0 %v853, 24
        %v862 = vpop.permute.xlu0 %861
        %v865 = vsel %vm412, %v520, %v856
        %vm866 = vcmask 130048
        %v868 = vsel %vm866, %v865, %v859
        %vm869 = vcmask 195584
        %v871 = vsel %vm869, %v868, %v862
        %v872 = vld [vmem:[%s298] sm:$0xff]
        %v873 = vld [vmem:[%s294] sm:$0xf]
        %v874 = vld [vmem:[%s294 + $0x4] sm:$0xf]
        %v875 = vld [vmem:[%s294 + $0x8] sm:$0xf]
        %v876 = vld [vmem:[%s294 + $0xc] sm:$0xf]
        %v881 = vunpack.c.l.b16 %v873
        %v882 = vunpack.c.l.b16 %v874
        %v883 = vunpack.c.l.b16 %v875
        %v884 = vunpack.c.l.b16 %v876
        %v885 = vpack.c.b16 %v882, %v881
        %v886 = vpack.c.b16 %v884, %v883
        %v889 = vsel %vm364, %v871, 0
        %891 = vmatprep.subr.bf16.mxu0 0
        %892 = vmatpush1.bf16.msra.mxu0 %v885
        %893 = vmatprep.subr.bf16.mxu0 0
        %894 = vmatpush1.bf16.msra.mxu0 %v886
        %895 = vmatprep.subr.bf16.mxu0 0
        %896 = vmatpush1.bf16.msra.mxu0 0
        %897 = vmatprep.subr.bf16.mxu0 0
        %898 = vmatpush1.bf16.msra.mxu0 0
        %899 = vmatprep.subr.bf16.mxu0 0
        %900 = vmatpush1.bf16.msra.mxu0 0
        %901 = vmatprep.subr.bf16.mxu0 0
        %902 = vmatpush1.bf16.msra.mxu0 0
        %903 = vmatprep.subr.bf16.mxu0 0
        %904 = vmatpush1.bf16.msra.mxu0 0
        %905 = vmatprep.subr.bf16.mxu0 0
        %906 = vmatpush1.bf16.msra.mxu0 0
        %907 = vmatprep.subr.bf16.mxu0 0
        %908 = vmatpush1.bf16.msra.mxu0 0
        %909 = vmatprep.subr.bf16.mxu0 0
        %910 = vmatpush1.bf16.msra.mxu0 0
        %911 = vmatprep.subr.bf16.mxu0 0
        %912 = vmatpush1.bf16.msra.mxu0 0
        %913 = vmatprep.subr.bf16.mxu0 0
        %914 = vmatpush1.bf16.msra.mxu0 0
        %915 = vmatprep.subr.bf16.mxu0 0
        %916 = vmatpush1.bf16.msra.mxu0 0
        %917 = vmatprep.subr.bf16.mxu0 0
        %918 = vmatpush1.bf16.msra.mxu0 0
        %919 = vmatprep.subr.bf16.mxu0 0
        %920 = vmatpush1.bf16.msra.mxu0 0
        %921 = vmatprep.subr.bf16.mxu0 0
        %922 = vmatpush1.bf16.msra.mxu0 0
        %923 = vmatprep.mubr.bf16.mxu0 0
        %924 = vmatmul.mubr.bf16.gmra.mrb[0].mxu0 %v889
        %v925 = vpop.f32.mrb[0].mxu0
        %v926 = vadd.f32 0.0, %v925
        %v927 = vpop.f32.mrb[0].mxu0
        %v928 = vpop.f32.mrb[0].mxu0
        %v929 = vpop.f32.mrb[0].mxu0
        %930 = vdwg.mxu0
        %v931 = vadd.f32 %v872, %v926
        %932 = vst.msk [vmem:[%s298] sm:$0xff] %vm364, %v931
        %p933 = scmp.lt.s32.totalorder %s21, 1
        %s934 = scalar_select %p933, %s21, 1
        %s935 = smul.addr %s934, 8
        %s936 = scalar_lea.vmem %s5, %s935
        // Predicated region
        $region49: #{forward.4} parent=39 // pred_check
          %p937 = pneg %p172
        $region50: #{forward.4} parent=39 // pred_check_branch
          %939 = sbr.rel (%p937) target = $region52
        $region51: #{forward.4} parent=39 // pred_region
          _
        $region52: #{forward.4} parent=39 // pred_fallthru
          _
      $region40: #{forward.4} parent=5 // pred_fallthru
        _
      %p940 = scmp.le.s32.totalorder 2, %s12
      // Predicated region
      $region53: #{forward.4} parent=5 // pred_check
        %p941 = pneg %p940
      $region54: #{forward.4} parent=5 // pred_check_branch
        %943 = sbr.rel (%p941) target = $region56
      $region55: #{forward.4} parent=5 // pred_region
        %s944 = ssub.s32 %s12, 2
        // Predicated region
        $region57: #{forward.4} parent=55 // pred_check
          %p945 = pneg %p178
        $region58: #{forward.4} parent=55 // pred_check_branch
          %947 = sbr.rel (%p945) target = $region60
        $region59: #{forward.4} parent=55 // pred_region
          %p948 = scmp.lt.s32.totalorder %s23, 1
          %s949 = scalar_select %p948, %s23, 1
          %s950 = smul.addr %s949, 8
          %s951 = scalar_lea.vmem %s5, %s950
        $region60: #{forward.4} parent=55 // pred_fallthru
          _
      $region56: #{forward.4} parent=5 // pred_fallthru
        _
    $region6: #{forward.4} parent=1 // loop_footer
      %s16 = sadd.s32 1, %s12
    $region7: #{forward.4} parent=1 // loop_footer_branch
      %11 = sbr.rel target = $region3
    $region8: #{forward.4} parent=1 // loop_exit
      _
    %952 = vsyncpa [#allocation4], 1
    %s953 = scalar_lea.sflag [#allocation4], 1
    %954 = vsyncpa %s953, 1

</llo_original>
